<compile_context>
chip_gen: v7x
topology: tpu7x:2x2x1
jax: 0.10.0
libtpu: 0.0.40
codegen_flags: <defaults>
</compile_context>

<pallas_src>
import functools
import math

import jax
import jax.numpy as jnp
import numpy as np
from jax.experimental import pallas as pl
from jax.experimental.pallas import tpu as pltpu


def _round_up(v, m):
    return (v + m - 1) // m * m


# ----------------------------- Pallas kernel -------------------------------
def _kan_linear_kernel(x_ref, grid_t_ref, rcp_ref, w_ref, o_ref, *,
                       grid_size, spline_order):
    """One (batch-tile, IN-chunk) step of the KANLinear forward.

    x_ref:      (TB, INc)              input tile (f32)
    grid_t_ref: (G2, INc)              transposed knot grid, G2 = grid_size + 2*spline_order + 1
    rcp_ref:    (NR, INc)              Cox-de Boor reciprocals (right-hand ones pre-negated)
    w_ref:      (1, (K+1)*INc, OUTp)   fused weight chunk: [base_weight.T ; k-major scaled spline]
    o_ref:      (TB, OUTp)             f32 output tile, accumulated across IN chunks
    """
    c = pl.program_id(1)                               # IN-chunk (reduction) index
    x = x_ref[...]                                     # (TB, INc) f32
    wdt = w_ref.dtype                                  # matmul operand dtype (f32 or bf16)

    # ---- base path activation: SiLU(x) (sigmoid on EUP, mul on VPU) ----
    silu = x * jax.nn.sigmoid(x)

    # ---- spline path: Cox-de Boor recursion, divide- and subtract-light ----
    grid_t = grid_t_ref[...]                           # (G2, INc)
    rcp = rcp_ref[...]                                 # (NR, INc)
    g2 = grid_size + 2 * spline_order + 1
    gcols = [grid_t[j:j + 1, :] for j in range(g2)]    # each (1, INc), bcast over batch
    dx = [x - gcols[j] for j in range(g2)]             # reused across all levels

    # order-0 indicator bases: (x >= t_j) & (x < t_{j+1})  (half-open, as in the reference)
    bases = [((x >= gcols[j]) & (x < gcols[j + 1])).astype(jnp.float32)
             for j in range(g2 - 1)]

    # recursion up to spline_order (statically unrolled; all arrays (TB, INc))
    r = 0
    for k in range(1, spline_order + 1):
        new_bases = []
        for j in range(len(bases) - 1):
            ra = rcp[r:r + 1, :]          #  1 / (g[j+k]   - g[j])
            rb_neg = rcp[r + 1:r + 2, :]  # -1 / (g[j+k+1] - g[j+1])
            r += 2
            # (x-g[j])*ra*B[j] + (g[j+k+1]-x)*rb*B[j+1], with the sign folded into rb_neg
            new_bases.append(dx[j] * ra * bases[j]
                             + dx[j + k + 1] * rb_neg * bases[j + 1])
        bases = new_bases
    # len(bases) == K == grid_size + spline_order

    # ---- single fused matmul: [SiLU | bases] (TB,(K+1)*INc) @ ((K+1)*INc,OUTp) ----
    feats = jnp.concatenate([silu] + bases, axis=-1)   # (TB, (K+1)*INc), base-then-k-major
    partial = jnp.dot(feats.astype(wdt), w_ref[0],
                      preferred_element_type=jnp.float32)

    # ---- accumulate across IN chunks into the resident f32 output block ----
    @pl.when(c == 0)
    def _():
        o_ref[...] = partial

    @pl.when(c > 0)
    def _():
        o_ref[...] += partial


# ------------------------------- wrapper ------------------------------------
def kan_linear_forward(x, grid, base_weight, spline_weight, spline_scaler,
                       *, grid_size, spline_order, batch_tile=256,
                       in_chunk=512, matmul_dtype=jnp.float32):
    """x: (B, IN) f32. Returns (B, OUT) f32."""
    B, IN = x.shape
    OUT = base_weight.shape[0]
    K = grid_size + spline_order
    G2 = grid_size + 2 * spline_order + 1
    assert spline_order >= 1
    assert grid.shape == (IN, G2)

    # ----- tiling choices -----
    if IN <= in_chunk:
        INc = IN                                   # single chunk (must equal full dim)
    else:
        assert in_chunk % 128 == 0 and IN % in_chunk == 0, \
            "in_chunk must be a multiple of 128 dividing in_features"
        INc = in_chunk
    NC = IN // INc

    TB = _round_up(max(8, min(batch_tile, _round_up(B, 8))), 8)
    Bp = _round_up(B, TB)                          # padded batch (no divisibility assert)
    OUTp = _round_up(OUT, 128)                     # lane-dense output

    # ----- parameter preparation (glue, plain JAX) -----
    x_p = jnp.pad(x.astype(jnp.float32), ((0, Bp - B), (0, 0)))

    grid_t = jnp.transpose(grid).astype(jnp.float32)                   # (G2, IN)

    # Cox-de Boor denominator reciprocals, one row per (level, j, {a,b}) pair.
    # The "b" rows are pre-negated so the kernel can reuse (x - g[j+k+1]).
    rcp_rows = []
    n_bases = G2 - 1
    for k in range(1, spline_order + 1):
        for j in range(n_bases - 1):
            rcp_rows.append(1.0 / (grid[:, j + k] - grid[:, j]))            # (IN,)
            rcp_rows.append(-1.0 / (grid[:, j + k + 1] - grid[:, j + 1]))   # (IN,)
        n_bases -= 1
    rcp = jnp.stack(rcp_rows, axis=0).astype(jnp.float32)              # (NR, IN)
    NR = rcp.shape[0]

    # Fused weight: rows [0, INc) = base_weight.T chunk, then K slabs of INc rows
    # (k-major, feature-minor), matching the in-kernel [SiLU | bases_k] concat order.
    base_wt = jnp.transpose(base_weight)                               # (IN, OUT)
    base_wt = jnp.pad(base_wt, ((0, 0), (0, OUTp - OUT)))              # (IN, OUTp)
    base_wt = base_wt.reshape(NC, 1, INc, OUTp)

    scaled_sw = spline_weight * spline_scaler[..., None]               # (OUT, IN, K)
    sw = jnp.transpose(scaled_sw, (2, 1, 0))                           # (K, IN, OUT)
    sw = jnp.pad(sw, ((0, 0), (0, 0), (0, OUTp - OUT)))                # (K, IN, OUTp)
    sw = sw.reshape(K, NC, INc, OUTp).transpose(1, 0, 2, 3)            # (NC, K, INc, OUTp)

    w_all = jnp.concatenate([base_wt, sw], axis=1)                     # (NC, K+1, INc, OUTp)
    w_all = w_all.reshape(NC, (K + 1) * INc, OUTp).astype(matmul_dtype)

    kernel = functools.partial(_kan_linear_kernel,
                               grid_size=grid_size, spline_order=spline_order)

    out_p = pl.pallas_call(
        kernel,
        out_shape=jax.ShapeDtypeStruct((Bp, OUTp), jnp.float32),
        grid=(Bp // TB, NC),                                           # reduction axis last
        in_specs=[
            pl.BlockSpec((TB, INc), lambda i, c: (i, c)),              # x tile
            pl.BlockSpec((G2, INc), lambda i, c: (0, c)),              # knot grid chunk
            pl.BlockSpec((NR, INc), lambda i, c: (0, c)),              # reciprocals chunk
            pl.BlockSpec((1, (K + 1) * INc, OUTp),
                         lambda i, c: (c, 0, 0)),                      # fused weight chunk
        ],
        out_specs=pl.BlockSpec((TB, OUTp), lambda i, c: (i, 0)),       # resident across c
        compiler_params=pltpu.CompilerParams(
            dimension_semantics=("parallel", "arbitrary")),
    )(x_p, grid_t, rcp, w_all)

    return out_p[:B, :OUT]


# --------------------------- pure-JAX reference ------------------------------
def kan_linear_ref(x, grid, base_weight, spline_weight, spline_scaler,
                   *, grid_size, spline_order):
    silu = x * jax.nn.sigmoid(x)
    base_out = silu @ base_weight.T
    xg = x[:, :, None]
    g = grid[None, :, :]
    bases = ((xg >= g[..., :-1]) & (xg < g[..., 1:])).astype(x.dtype)
    for k in range(1, spline_order + 1):
        bases = ((xg - g[..., :-(k + 1)]) / (g[..., k:-1] - g[..., :-(k + 1)]) * bases[..., :-1]
                 + (g[..., k + 1:] - xg) / (g[..., k + 1:] - g[..., 1:-k]) * bases[..., 1:])
    scaled_w = spline_weight * spline_scaler[..., None]            # (OUT, IN, K)
    spline_out = bases.reshape(x.shape[0], -1) @ scaled_w.reshape(scaled_w.shape[0], -1).T
    return base_out + spline_out


# --------------------------------- main --------------------------------------
if __name__ == "__main__":
    # Module hyper-parameters (defaults of KANLinear)
    in_features, out_features = 32, 32
    grid_size, spline_order = 5, 3
    grid_range = (-1.0, 1.0)
    batch = 200     # deliberately not a multiple of the tile -> exercises batch padding

    key = jax.random.PRNGKey(0)
    kx, kb, ks, kc = jax.random.split(key, 4)

    # Knot grid buffer: (in_features, grid_size + 2*spline_order + 1), same as
    # the registered buffer in __init__ (uniform knots expanded over features).
    h = (grid_range[1] - grid_range[0]) / grid_size
    knots = (jnp.arange(-spline_order, grid_size + spline_order + 1,
                        dtype=jnp.float32) * h + grid_range[0])
    grid = jnp.broadcast_to(knots, (in_features, knots.shape[0]))

    # Deterministic synthetic parameter init (shapes from __init__).
    # TODO(synk): the original kaiming_uniform + lstsq(curve2coeff) init is a
    # checkpoint-like detail; deterministic uniform init is used instead.
    bound = 1.0 / math.sqrt(in_features)
    base_weight = jax.random.uniform(kb, (out_features, in_features),
                                     jnp.float32, -bound, bound)
    spline_weight = jax.random.uniform(
        ks, (out_features, in_features, grid_size + spline_order),
        jnp.float32, -0.05, 0.05)
    spline_scaler = jax.random.uniform(kc, (out_features, in_features),
                                       jnp.float32, -bound, bound)

    # Input (batch, in_features) inside the grid range.
    x = jax.random.uniform(kx, (batch, in_features), jnp.float32, -1.0, 1.0)

    # batch_tile=128 keeps >=2 grid steps at this demo size (v7x megacore);
    # at production sizes use the default 256+.
    out = kan_linear_forward(x, grid, base_weight, spline_weight, spline_scaler,
                             grid_size=grid_size, spline_order=spline_order,
                             batch_tile=128)
    out = jax.block_until_ready(out)

    ref = kan_linear_ref(x, grid, base_weight, spline_weight, spline_scaler,
                         grid_size=grid_size, spline_order=spline_order)
    np.testing.assert_allclose(np.asarray(out), np.asarray(ref),
                               rtol=1e-5, atol=2e-5)
    print("KERNEL_OK")
</pallas_src>

<mosaic_0001>
module attributes {stable_mosaic.version = 11 : i64} {
  func.func @_kan_linear_kernel(%arg0: i32, %arg1: i32, %arg2: memref<128x32xf32, #tpu.memory_space<vmem>>, %arg3: memref<12x32xf32, #tpu.memory_space<vmem>>, %arg4: memref<54x32xf32, #tpu.memory_space<vmem>>, %arg5: memref<1x288x128xf32, #tpu.memory_space<vmem>>, %arg6: memref<128x128xf32, #tpu.memory_space<vmem>>) attributes {dimension_semantics = [#tpu.dimension_semantics<parallel>, #tpu.dimension_semantics<arbitrary>], iteration_bounds = array<i64: 2, 1>, scalar_prefetch = 0 : i64, scratch_operands = 0 : i64, tpu.core_type = #tpu.core_type<tc>, window_params = [{transform_indices = @transform_0, window_bounds = array<i64: 128, 32>}, {transform_indices = @transform_1, window_bounds = array<i64: 12, 32>}, {transform_indices = @transform_2, window_bounds = array<i64: 54, 32>}, {transform_indices = @transform_3, window_bounds = array<i64: 1, 288, 128>}, {transform_indices = @transform_4, window_bounds = array<i64: 128, 128>}]} {
    %c0 = arith.constant 0 : index
    %c0_0 = arith.constant 0 : index
    %0 = vector.load %arg2[%c0, %c0_0] : memref<128x32xf32, #tpu.memory_space<vmem>>, vector<128x32xf32>
    %1 = arith.negf %0 : vector<128x32xf32>
    %2 = math.exp %1 : vector<128x32xf32>
    %cst = arith.constant 1.000000e+00 : f32
    %3 = vector.broadcast %cst : f32 to vector<128x32xf32>
    %4 = arith.addf %3, %2 : vector<128x32xf32>
    %5 = arith.divf %3, %4 : vector<128x32xf32>
    %6 = arith.mulf %0, %5 : vector<128x32xf32>
    %c0_1 = arith.constant 0 : index
    %c0_2 = arith.constant 0 : index
    %7 = vector.load %arg3[%c0_1, %c0_2] : memref<12x32xf32, #tpu.memory_space<vmem>>, vector<12x32xf32>
    %c0_3 = arith.constant 0 : index
    %c0_4 = arith.constant 0 : index
    %8 = vector.load %arg4[%c0_3, %c0_4] : memref<54x32xf32, #tpu.memory_space<vmem>>, vector<54x32xf32>
    %9 = vector.extract_strided_slice %7 {offsets = [0, 0], sizes = [1, 32], strides = [1, 1]} : vector<12x32xf32> to vector<1x32xf32>
    %10 = vector.extract_strided_slice %7 {offsets = [1, 0], sizes = [1, 32], strides = [1, 1]} : vector<12x32xf32> to vector<1x32xf32>
    %11 = vector.extract_strided_slice %7 {offsets = [2, 0], sizes = [1, 32], strides = [1, 1]} : vector<12x32xf32> to vector<1x32xf32>
    %12 = vector.extract_strided_slice %7 {offsets = [3, 0], sizes = [1, 32], strides = [1, 1]} : vector<12x32xf32> to vector<1x32xf32>
    %13 = vector.extract_strided_slice %7 {offsets = [4, 0], sizes = [1, 32], strides = [1, 1]} : vector<12x32xf32> to vector<1x32xf32>
    %14 = vector.extract_strided_slice %7 {offsets = [5, 0], sizes = [1, 32], strides = [1, 1]} : vector<12x32xf32> to vector<1x32xf32>
    %15 = vector.extract_strided_slice %7 {offsets = [6, 0], sizes = [1, 32], strides = [1, 1]} : vector<12x32xf32> to vector<1x32xf32>
    %16 = vector.extract_strided_slice %7 {offsets = [7, 0], sizes = [1, 32], strides = [1, 1]} : vector<12x32xf32> to vector<1x32xf32>
    %17 = vector.extract_strided_slice %7 {offsets = [8, 0], sizes = [1, 32], strides = [1, 1]} : vector<12x32xf32> to vector<1x32xf32>
    %18 = vector.extract_strided_slice %7 {offsets = [9, 0], sizes = [1, 32], strides = [1, 1]} : vector<12x32xf32> to vector<1x32xf32>
    %19 = vector.extract_strided_slice %7 {offsets = [10, 0], sizes = [1, 32], strides = [1, 1]} : vector<12x32xf32> to vector<1x32xf32>
    %20 = vector.extract_strided_slice %7 {offsets = [11, 0], sizes = [1, 32], strides = [1, 1]} : vector<12x32xf32> to vector<1x32xf32>
    %21 = vector.broadcast %9 : vector<1x32xf32> to vector<128x32xf32>
    %22 = arith.subf %0, %21 : vector<128x32xf32>
    %23 = vector.broadcast %10 : vector<1x32xf32> to vector<128x32xf32>
    %24 = arith.subf %0, %23 : vector<128x32xf32>
    %25 = vector.broadcast %11 : vector<1x32xf32> to vector<128x32xf32>
    %26 = arith.subf %0, %25 : vector<128x32xf32>
    %27 = vector.broadcast %12 : vector<1x32xf32> to vector<128x32xf32>
    %28 = arith.subf %0, %27 : vector<128x32xf32>
    %29 = vector.broadcast %13 : vector<1x32xf32> to vector<128x32xf32>
    %30 = arith.subf %0, %29 : vector<128x32xf32>
    %31 = vector.broadcast %14 : vector<1x32xf32> to vector<128x32xf32>
    %32 = arith.subf %0, %31 : vector<128x32xf32>
    %33 = vector.broadcast %15 : vector<1x32xf32> to vector<128x32xf32>
    %34 = arith.subf %0, %33 : vector<128x32xf32>
    %35 = vector.broadcast %16 : vector<1x32xf32> to vector<128x32xf32>
    %36 = arith.subf %0, %35 : vector<128x32xf32>
    %37 = vector.broadcast %17 : vector<1x32xf32> to vector<128x32xf32>
    %38 = arith.subf %0, %37 : vector<128x32xf32>
    %39 = vector.broadcast %18 : vector<1x32xf32> to vector<128x32xf32>
    %40 = arith.subf %0, %39 : vector<128x32xf32>
    %41 = vector.broadcast %19 : vector<1x32xf32> to vector<128x32xf32>
    %42 = arith.subf %0, %41 : vector<128x32xf32>
    %43 = vector.broadcast %20 : vector<1x32xf32> to vector<128x32xf32>
    %44 = arith.subf %0, %43 : vector<128x32xf32>
    %45 = vector.broadcast %9 : vector<1x32xf32> to vector<128x32xf32>
    %46 = arith.cmpf oge, %0, %45 : vector<128x32xf32>
    %47 = vector.broadcast %10 : vector<1x32xf32> to vector<128x32xf32>
    %48 = arith.cmpf olt, %0, %47 : vector<128x32xf32>
    %49 = arith.andi %46, %48 : vector<128x32xi1>
    %50 = arith.extui %49 : vector<128x32xi1> to vector<128x32xi32>
    %51 = arith.sitofp %50 : vector<128x32xi32> to vector<128x32xf32>
    %52 = vector.broadcast %10 : vector<1x32xf32> to vector<128x32xf32>
    %53 = arith.cmpf oge, %0, %52 : vector<128x32xf32>
    %54 = vector.broadcast %11 : vector<1x32xf32> to vector<128x32xf32>
    %55 = arith.cmpf olt, %0, %54 : vector<128x32xf32>
    %56 = arith.andi %53, %55 : vector<128x32xi1>
    %57 = arith.extui %56 : vector<128x32xi1> to vector<128x32xi32>
    %58 = arith.sitofp %57 : vector<128x32xi32> to vector<128x32xf32>
    %59 = vector.broadcast %11 : vector<1x32xf32> to vector<128x32xf32>
    %60 = arith.cmpf oge, %0, %59 : vector<128x32xf32>
    %61 = vector.broadcast %12 : vector<1x32xf32> to vector<128x32xf32>
    %62 = arith.cmpf olt, %0, %61 : vector<128x32xf32>
    %63 = arith.andi %60, %62 : vector<128x32xi1>
    %64 = arith.extui %63 : vector<128x32xi1> to vector<128x32xi32>
    %65 = arith.sitofp %64 : vector<128x32xi32> to vector<128x32xf32>
    %66 = vector.broadcast %12 : vector<1x32xf32> to vector<128x32xf32>
    %67 = arith.cmpf oge, %0, %66 : vector<128x32xf32>
    %68 = vector.broadcast %13 : vector<1x32xf32> to vector<128x32xf32>
    %69 = arith.cmpf olt, %0, %68 : vector<128x32xf32>
    %70 = arith.andi %67, %69 : vector<128x32xi1>
    %71 = arith.extui %70 : vector<128x32xi1> to vector<128x32xi32>
    %72 = arith.sitofp %71 : vector<128x32xi32> to vector<128x32xf32>
    %73 = vector.broadcast %13 : vector<1x32xf32> to vector<128x32xf32>
    %74 = arith.cmpf oge, %0, %73 : vector<128x32xf32>
    %75 = vector.broadcast %14 : vector<1x32xf32> to vector<128x32xf32>
    %76 = arith.cmpf olt, %0, %75 : vector<128x32xf32>
    %77 = arith.andi %74, %76 : vector<128x32xi1>
    %78 = arith.extui %77 : vector<128x32xi1> to vector<128x32xi32>
    %79 = arith.sitofp %78 : vector<128x32xi32> to vector<128x32xf32>
    %80 = vector.broadcast %14 : vector<1x32xf32> to vector<128x32xf32>
    %81 = arith.cmpf oge, %0, %80 : vector<128x32xf32>
    %82 = vector.broadcast %15 : vector<1x32xf32> to vector<128x32xf32>
    %83 = arith.cmpf olt, %0, %82 : vector<128x32xf32>
    %84 = arith.andi %81, %83 : vector<128x32xi1>
    %85 = arith.extui %84 : vector<128x32xi1> to vector<128x32xi32>
    %86 = arith.sitofp %85 : vector<128x32xi32> to vector<128x32xf32>
    %87 = vector.broadcast %15 : vector<1x32xf32> to vector<128x32xf32>
    %88 = arith.cmpf oge, %0, %87 : vector<128x32xf32>
    %89 = vector.broadcast %16 : vector<1x32xf32> to vector<128x32xf32>
    %90 = arith.cmpf olt, %0, %89 : vector<128x32xf32>
    %91 = arith.andi %88, %90 : vector<128x32xi1>
    %92 = arith.extui %91 : vector<128x32xi1> to vector<128x32xi32>
    %93 = arith.sitofp %92 : vector<128x32xi32> to vector<128x32xf32>
    %94 = vector.broadcast %16 : vector<1x32xf32> to vector<128x32xf32>
    %95 = arith.cmpf oge, %0, %94 : vector<128x32xf32>
    %96 = vector.broadcast %17 : vector<1x32xf32> to vector<128x32xf32>
    %97 = arith.cmpf olt, %0, %96 : vector<128x32xf32>
    %98 = arith.andi %95, %97 : vector<128x32xi1>
    %99 = arith.extui %98 : vector<128x32xi1> to vector<128x32xi32>
    %100 = arith.sitofp %99 : vector<128x32xi32> to vector<128x32xf32>
    %101 = vector.broadcast %17 : vector<1x32xf32> to vector<128x32xf32>
    %102 = arith.cmpf oge, %0, %101 : vector<128x32xf32>
    %103 = vector.broadcast %18 : vector<1x32xf32> to vector<128x32xf32>
    %104 = arith.cmpf olt, %0, %103 : vector<128x32xf32>
    %105 = arith.andi %102, %104 : vector<128x32xi1>
    %106 = arith.extui %105 : vector<128x32xi1> to vector<128x32xi32>
    %107 = arith.sitofp %106 : vector<128x32xi32> to vector<128x32xf32>
    %108 = vector.broadcast %18 : vector<1x32xf32> to vector<128x32xf32>
    %109 = arith.cmpf oge, %0, %108 : vector<128x32xf32>
    %110 = vector.broadcast %19 : vector<1x32xf32> to vector<128x32xf32>
    %111 = arith.cmpf olt, %0, %110 : vector<128x32xf32>
    %112 = arith.andi %109, %111 : vector<128x32xi1>
    %113 = arith.extui %112 : vector<128x32xi1> to vector<128x32xi32>
    %114 = arith.sitofp %113 : vector<128x32xi32> to vector<128x32xf32>
    %115 = vector.broadcast %19 : vector<1x32xf32> to vector<128x32xf32>
    %116 = arith.cmpf oge, %0, %115 : vector<128x32xf32>
    %117 = vector.broadcast %20 : vector<1x32xf32> to vector<128x32xf32>
    %118 = arith.cmpf olt, %0, %117 : vector<128x32xf32>
    %119 = arith.andi %116, %118 : vector<128x32xi1>
    %120 = arith.extui %119 : vector<128x32xi1> to vector<128x32xi32>
    %121 = arith.sitofp %120 : vector<128x32xi32> to vector<128x32xf32>
    %122 = vector.extract_strided_slice %8 {offsets = [0, 0], sizes = [1, 32], strides = [1, 1]} : vector<54x32xf32> to vector<1x32xf32>
    %123 = vector.extract_strided_slice %8 {offsets = [1, 0], sizes = [1, 32], strides = [1, 1]} : vector<54x32xf32> to vector<1x32xf32>
    %124 = vector.broadcast %122 : vector<1x32xf32> to vector<128x32xf32>
    %125 = arith.mulf %22, %124 : vector<128x32xf32>
    %126 = arith.mulf %125, %51 : vector<128x32xf32>
    %127 = vector.broadcast %123 : vector<1x32xf32> to vector<128x32xf32>
    %128 = arith.mulf %26, %127 : vector<128x32xf32>
    %129 = arith.mulf %128, %58 : vector<128x32xf32>
    %130 = arith.addf %126, %129 : vector<128x32xf32>
    %131 = vector.extract_strided_slice %8 {offsets = [2, 0], sizes = [1, 32], strides = [1, 1]} : vector<54x32xf32> to vector<1x32xf32>
    %132 = vector.extract_strided_slice %8 {offsets = [3, 0], sizes = [1, 32], strides = [1, 1]} : vector<54x32xf32> to vector<1x32xf32>
    %133 = vector.broadcast %131 : vector<1x32xf32> to vector<128x32xf32>
    %134 = arith.mulf %24, %133 : vector<128x32xf32>
    %135 = arith.mulf %134, %58 : vector<128x32xf32>
    %136 = vector.broadcast %132 : vector<1x32xf32> to vector<128x32xf32>
    %137 = arith.mulf %28, %136 : vector<128x32xf32>
    %138 = arith.mulf %137, %65 : vector<128x32xf32>
    %139 = arith.addf %135, %138 : vector<128x32xf32>
    %140 = vector.extract_strided_slice %8 {offsets = [4, 0], sizes = [1, 32], strides = [1, 1]} : vector<54x32xf32> to vector<1x32xf32>
    %141 = vector.extract_strided_slice %8 {offsets = [5, 0], sizes = [1, 32], strides = [1, 1]} : vector<54x32xf32> to vector<1x32xf32>
    %142 = vector.broadcast %140 : vector<1x32xf32> to vector<128x32xf32>
    %143 = arith.mulf %26, %142 : vector<128x32xf32>
    %144 = arith.mulf %143, %65 : vector<128x32xf32>
    %145 = vector.broadcast %141 : vector<1x32xf32> to vector<128x32xf32>
    %146 = arith.mulf %30, %145 : vector<128x32xf32>
    %147 = arith.mulf %146, %72 : vector<128x32xf32>
    %148 = arith.addf %144, %147 : vector<128x32xf32>
    %149 = vector.extract_strided_slice %8 {offsets = [6, 0], sizes = [1, 32], strides = [1, 1]} : vector<54x32xf32> to vector<1x32xf32>
    %150 = vector.extract_strided_slice %8 {offsets = [7, 0], sizes = [1, 32], strides = [1, 1]} : vector<54x32xf32> to vector<1x32xf32>
    %151 = vector.broadcast %149 : vector<1x32xf32> to vector<128x32xf32>
    %152 = arith.mulf %28, %151 : vector<128x32xf32>
    %153 = arith.mulf %152, %72 : vector<128x32xf32>
    %154 = vector.broadcast %150 : vector<1x32xf32> to vector<128x32xf32>
    %155 = arith.mulf %32, %154 : vector<128x32xf32>
    %156 = arith.mulf %155, %79 : vector<128x32xf32>
    %157 = arith.addf %153, %156 : vector<128x32xf32>
    %158 = vector.extract_strided_slice %8 {offsets = [8, 0], sizes = [1, 32], strides = [1, 1]} : vector<54x32xf32> to vector<1x32xf32>
    %159 = vector.extract_strided_slice %8 {offsets = [9, 0], sizes = [1, 32], strides = [1, 1]} : vector<54x32xf32> to vector<1x32xf32>
    %160 = vector.broadcast %158 : vector<1x32xf32> to vector<128x32xf32>
    %161 = arith.mulf %30, %160 : vector<128x32xf32>
    %162 = arith.mulf %161, %79 : vector<128x32xf32>
    %163 = vector.broadcast %159 : vector<1x32xf32> to vector<128x32xf32>
    %164 = arith.mulf %34, %163 : vector<128x32xf32>
    %165 = arith.mulf %164, %86 : vector<128x32xf32>
    %166 = arith.addf %162, %165 : vector<128x32xf32>
    %167 = vector.extract_strided_slice %8 {offsets = [10, 0], sizes = [1, 32], strides = [1, 1]} : vector<54x32xf32> to vector<1x32xf32>
    %168 = vector.extract_strided_slice %8 {offsets = [11, 0], sizes = [1, 32], strides = [1, 1]} : vector<54x32xf32> to vector<1x32xf32>
    %169 = vector.broadcast %167 : vector<1x32xf32> to vector<128x32xf32>
    %170 = arith.mulf %32, %169 : vector<128x32xf32>
    %171 = arith.mulf %170, %86 : vector<128x32xf32>
    %172 = vector.broadcast %168 : vector<1x32xf32> to vector<128x32xf32>
    %173 = arith.mulf %36, %172 : vector<128x32xf32>
    %174 = arith.mulf %173, %93 : vector<128x32xf32>
    %175 = arith.addf %171, %174 : vector<128x32xf32>
    %176 = vector.extract_strided_slice %8 {offsets = [12, 0], sizes = [1, 32], strides = [1, 1]} : vector<54x32xf32> to vector<1x32xf32>
    %177 = vector.extract_strided_slice %8 {offsets = [13, 0], sizes = [1, 32], strides = [1, 1]} : vector<54x32xf32> to vector<1x32xf32>
    %178 = vector.broadcast %176 : vector<1x32xf32> to vector<128x32xf32>
    %179 = arith.mulf %34, %178 : vector<128x32xf32>
    %180 = arith.mulf %179, %93 : vector<128x32xf32>
    %181 = vector.broadcast %177 : vector<1x32xf32> to vector<128x32xf32>
    %182 = arith.mulf %38, %181 : vector<128x32xf32>
    %183 = arith.mulf %182, %100 : vector<128x32xf32>
    %184 = arith.addf %180, %183 : vector<128x32xf32>
    %185 = vector.extract_strided_slice %8 {offsets = [14, 0], sizes = [1, 32], strides = [1, 1]} : vector<54x32xf32> to vector<1x32xf32>
    %186 = vector.extract_strided_slice %8 {offsets = [15, 0], sizes = [1, 32], strides = [1, 1]} : vector<54x32xf32> to vector<1x32xf32>
    %187 = vector.broadcast %185 : vector<1x32xf32> to vector<128x32xf32>
    %188 = arith.mulf %36, %187 : vector<128x32xf32>
    %189 = arith.mulf %188, %100 : vector<128x32xf32>
    %190 = vector.broadcast %186 : vector<1x32xf32> to vector<128x32xf32>
    %191 = arith.mulf %40, %190 : vector<128x32xf32>
    %192 = arith.mulf %191, %107 : vector<128x32xf32>
    %193 = arith.addf %189, %192 : vector<128x32xf32>
    %194 = vector.extract_strided_slice %8 {offsets = [16, 0], sizes = [1, 32], strides = [1, 1]} : vector<54x32xf32> to vector<1x32xf32>
    %195 = vector.extract_strided_slice %8 {offsets = [17, 0], sizes = [1, 32], strides = [1, 1]} : vector<54x32xf32> to vector<1x32xf32>
    %196 = vector.broadcast %194 : vector<1x32xf32> to vector<128x32xf32>
    %197 = arith.mulf %38, %196 : vector<128x32xf32>
    %198 = arith.mulf %197, %107 : vector<128x32xf32>
    %199 = vector.broadcast %195 : vector<1x32xf32> to vector<128x32xf32>
    %200 = arith.mulf %42, %199 : vector<128x32xf32>
    %201 = arith.mulf %200, %114 : vector<128x32xf32>
    %202 = arith.addf %198, %201 : vector<128x32xf32>
    %203 = vector.extract_strided_slice %8 {offsets = [18, 0], sizes = [1, 32], strides = [1, 1]} : vector<54x32xf32> to vector<1x32xf32>
    %204 = vector.extract_strided_slice %8 {offsets = [19, 0], sizes = [1, 32], strides = [1, 1]} : vector<54x32xf32> to vector<1x32xf32>
    %205 = vector.broadcast %203 : vector<1x32xf32> to vector<128x32xf32>
    %206 = arith.mulf %40, %205 : vector<128x32xf32>
    %207 = arith.mulf %206, %114 : vector<128x32xf32>
    %208 = vector.broadcast %204 : vector<1x32xf32> to vector<128x32xf32>
    %209 = arith.mulf %44, %208 : vector<128x32xf32>
    %210 = arith.mulf %209, %121 : vector<128x32xf32>
    %211 = arith.addf %207, %210 : vector<128x32xf32>
    %212 = vector.extract_strided_slice %8 {offsets = [20, 0], sizes = [1, 32], strides = [1, 1]} : vector<54x32xf32> to vector<1x32xf32>
    %213 = vector.extract_strided_slice %8 {offsets = [21, 0], sizes = [1, 32], strides = [1, 1]} : vector<54x32xf32> to vector<1x32xf32>
    %214 = vector.broadcast %212 : vector<1x32xf32> to vector<128x32xf32>
    %215 = arith.mulf %22, %214 : vector<128x32xf32>
    %216 = arith.mulf %215, %130 : vector<128x32xf32>
    %217 = vector.broadcast %213 : vector<1x32xf32> to vector<128x32xf32>
    %218 = arith.mulf %28, %217 : vector<128x32xf32>
    %219 = arith.mulf %218, %139 : vector<128x32xf32>
    %220 = arith.addf %216, %219 : vector<128x32xf32>
    %221 = vector.extract_strided_slice %8 {offsets = [22, 0], sizes = [1, 32], strides = [1, 1]} : vector<54x32xf32> to vector<1x32xf32>
    %222 = vector.extract_strided_slice %8 {offsets = [23, 0], sizes = [1, 32], strides = [1, 1]} : vector<54x32xf32> to vector<1x32xf32>
    %223 = vector.broadcast %221 : vector<1x32xf32> to vector<128x32xf32>
    %224 = arith.mulf %24, %223 : vector<128x32xf32>
    %225 = arith.mulf %224, %139 : vector<128x32xf32>
    %226 = vector.broadcast %222 : vector<1x32xf32> to vector<128x32xf32>
    %227 = arith.mulf %30, %226 : vector<128x32xf32>
    %228 = arith.mulf %227, %148 : vector<128x32xf32>
    %229 = arith.addf %225, %228 : vector<128x32xf32>
    %230 = vector.extract_strided_slice %8 {offsets = [24, 0], sizes = [1, 32], strides = [1, 1]} : vector<54x32xf32> to vector<1x32xf32>
    %231 = vector.extract_strided_slice %8 {offsets = [25, 0], sizes = [1, 32], strides = [1, 1]} : vector<54x32xf32> to vector<1x32xf32>
    %232 = vector.broadcast %230 : vector<1x32xf32> to vector<128x32xf32>
    %233 = arith.mulf %26, %232 : vector<128x32xf32>
    %234 = arith.mulf %233, %148 : vector<128x32xf32>
    %235 = vector.broadcast %231 : vector<1x32xf32> to vector<128x32xf32>
    %236 = arith.mulf %32, %235 : vector<128x32xf32>
    %237 = arith.mulf %236, %157 : vector<128x32xf32>
    %238 = arith.addf %234, %237 : vector<128x32xf32>
    %239 = vector.extract_strided_slice %8 {offsets = [26, 0], sizes = [1, 32], strides = [1, 1]} : vector<54x32xf32> to vector<1x32xf32>
    %240 = vector.extract_strided_slice %8 {offsets = [27, 0], sizes = [1, 32], strides = [1, 1]} : vector<54x32xf32> to vector<1x32xf32>
    %241 = vector.broadcast %239 : vector<1x32xf32> to vector<128x32xf32>
    %242 = arith.mulf %28, %241 : vector<128x32xf32>
    %243 = arith.mulf %242, %157 : vector<128x32xf32>
    %244 = vector.broadcast %240 : vector<1x32xf32> to vector<128x32xf32>
    %245 = arith.mulf %34, %244 : vector<128x32xf32>
    %246 = arith.mulf %245, %166 : vector<128x32xf32>
    %247 = arith.addf %243, %246 : vector<128x32xf32>
    %248 = vector.extract_strided_slice %8 {offsets = [28, 0], sizes = [1, 32], strides = [1, 1]} : vector<54x32xf32> to vector<1x32xf32>
    %249 = vector.extract_strided_slice %8 {offsets = [29, 0], sizes = [1, 32], strides = [1, 1]} : vector<54x32xf32> to vector<1x32xf32>
    %250 = vector.broadcast %248 : vector<1x32xf32> to vector<128x32xf32>
    %251 = arith.mulf %30, %250 : vector<128x32xf32>
    %252 = arith.mulf %251, %166 : vector<128x32xf32>
    %253 = vector.broadcast %249 : vector<1x32xf32> to vector<128x32xf32>
    %254 = arith.mulf %36, %253 : vector<128x32xf32>
    %255 = arith.mulf %254, %175 : vector<128x32xf32>
    %256 = arith.addf %252, %255 : vector<128x32xf32>
    %257 = vector.extract_strided_slice %8 {offsets = [30, 0], sizes = [1, 32], strides = [1, 1]} : vector<54x32xf32> to vector<1x32xf32>
    %258 = vector.extract_strided_slice %8 {offsets = [31, 0], sizes = [1, 32], strides = [1, 1]} : vector<54x32xf32> to vector<1x32xf32>
    %259 = vector.broadcast %257 : vector<1x32xf32> to vector<128x32xf32>
    %260 = arith.mulf %32, %259 : vector<128x32xf32>
    %261 = arith.mulf %260, %175 : vector<128x32xf32>
    %262 = vector.broadcast %258 : vector<1x32xf32> to vector<128x32xf32>
    %263 = arith.mulf %38, %262 : vector<128x32xf32>
    %264 = arith.mulf %263, %184 : vector<128x32xf32>
    %265 = arith.addf %261, %264 : vector<128x32xf32>
    %266 = vector.extract_strided_slice %8 {offsets = [32, 0], sizes = [1, 32], strides = [1, 1]} : vector<54x32xf32> to vector<1x32xf32>
    %267 = vector.extract_strided_slice %8 {offsets = [33, 0], sizes = [1, 32], strides = [1, 1]} : vector<54x32xf32> to vector<1x32xf32>
    %268 = vector.broadcast %266 : vector<1x32xf32> to vector<128x32xf32>
    %269 = arith.mulf %34, %268 : vector<128x32xf32>
    %270 = arith.mulf %269, %184 : vector<128x32xf32>
    %271 = vector.broadcast %267 : vector<1x32xf32> to vector<128x32xf32>
    %272 = arith.mulf %40, %271 : vector<128x32xf32>
    %273 = arith.mulf %272, %193 : vector<128x32xf32>
    %274 = arith.addf %270, %273 : vector<128x32xf32>
    %275 = vector.extract_strided_slice %8 {offsets = [34, 0], sizes = [1, 32], strides = [1, 1]} : vector<54x32xf32> to vector<1x32xf32>
    %276 = vector.extract_strided_slice %8 {offsets = [35, 0], sizes = [1, 32], strides = [1, 1]} : vector<54x32xf32> to vector<1x32xf32>
    %277 = vector.broadcast %275 : vector<1x32xf32> to vector<128x32xf32>
    %278 = arith.mulf %36, %277 : vector<128x32xf32>
    %279 = arith.mulf %278, %193 : vector<128x32xf32>
    %280 = vector.broadcast %276 : vector<1x32xf32> to vector<128x32xf32>
    %281 = arith.mulf %42, %280 : vector<128x32xf32>
    %282 = arith.mulf %281, %202 : vector<128x32xf32>
    %283 = arith.addf %279, %282 : vector<128x32xf32>
    %284 = vector.extract_strided_slice %8 {offsets = [36, 0], sizes = [1, 32], strides = [1, 1]} : vector<54x32xf32> to vector<1x32xf32>
    %285 = vector.extract_strided_slice %8 {offsets = [37, 0], sizes = [1, 32], strides = [1, 1]} : vector<54x32xf32> to vector<1x32xf32>
    %286 = vector.broadcast %284 : vector<1x32xf32> to vector<128x32xf32>
    %287 = arith.mulf %38, %286 : vector<128x32xf32>
    %288 = arith.mulf %287, %202 : vector<128x32xf32>
    %289 = vector.broadcast %285 : vector<1x32xf32> to vector<128x32xf32>
    %290 = arith.mulf %44, %289 : vector<128x32xf32>
    %291 = arith.mulf %290, %211 : vector<128x32xf32>
    %292 = arith.addf %288, %291 : vector<128x32xf32>
    %293 = vector.extract_strided_slice %8 {offsets = [38, 0], sizes = [1, 32], strides = [1, 1]} : vector<54x32xf32> to vector<1x32xf32>
    %294 = vector.extract_strided_slice %8 {offsets = [39, 0], sizes = [1, 32], strides = [1, 1]} : vector<54x32xf32> to vector<1x32xf32>
    %295 = vector.broadcast %293 : vector<1x32xf32> to vector<128x32xf32>
    %296 = arith.mulf %22, %295 : vector<128x32xf32>
    %297 = arith.mulf %296, %220 : vector<128x32xf32>
    %298 = vector.broadcast %294 : vector<1x32xf32> to vector<128x32xf32>
    %299 = arith.mulf %30, %298 : vector<128x32xf32>
    %300 = arith.mulf %299, %229 : vector<128x32xf32>
    %301 = arith.addf %297, %300 : vector<128x32xf32>
    %302 = vector.extract_strided_slice %8 {offsets = [40, 0], sizes = [1, 32], strides = [1, 1]} : vector<54x32xf32> to vector<1x32xf32>
    %303 = vector.extract_strided_slice %8 {offsets = [41, 0], sizes = [1, 32], strides = [1, 1]} : vector<54x32xf32> to vector<1x32xf32>
    %304 = vector.broadcast %302 : vector<1x32xf32> to vector<128x32xf32>
    %305 = arith.mulf %24, %304 : vector<128x32xf32>
    %306 = arith.mulf %305, %229 : vector<128x32xf32>
    %307 = vector.broadcast %303 : vector<1x32xf32> to vector<128x32xf32>
    %308 = arith.mulf %32, %307 : vector<128x32xf32>
    %309 = arith.mulf %308, %238 : vector<128x32xf32>
    %310 = arith.addf %306, %309 : vector<128x32xf32>
    %311 = vector.extract_strided_slice %8 {offsets = [42, 0], sizes = [1, 32], strides = [1, 1]} : vector<54x32xf32> to vector<1x32xf32>
    %312 = vector.extract_strided_slice %8 {offsets = [43, 0], sizes = [1, 32], strides = [1, 1]} : vector<54x32xf32> to vector<1x32xf32>
    %313 = vector.broadcast %311 : vector<1x32xf32> to vector<128x32xf32>
    %314 = arith.mulf %26, %313 : vector<128x32xf32>
    %315 = arith.mulf %314, %238 : vector<128x32xf32>
    %316 = vector.broadcast %312 : vector<1x32xf32> to vector<128x32xf32>
    %317 = arith.mulf %34, %316 : vector<128x32xf32>
    %318 = arith.mulf %317, %247 : vector<128x32xf32>
    %319 = arith.addf %315, %318 : vector<128x32xf32>
    %320 = vector.extract_strided_slice %8 {offsets = [44, 0], sizes = [1, 32], strides = [1, 1]} : vector<54x32xf32> to vector<1x32xf32>
    %321 = vector.extract_strided_slice %8 {offsets = [45, 0], sizes = [1, 32], strides = [1, 1]} : vector<54x32xf32> to vector<1x32xf32>
    %322 = vector.broadcast %320 : vector<1x32xf32> to vector<128x32xf32>
    %323 = arith.mulf %28, %322 : vector<128x32xf32>
    %324 = arith.mulf %323, %247 : vector<128x32xf32>
    %325 = vector.broadcast %321 : vector<1x32xf32> to vector<128x32xf32>
    %326 = arith.mulf %36, %325 : vector<128x32xf32>
    %327 = arith.mulf %326, %256 : vector<128x32xf32>
    %328 = arith.addf %324, %327 : vector<128x32xf32>
    %329 = vector.extract_strided_slice %8 {offsets = [46, 0], sizes = [1, 32], strides = [1, 1]} : vector<54x32xf32> to vector<1x32xf32>
    %330 = vector.extract_strided_slice %8 {offsets = [47, 0], sizes = [1, 32], strides = [1, 1]} : vector<54x32xf32> to vector<1x32xf32>
    %331 = vector.broadcast %329 : vector<1x32xf32> to vector<128x32xf32>
    %332 = arith.mulf %30, %331 : vector<128x32xf32>
    %333 = arith.mulf %332, %256 : vector<128x32xf32>
    %334 = vector.broadcast %330 : vector<1x32xf32> to vector<128x32xf32>
    %335 = arith.mulf %38, %334 : vector<128x32xf32>
    %336 = arith.mulf %335, %265 : vector<128x32xf32>
    %337 = arith.addf %333, %336 : vector<128x32xf32>
    %338 = vector.extract_strided_slice %8 {offsets = [48, 0], sizes = [1, 32], strides = [1, 1]} : vector<54x32xf32> to vector<1x32xf32>
    %339 = vector.extract_strided_slice %8 {offsets = [49, 0], sizes = [1, 32], strides = [1, 1]} : vector<54x32xf32> to vector<1x32xf32>
    %340 = vector.broadcast %338 : vector<1x32xf32> to vector<128x32xf32>
    %341 = arith.mulf %32, %340 : vector<128x32xf32>
    %342 = arith.mulf %341, %265 : vector<128x32xf32>
    %343 = vector.broadcast %339 : vector<1x32xf32> to vector<128x32xf32>
    %344 = arith.mulf %40, %343 : vector<128x32xf32>
    %345 = arith.mulf %344, %274 : vector<128x32xf32>
    %346 = arith.addf %342, %345 : vector<128x32xf32>
    %347 = vector.extract_strided_slice %8 {offsets = [50, 0], sizes = [1, 32], strides = [1, 1]} : vector<54x32xf32> to vector<1x32xf32>
    %348 = vector.extract_strided_slice %8 {offsets = [51, 0], sizes = [1, 32], strides = [1, 1]} : vector<54x32xf32> to vector<1x32xf32>
    %349 = vector.broadcast %347 : vector<1x32xf32> to vector<128x32xf32>
    %350 = arith.mulf %34, %349 : vector<128x32xf32>
    %351 = arith.mulf %350, %274 : vector<128x32xf32>
    %352 = vector.broadcast %348 : vector<1x32xf32> to vector<128x32xf32>
    %353 = arith.mulf %42, %352 : vector<128x32xf32>
    %354 = arith.mulf %353, %283 : vector<128x32xf32>
    %355 = arith.addf %351, %354 : vector<128x32xf32>
    %356 = vector.extract_strided_slice %8 {offsets = [52, 0], sizes = [1, 32], strides = [1, 1]} : vector<54x32xf32> to vector<1x32xf32>
    %357 = vector.extract_strided_slice %8 {offsets = [53, 0], sizes = [1, 32], strides = [1, 1]} : vector<54x32xf32> to vector<1x32xf32>
    %358 = vector.broadcast %356 : vector<1x32xf32> to vector<128x32xf32>
    %359 = arith.mulf %36, %358 : vector<128x32xf32>
    %360 = arith.mulf %359, %283 : vector<128x32xf32>
    %361 = vector.broadcast %357 : vector<1x32xf32> to vector<128x32xf32>
    %362 = arith.mulf %44, %361 : vector<128x32xf32>
    %363 = arith.mulf %362, %292 : vector<128x32xf32>
    %364 = arith.addf %360, %363 : vector<128x32xf32>
    %365 = tpu.concatenate %6, %301, %310, %319, %328, %337, %346, %355, %364 in 1 : vector<128x32xf32>, vector<128x32xf32>, vector<128x32xf32>, vector<128x32xf32>, vector<128x32xf32>, vector<128x32xf32>, vector<128x32xf32>, vector<128x32xf32>, vector<128x32xf32> -> vector<128x288xf32>
    %c0_5 = arith.constant 0 : index
    %c0_6 = arith.constant 0 : index
    %c0_7 = arith.constant 0 : index
    %366 = vector.load %arg5[%c0_5, %c0_6, %c0_7] : memref<1x288x128xf32, #tpu.memory_space<vmem>>, vector<1x288x128xf32>
    %367 = vector.shape_cast %366 : vector<1x288x128xf32> to vector<288x128xf32>
    %cst_8 = arith.constant dense<0.000000e+00> : vector<128x128xf32>
    %368 = tpu.matmul %365, %367, %cst_8 {dimension_numbers = #tpu.dot_dimension_numbers<[1], [0], [0], [1], [0, 0, 1, 1], [], []>} : vector<128x288xf32>, vector<288x128xf32>, vector<128x128xf32> -> vector<128x128xf32>
    %c0_i32 = arith.constant 0 : i32
    %369 = arith.cmpi eq, %arg1, %c0_i32 : i32
    %370 = arith.extui %369 : i1 to i32
    %c0_i32_9 = arith.constant 0 : i32
    %371 = arith.cmpi ne, %370, %c0_i32_9 : i32
    scf.if %371 {
      %c0_12 = arith.constant 0 : index
      %c0_13 = arith.constant 0 : index
      %375 = vector.load %arg6[%c0_12, %c0_13] : memref<128x128xf32, #tpu.memory_space<vmem>>, vector<128x128xf32>
      tpu.vector_store %arg6[%c0_12, %c0_13], %368 {strides = array<i32>} : memref<128x128xf32, #tpu.memory_space<vmem>>, vector<128x128xf32>,
    } else {
    }
    %c0_i32_10 = arith.constant 0 : i32
    %372 = arith.cmpi sgt, %arg1, %c0_i32_10 : i32
    %373 = arith.extui %372 : i1 to i32
    %c0_i32_11 = arith.constant 0 : i32
    %374 = arith.cmpi ne, %373, %c0_i32_11 : i32
    scf.if %374 {
      %c0_12 = arith.constant 0 : index
      %c0_13 = arith.constant 0 : index
      %375 = vector.load %arg6[%c0_12, %c0_13] : memref<128x128xf32, #tpu.memory_space<vmem>>, vector<128x128xf32>
      %376 = arith.addf %375, %368 : vector<128x128xf32>
      %c0_14 = arith.constant 0 : index
      %c0_15 = arith.constant 0 : index
      %377 = vector.load %arg6[%c0_14, %c0_15] : memref<128x128xf32, #tpu.memory_space<vmem>>, vector<128x128xf32>
      tpu.vector_store %arg6[%c0_14, %c0_15], %376 {strides = array<i32>} : memref<128x128xf32, #tpu.memory_space<vmem>>, vector<128x128xf32>,
    } else {
    }
    return
  }
  func.func @transform_0(%arg0: i32, %arg1: i32) -> (i32, i32) {
    %c0_i32 = arith.constant 0 : i32
    return %arg0, %arg1 : i32, i32
  }
  func.func @transform_1(%arg0: i32, %arg1: i32) -> (i32, i32) {
    %c0_i32 = arith.constant 0 : i32
    %c0_i32_0 = arith.constant 0 : i32
    return %c0_i32, %arg1 : i32, i32
  }
  func.func @transform_2(%arg0: i32, %arg1: i32) -> (i32, i32) {
    %c0_i32 = arith.constant 0 : i32
    %c0_i32_0 = arith.constant 0 : i32
    return %c0_i32, %arg1 : i32, i32
  }
  func.func @transform_3(%arg0: i32, %arg1: i32) -> (i32, i32, i32) {
    %c0_i32 = arith.constant 0 : i32
    %c0_i32_0 = arith.constant 0 : i32
    %c0_i32_1 = arith.constant 0 : i32
    return %arg1, %c0_i32, %c0_i32_0 : i32, i32, i32
  }
  func.func @transform_4(%arg0: i32, %arg1: i32) -> (i32, i32) {
    %c0_i32 = arith.constant 0 : i32
    %c0_i32_0 = arith.constant 0 : i32
    return %arg0, %c0_i32 : i32, i32
  }
}

</mosaic_0001>

<llo_original>
// kernel: tpu_custom_call.1
$region0: #{tpu_custom_call.1}
  #allocation0 [shape = 'u32[]', space=smem, size = 0x4, offset = 0x4, fixed_abs, tag = 'smem constant byte address 0x4 - core index']
  #allocation1 [shape = 'u32[144,128]{1,0:T(1,128)}', space=vmem, size = 0x12000, scoped, tag = 'internal scratch']
  %s0 = inlined_call_operand.vmem [shape: f32[256,32], index: 0, kind: input, shape index: {}]
  %s1 = inlined_call_operand.vmem [shape: f32[12,32], index: 1, kind: input, shape index: {}]
  %s2 = inlined_call_operand.vmem [shape: f32[54,32], index: 2, kind: input, shape index: {}]
  %s3 = inlined_call_operand.vmem [shape: f32[1,288,128], index: 3, kind: input, shape index: {}]
  %s4 = inlined_call_operand.hbm [shape: f32[256,128], index: 4, kind: output, shape index: {}]
  %s5 = sld [smem:[#allocation0]]
  $region57: #{tpu_custom_call.1} parent=0
    _
  %s7 = ssub.s32 1, %s5
  %s8 = scalar_select 0, %s7, %s5
  $region1: #{tpu_custom_call.1} parent=0
    #allocation2 [shape = 'u8[131072]{0}', space=vmem, size = 0x20000, scoped, tag = 'output window, operand 0']
    #allocation3 [shape = 's32[2]{0}', space=sflag, size = 0x8, scoped, tag = 'scoped memory for tpu_custom_call.1']
    %9 = vsyncpa [#allocation3], 0
    %s10 = scalar_lea.sflag [#allocation3], 1
    %11 = vsyncpa %s10, 0
    loop: start=0, step=1, limit=4
    $region2: #{tpu_custom_call.1} parent=1 // loop_pre_header
      _
    $region3: #{tpu_custom_call.1} parent=1 // loop_header
      %s13 = sphi 0, %s17
      %p14 = scmp.ge.s32.totalorder %s13, 4
      %s20 = sphi 0, %s32
      %s21 = sphi 0, %s28
      %s22 = sphi 0, %s20
      %s23 = sphi 0, %s21
      %s24 = sphi 0, %s22
      %s25 = sphi 0, %s23
      %s37 = sphi 0, %s39
      %s40 = sphi 0, %s37
      %s41 = sphi 0, %s40
      %s57 = sphi 0, %s41
      %s63 = sphi 0, %s65
      %s66 = sphi 0, %s63
      %s67 = sphi 0, %s66
      %s83 = sphi 0, %s67
      %s89 = sphi 0, %s91
      %s92 = sphi 0, %s89
      %s93 = sphi 0, %s92
      %s109 = sphi 0, %s93
      %s115 = sphi 0, %s117
      %s118 = sphi 0, %s115
      %s119 = sphi 0, %s118
      %s135 = sphi 0, %s119
      %s141 = sphi 0, %s143
      %s144 = sphi 0, %s141
      %s145 = sphi 0, %s144
      %s161 = sphi 0, %s145
    $region4: #{tpu_custom_call.1} parent=1 // loop_header_branch
      %16 = sbr.rel (%p14) target = $region8
    $region5: #{tpu_custom_call.1} parent=1 // loop_body
      %s18 = ssub.s32 %s13, 1
      %s19 = ssub.s32 %s13, 2
      %s26 = sadd.s32 1, %s21
      %p27 = scmp.ge.s32.totalorder %s26, 1
      %s28 = scalar_select %p27, 0, %s26
      %s29 = sadd.s32 1, %s20
      %s30 = scalar_select %p27, %s29, %s20
      %p31 = scmp.ge.s32.totalorder %s30, 2
      %s32 = scalar_select %p31, 0, %s30
      %s33 = ssub.s32 %s20, %s32
      %s34 = ssub.s32 %s21, %s28
      %s35 = sor.u32 %s33, %s34
      %p36 = scmp.eq.s32.totalorder %s35, 0
      %s38 = sadd.s32 %s37, 1
      %s39 = scalar_select %p36, %s37, %s38
      %p42 = pneg %p36
      %p43 = scmp.eq.s32.totalorder %s13, 1
      %p44 = por %p42, %p43
      %p45 = scmp.ne.s32.totalorder %s37, %s40
      %p46 = scmp.eq.s32.totalorder %s13, 0
      %p47 = por %p45, %p46
      %p48 = scmp.ne.s32.totalorder %s37, %s40
      %p49 = scmp.eq.s32.totalorder %s18, 1
      %p50 = por %p48, %p49
      %p51 = scmp.ne.s32.totalorder %s40, %s41
      %p52 = scmp.eq.s32.totalorder %s18, 0
      %p53 = por %p51, %p52
      %p54 = scmp.ne.s32.totalorder %s40, %s41
      %p55 = scmp.eq.s32.totalorder %s19, 1
      %p56 = por %p54, %p55
      %p58 = scmp.ne.s32.totalorder %s41, %s57
      %p59 = scmp.eq.s32.totalorder %s19, 0
      %p60 = por %p58, %p59
      %s61 = ssub.s32 %s21, %s28
      %p62 = scmp.eq.s32.totalorder %s61, 0
      %s64 = sadd.s32 %s63, 1
      %s65 = scalar_select %p62, %s63, %s64
      %p68 = pneg %p62
      %p69 = scmp.eq.s32.totalorder %s13, 1
      %p70 = por %p68, %p69
      %p71 = scmp.ne.s32.totalorder %s63, %s66
      %p72 = scmp.eq.s32.totalorder %s13, 0
      %p73 = por %p71, %p72
      %p74 = scmp.ne.s32.totalorder %s63, %s66
      %p75 = scmp.eq.s32.totalorder %s18, 1
      %p76 = por %p74, %p75
      %p77 = scmp.ne.s32.totalorder %s66, %s67
      %p78 = scmp.eq.s32.totalorder %s18, 0
      %p79 = por %p77, %p78
      %p80 = scmp.ne.s32.totalorder %s66, %s67
      %p81 = scmp.eq.s32.totalorder %s19, 1
      %p82 = por %p80, %p81
      %p84 = scmp.ne.s32.totalorder %s67, %s83
      %p85 = scmp.eq.s32.totalorder %s19, 0
      %p86 = por %p84, %p85
      %s87 = ssub.s32 %s21, %s28
      %p88 = scmp.eq.s32.totalorder %s87, 0
      %s90 = sadd.s32 %s89, 1
      %s91 = scalar_select %p88, %s89, %s90
      %p94 = pneg %p88
      %p95 = scmp.eq.s32.totalorder %s13, 1
      %p96 = por %p94, %p95
      %p97 = scmp.ne.s32.totalorder %s89, %s92
      %p98 = scmp.eq.s32.totalorder %s13, 0
      %p99 = por %p97, %p98
      %p100 = scmp.ne.s32.totalorder %s89, %s92
      %p101 = scmp.eq.s32.totalorder %s18, 1
      %p102 = por %p100, %p101
      %p103 = scmp.ne.s32.totalorder %s92, %s93
      %p104 = scmp.eq.s32.totalorder %s18, 0
      %p105 = por %p103, %p104
      %p106 = scmp.ne.s32.totalorder %s92, %s93
      %p107 = scmp.eq.s32.totalorder %s19, 1
      %p108 = por %p106, %p107
      %p110 = scmp.ne.s32.totalorder %s93, %s109
      %p111 = scmp.eq.s32.totalorder %s19, 0
      %p112 = por %p110, %p111
      %s113 = ssub.s32 %s21, %s28
      %p114 = scmp.eq.s32.totalorder %s113, 0
      %s116 = sadd.s32 %s115, 1
      %s117 = scalar_select %p114, %s115, %s116
      %p120 = pneg %p114
      %p121 = scmp.eq.s32.totalorder %s13, 1
      %p122 = por %p120, %p121
      %p123 = scmp.ne.s32.totalorder %s115, %s118
      %p124 = scmp.eq.s32.totalorder %s13, 0
      %p125 = por %p123, %p124
      %p126 = scmp.ne.s32.totalorder %s115, %s118
      %p127 = scmp.eq.s32.totalorder %s18, 1
      %p128 = por %p126, %p127
      %p129 = scmp.ne.s32.totalorder %s118, %s119
      %p130 = scmp.eq.s32.totalorder %s18, 0
      %p131 = por %p129, %p130
      %p132 = scmp.ne.s32.totalorder %s118, %s119
      %p133 = scmp.eq.s32.totalorder %s19, 1
      %p134 = por %p132, %p133
      %p136 = scmp.ne.s32.totalorder %s119, %s135
      %p137 = scmp.eq.s32.totalorder %s19, 0
      %p138 = por %p136, %p137
      %s139 = ssub.s32 %s20, %s32
      %p140 = scmp.eq.s32.totalorder %s139, 0
      %s142 = sadd.s32 %s141, 1
      %s143 = scalar_select %p140, %s141, %s142
      %p146 = pneg %p140
      %p147 = scmp.eq.s32.totalorder %s13, 1
      %p148 = por %p146, %p147
      %p149 = scmp.ne.s32.totalorder %s141, %s144
      %p150 = scmp.eq.s32.totalorder %s13, 0
      %p151 = por %p149, %p150
      %p152 = scmp.ne.s32.totalorder %s141, %s144
      %p153 = scmp.eq.s32.totalorder %s18, 1
      %p154 = por %p152, %p153
      %p155 = scmp.ne.s32.totalorder %s144, %s145
      %p156 = scmp.eq.s32.totalorder %s18, 0
      %p157 = por %p155, %p156
      %p158 = scmp.ne.s32.totalorder %s144, %s145
      %p159 = scmp.eq.s32.totalorder %s19, 1
      %p160 = por %p158, %p159
      %p162 = scmp.ne.s32.totalorder %s145, %s161
      %p163 = scmp.eq.s32.totalorder %s19, 0
      %p164 = por %p162, %p163
      %p165 = scmp.le.s32.totalorder 1, %s13
      %p166 = scmp.lt.s32.totalorder %s13, 3
      %p167 = pnand %p165, %p166
      %p168 = pneg %p167
      // Predicated region
      $region9: #{tpu_custom_call.1} parent=5 // pred_check
        _
      $region10: #{tpu_custom_call.1} parent=5 // pred_check_branch
        %170 = sbr.rel (%p167) target = $region12
      $region11: #{tpu_custom_call.1} parent=5 // pred_region
        %s171 = ssub.s32 %s13, 1
        // Predicated region
        $region13: #{tpu_custom_call.1} parent=11 // pred_check
          %p172 = pneg %p79
        $region14: #{tpu_custom_call.1} parent=11 // pred_check_branch
          %174 = sbr.rel (%p172) target = $region16
        $region15: #{tpu_custom_call.1} parent=11 // pred_region
          %p175 = scmp.lt.s32.totalorder %s23, 0
          %s176 = scalar_select %p175, %s23, 0
          %s177 = smul.addr %s176, 8
          %s178 = scalar_lea.vmem %s1, %s177
        $region16: #{tpu_custom_call.1} parent=11 // pred_fallthru
          _
        // Predicated region
        $region17: #{tpu_custom_call.1} parent=11 // pred_check
          %p179 = pneg %p105
        $region18: #{tpu_custom_call.1} parent=11 // pred_check_branch
          %181 = sbr.rel (%p179) target = $region20
        $region19: #{tpu_custom_call.1} parent=11 // pred_region
          %p182 = scmp.lt.s32.totalorder %s23, 0
          %s183 = scalar_select %p182, %s23, 0
          %s184 = smul.addr %s183, 8
          %s185 = scalar_lea.vmem %s2, %s184
        $region20: #{tpu_custom_call.1} parent=11 // pred_fallthru
          _
        // Predicated region
        $region21: #{tpu_custom_call.1} parent=11 // pred_check
          %p186 = pneg %p131
        $region22: #{tpu_custom_call.1} parent=11 // pred_check_branch
          %188 = sbr.rel (%p186) target = $region24
        $region23: #{tpu_custom_call.1} parent=11 // pred_region
          %p189 = scmp.lt.s32.totalorder %s23, 0
          %s190 = scalar_select %p189, %s23, 0
          %s191 = smul.addr %s190, 36
          %s192 = smul.addr %s191, 8
          %s193 = scalar_lea.vmem %s3, %s192
        $region24: #{tpu_custom_call.1} parent=11 // pred_fallthru
          _
      $region12: #{tpu_custom_call.1} parent=5 // pred_fallthru
        _
      %p194 = scmp.lt.s32.totalorder %s13, 2
      // Predicated region
      $region25: #{tpu_custom_call.1} parent=5 // pred_check
        %p195 = pneg %p194
      $region26: #{tpu_custom_call.1} parent=5 // pred_check_branch
        %197 = sbr.rel (%p195) target = $region28
      $region27: #{tpu_custom_call.1} parent=5 // pred_region
        // Predicated region
        $region29: #{tpu_custom_call.1} parent=27 // pred_check
          %p198 = pneg %p47
        $region30: #{tpu_custom_call.1} parent=27 // pred_check_branch
          %200 = sbr.rel (%p198) target = $region32
        $region31: #{tpu_custom_call.1} parent=27 // pred_region
          %s201 = smul.u32 16, %s20
          %p202 = scmp.lt.s32.totalorder %s201, 31
          %s203 = scalar_select %p202, %s201, 31
          %p204 = scmp.lt.s32.totalorder %s21, 0
          %s205 = scalar_select %p204, %s21, 0
          %s206 = sadd.s32 %s205, %s203
          %s207 = smul.addr %s206, 8
          %s208 = scalar_lea.vmem %s0, %s207
          %s209 = smul.u32 16, %s20
        $region32: #{tpu_custom_call.1} parent=27 // pred_fallthru
          _
      $region28: #{tpu_custom_call.1} parent=5 // pred_fallthru
        _
      %p210 = scmp.le.s32.totalorder 1, %s13
      %p211 = scmp.lt.s32.totalorder %s13, 3
      %p212 = pnand %p210, %p211
      %p213 = pneg %p212
      // Predicated region
      $region33: #{tpu_custom_call.1} parent=5 // pred_check
        _
      $region34: #{tpu_custom_call.1} parent=5 // pred_check_branch
        %215 = sbr.rel (%p212) target = $region36
      $region35: #{tpu_custom_call.1} parent=5 // pred_region
        %s216 = ssub.s32 %s13, 1
        %s217 = smul.u32 16, %s22
        %p218 = scmp.lt.s32.totalorder %s217, 31
        %s219 = scalar_select %p218, %s217, 31
        %p220 = scmp.lt.s32.totalorder %s23, 0
        %s221 = scalar_select %p220, %s23, 0
        %s222 = sadd.s32 %s221, %s219
        %s223 = smul.addr %s222, 8
        %s224 = scalar_lea.vmem %s0, %s223
        %p225 = pneg %p53
        %p226 = pneg %p50
        %p227 = scmp.lt.s32.totalorder %s23, 0
        %s228 = scalar_select %p227, %s23, 0
        %s229 = smul.addr %s228, 8
        %s230 = scalar_lea.vmem %s1, %s229
        %p231 = pneg %p79
        %p232 = pneg %p76
        %p233 = scmp.lt.s32.totalorder %s23, 0
        %s234 = scalar_select %p233, %s23, 0
        %s235 = smul.addr %s234, 8
        %s236 = scalar_lea.vmem %s2, %s235
        %p237 = pneg %p105
        %p238 = pneg %p102
        %p239 = scmp.lt.s32.totalorder %s23, 0
        %s240 = scalar_select %p239, %s23, 0
        %s241 = smul.addr %s240, 36
        %s242 = smul.addr %s241, 8
        %s243 = scalar_lea.vmem %s3, %s242
        %p244 = pneg %p131
        %p245 = pneg %p128
        %p246 = pneg %p157
        %p247 = pneg %p154
        %s248 = sand.u32 %s144, 1
        %s249 = scalar_lea.sflag [#allocation3], %s248
        %s250 = sand.u32 %s144, 1
        %s251 = smul.addr %s250, 128
        %s252 = scalar_lea.vmem [#allocation2], %s251
        %s253 = smul.u32 16, %s22
        %p254 = scmp.lt.s32.totalorder %s253, 31
        %s255 = scalar_select %p254, %s253, 31
        %p256 = scmp.lt.s32.totalorder %s23, 0
        %s257 = scalar_select %p256, %s23, 0
        %s258 = sadd.s32 %s257, %s255
        %s259 = smul.addr %s258, 8
        %s260 = scalar_lea.vmem %s0, %s259
        %s261 = smul.u32 16, %s22
        %p262 = scmp.lt.s32.totalorder %s23, 0
        %s263 = scalar_select %p262, %s23, 0
        %s264 = smul.addr %s263, 8
        %s265 = scalar_lea.vmem %s1, %s264
        %p266 = scmp.lt.s32.totalorder %s23, 0
        %s267 = scalar_select %p266, %s23, 0
        %s268 = smul.addr %s267, 8
        %s269 = scalar_lea.vmem %s2, %s268
        %p270 = scmp.lt.s32.totalorder %s23, 0
        %s271 = scalar_select %p270, %s23, 0
        %s272 = smul.addr %s271, 36
        %s273 = smul.addr %s272, 8
        %s274 = scalar_lea.vmem %s3, %s273
        %s275 = smul.u32 16, %s22
        %v276 = vld [vmem:[%s260] sm:$0xff]
        %v277 = vld [vmem:[%s260 + $0x8] sm:$0xff]
        %v278 = vld [vmem:[%s260 + $0x10] sm:$0xff]
        %v279 = vld [vmem:[%s260 + $0x18] sm:$0xff]
        %v280 = vld [vmem:[%s260 + $0x20] sm:$0xff]
        %v281 = vld [vmem:[%s260 + $0x28] sm:$0xff]
        %v282 = vld [vmem:[%s260 + $0x30] sm:$0xff]
        %v283 = vld [vmem:[%s260 + $0x38] sm:$0xff]
        %v284 = vld [vmem:[%s260 + $0x40] sm:$0xff]
        %v285 = vld [vmem:[%s260 + $0x48] sm:$0xff]
        %v286 = vld [vmem:[%s260 + $0x50] sm:$0xff]
        %v287 = vld [vmem:[%s260 + $0x58] sm:$0xff]
        %v288 = vld [vmem:[%s260 + $0x60] sm:$0xff]
        %v289 = vld [vmem:[%s260 + $0x68] sm:$0xff]
        %v290 = vld [vmem:[%s260 + $0x70] sm:$0xff]
        %v291 = vld [vmem:[%s260 + $0x78] sm:$0xff]
        %v292 = vxor.u32 %v276, 2147483648
        %v293 = vxor.u32 %v277, 2147483648
        %v294 = vxor.u32 %v278, 2147483648
        %v295 = vxor.u32 %v279, 2147483648
        %v296 = vxor.u32 %v280, 2147483648
        %v297 = vxor.u32 %v281, 2147483648
        %v298 = vxor.u32 %v282, 2147483648
        %v299 = vxor.u32 %v283, 2147483648
        %v300 = vxor.u32 %v284, 2147483648
        %v301 = vxor.u32 %v285, 2147483648
        %v302 = vxor.u32 %v286, 2147483648
        %v303 = vxor.u32 %v287, 2147483648
        %v304 = vxor.u32 %v288, 2147483648
        %v305 = vxor.u32 %v289, 2147483648
        %v306 = vxor.u32 %v290, 2147483648
        %v307 = vxor.u32 %v291, 2147483648
        %v308 = vmul.f32 %v292, 1.442695
        %v309 = vpow.pop %v308
        %v310 = vmul.f32 %v293, 1.442695
        %v311 = vpow.pop %v310
        %v312 = vmul.f32 %v294, 1.442695
        %v313 = vpow.pop %v312
        %v314 = vmul.f32 %v295, 1.442695
        %v315 = vpow.pop %v314
        %v316 = vmul.f32 %v296, 1.442695
        %v317 = vpow.pop %v316
        %v318 = vmul.f32 %v297, 1.442695
        %v319 = vpow.pop %v318
        %v320 = vmul.f32 %v298, 1.442695
        %v321 = vpow.pop %v320
        %v322 = vmul.f32 %v299, 1.442695
        %v323 = vpow.pop %v322
        %v324 = vmul.f32 %v300, 1.442695
        %v325 = vpow.pop %v324
        %v326 = vmul.f32 %v301, 1.442695
        %v327 = vpow.pop %v326
        %v328 = vmul.f32 %v302, 1.442695
        %v329 = vpow.pop %v328
        %v330 = vmul.f32 %v303, 1.442695
        %v331 = vpow.pop %v330
        %v332 = vmul.f32 %v304, 1.442695
        %v333 = vpow.pop %v332
        %v334 = vmul.f32 %v305, 1.442695
        %v335 = vpow.pop %v334
        %v336 = vmul.f32 %v306, 1.442695
        %v337 = vpow.pop %v336
        %v338 = vmul.f32 %v307, 1.442695
        %v339 = vpow.pop %v338
        %v340 = vadd.f32 %v309, 1.0
        %v341 = vadd.f32 %v311, 1.0
        %v342 = vadd.f32 %v313, 1.0
        %v343 = vadd.f32 %v315, 1.0
        %v344 = vadd.f32 %v317, 1.0
        %v345 = vadd.f32 %v319, 1.0
        %v346 = vadd.f32 %v321, 1.0
        %v347 = vadd.f32 %v323, 1.0
        %v348 = vadd.f32 %v325, 1.0
        %v349 = vadd.f32 %v327, 1.0
        %v350 = vadd.f32 %v329, 1.0
        %v351 = vadd.f32 %v331, 1.0
        %v352 = vadd.f32 %v333, 1.0
        %v353 = vadd.f32 %v335, 1.0
        %v354 = vadd.f32 %v337, 1.0
        %v355 = vadd.f32 %v339, 1.0
        %v356 = vrcp.pop %v340
        %v357 = vmul.f32 1.0, %v356
        %v358 = vrcp.pop %v341
        %v359 = vmul.f32 1.0, %v358
        %v360 = vrcp.pop %v342
        %v361 = vmul.f32 1.0, %v360
        %v362 = vrcp.pop %v343
        %v363 = vmul.f32 1.0, %v362
        %v364 = vrcp.pop %v344
        %v365 = vmul.f32 1.0, %v364
        %v366 = vrcp.pop %v345
        %v367 = vmul.f32 1.0, %v366
        %v368 = vrcp.pop %v346
        %v369 = vmul.f32 1.0, %v368
        %v370 = vrcp.pop %v347
        %v371 = vmul.f32 1.0, %v370
        %v372 = vrcp.pop %v348
        %v373 = vmul.f32 1.0, %v372
        %v374 = vrcp.pop %v349
        %v375 = vmul.f32 1.0, %v374
        %v376 = vrcp.pop %v350
        %v377 = vmul.f32 1.0, %v376
        %v378 = vrcp.pop %v351
        %v379 = vmul.f32 1.0, %v378
        %v380 = vrcp.pop %v352
        %v381 = vmul.f32 1.0, %v380
        %v382 = vrcp.pop %v353
        %v383 = vmul.f32 1.0, %v382
        %v384 = vrcp.pop %v354
        %v385 = vmul.f32 1.0, %v384
        %v386 = vrcp.pop %v355
        %v387 = vmul.f32 1.0, %v386
        %v388 = vmul.f32 %v276, %v357
        %v389 = vmul.f32 %v277, %v359
        %v390 = vmul.f32 %v278, %v361
        %v391 = vmul.f32 %v279, %v363
        %v392 = vmul.f32 %v280, %v365
        %v393 = vmul.f32 %v281, %v367
        %v394 = vmul.f32 %v282, %v369
        %v395 = vmul.f32 %v283, %v371
        %v396 = vmul.f32 %v284, %v373
        %v397 = vmul.f32 %v285, %v375
        %v398 = vmul.f32 %v286, %v377
        %v399 = vmul.f32 %v287, %v379
        %v400 = vmul.f32 %v288, %v381
        %v401 = vmul.f32 %v289, %v383
        %v402 = vmul.f32 %v290, %v385
        %v403 = vmul.f32 %v291, %v387
        %v404 = vld [vmem:[%s265] sm:$0xff]
        %v405 = vld [vmem:[%s265 + $0x8] sm:$0xf]
        %v406 = vld [vmem:[%s269] sm:$0xff]
        %v407 = vld [vmem:[%s269 + $0x8] sm:$0xff]
        %v408 = vld [vmem:[%s269 + $0x10] sm:$0xff]
        %v409 = vld [vmem:[%s269 + $0x18] sm:$0xff]
        %v410 = vld [vmem:[%s269 + $0x20] sm:$0xff]
        %v411 = vld [vmem:[%s269 + $0x28] sm:$0xff]
        %v412 = vld [vmem:[%s269 + $0x30] sm:$0x3f]
        %v413 = vlaneseq
        %v414 = vshrl.u32 %v413, 7
        %v415 = vsub.s32 0, %v414
        %v416 = vrot.slane %v404, %v415
        %v417 = vsub.f32 %v276, %v416
        %v418 = vsub.f32 %v277, %v416
        %v419 = vsub.f32 %v278, %v416
        %v420 = vsub.f32 %v279, %v416
        %v421 = vsub.f32 %v280, %v416
        %v422 = vsub.f32 %v281, %v416
        %v423 = vsub.f32 %v282, %v416
        %v424 = vsub.f32 %v283, %v416
        %v425 = vsub.f32 %v284, %v416
        %v426 = vsub.f32 %v285, %v416
        %v427 = vsub.f32 %v286, %v416
        %v428 = vsub.f32 %v287, %v416
        %v429 = vsub.f32 %v288, %v416
        %v430 = vsub.f32 %v289, %v416
        %v431 = vsub.f32 %v290, %v416
        %v432 = vsub.f32 %v291, %v416
        %v433 = vlaneseq
        %v434 = vshrl.u32 %v433, 7
        %v435 = vsub.s32 1, %v434
        %v436 = vrot.slane %v404, %v435
        %v437 = vsub.f32 %v276, %v436
        %v438 = vsub.f32 %v277, %v436
        %v439 = vsub.f32 %v278, %v436
        %v440 = vsub.f32 %v279, %v436
        %v441 = vsub.f32 %v280, %v436
        %v442 = vsub.f32 %v281, %v436
        %v443 = vsub.f32 %v282, %v436
        %v444 = vsub.f32 %v283, %v436
        %v445 = vsub.f32 %v284, %v436
        %v446 = vsub.f32 %v285, %v436
        %v447 = vsub.f32 %v286, %v436
        %v448 = vsub.f32 %v287, %v436
        %v449 = vsub.f32 %v288, %v436
        %v450 = vsub.f32 %v289, %v436
        %v451 = vsub.f32 %v290, %v436
        %v452 = vsub.f32 %v291, %v436
        %v453 = vlaneseq
        %v454 = vshrl.u32 %v453, 7
        %v455 = vsub.s32 2, %v454
        %v456 = vrot.slane %v404, %v455
        %v457 = vsub.f32 %v276, %v456
        %v458 = vsub.f32 %v277, %v456
        %v459 = vsub.f32 %v278, %v456
        %v460 = vsub.f32 %v279, %v456
        %v461 = vsub.f32 %v280, %v456
        %v462 = vsub.f32 %v281, %v456
        %v463 = vsub.f32 %v282, %v456
        %v464 = vsub.f32 %v283, %v456
        %v465 = vsub.f32 %v284, %v456
        %v466 = vsub.f32 %v285, %v456
        %v467 = vsub.f32 %v286, %v456
        %v468 = vsub.f32 %v287, %v456
        %v469 = vsub.f32 %v288, %v456
        %v470 = vsub.f32 %v289, %v456
        %v471 = vsub.f32 %v290, %v456
        %v472 = vsub.f32 %v291, %v456
        %v473 = vlaneseq
        %v474 = vshrl.u32 %v473, 7
        %v475 = vsub.s32 3, %v474
        %v476 = vrot.slane %v404, %v475
        %v477 = vsub.f32 %v276, %v476
        %v478 = vsub.f32 %v277, %v476
        %v479 = vsub.f32 %v278, %v476
        %v480 = vsub.f32 %v279, %v476
        %v481 = vsub.f32 %v280, %v476
        %v482 = vsub.f32 %v281, %v476
        %v483 = vsub.f32 %v282, %v476
        %v484 = vsub.f32 %v283, %v476
        %v485 = vsub.f32 %v284, %v476
        %v486 = vsub.f32 %v285, %v476
        %v487 = vsub.f32 %v286, %v476
        %v488 = vsub.f32 %v287, %v476
        %v489 = vsub.f32 %v288, %v476
        %v490 = vsub.f32 %v289, %v476
        %v491 = vsub.f32 %v290, %v476
        %v492 = vsub.f32 %v291, %v476
        %v493 = vlaneseq
        %v494 = vshrl.u32 %v493, 7
        %v495 = vsub.s32 4, %v494
        %v496 = vrot.slane %v404, %v495
        %v497 = vsub.f32 %v276, %v496
        %v498 = vsub.f32 %v277, %v496
        %v499 = vsub.f32 %v278, %v496
        %v500 = vsub.f32 %v279, %v496
        %v501 = vsub.f32 %v280, %v496
        %v502 = vsub.f32 %v281, %v496
        %v503 = vsub.f32 %v282, %v496
        %v504 = vsub.f32 %v283, %v496
        %v505 = vsub.f32 %v284, %v496
        %v506 = vsub.f32 %v285, %v496
        %v507 = vsub.f32 %v286, %v496
        %v508 = vsub.f32 %v287, %v496
        %v509 = vsub.f32 %v288, %v496
        %v510 = vsub.f32 %v289, %v496
        %v511 = vsub.f32 %v290, %v496
        %v512 = vsub.f32 %v291, %v496
        %v513 = vlaneseq
        %v514 = vshrl.u32 %v513, 7
        %v515 = vsub.s32 5, %v514
        %v516 = vrot.slane %v404, %v515
        %v517 = vsub.f32 %v276, %v516
        %v518 = vsub.f32 %v277, %v516
        %v519 = vsub.f32 %v278, %v516
        %v520 = vsub.f32 %v279, %v516
        %v521 = vsub.f32 %v280, %v516
        %v522 = vsub.f32 %v281, %v516
        %v523 = vsub.f32 %v282, %v516
        %v524 = vsub.f32 %v283, %v516
        %v525 = vsub.f32 %v284, %v516
        %v526 = vsub.f32 %v285, %v516
        %v527 = vsub.f32 %v286, %v516
        %v528 = vsub.f32 %v287, %v516
        %v529 = vsub.f32 %v288, %v516
        %v530 = vsub.f32 %v289, %v516
        %v531 = vsub.f32 %v290, %v516
        %v532 = vsub.f32 %v291, %v516
        %v533 = vlaneseq
        %v534 = vshrl.u32 %v533, 7
        %v535 = vsub.s32 6, %v534
        %v536 = vrot.slane %v404, %v535
        %v537 = vsub.f32 %v276, %v536
        %v538 = vsub.f32 %v277, %v536
        %v539 = vsub.f32 %v278, %v536
        %v540 = vsub.f32 %v279, %v536
        %v541 = vsub.f32 %v280, %v536
        %v542 = vsub.f32 %v281, %v536
        %v543 = vsub.f32 %v282, %v536
        %v544 = vsub.f32 %v283, %v536
        %v545 = vsub.f32 %v284, %v536
        %v546 = vsub.f32 %v285, %v536
        %v547 = vsub.f32 %v286, %v536
        %v548 = vsub.f32 %v287, %v536
        %v549 = vsub.f32 %v288, %v536
        %v550 = vsub.f32 %v289, %v536
        %v551 = vsub.f32 %v290, %v536
        %v552 = vsub.f32 %v291, %v536
        %v553 = vlaneseq
        %v554 = vshrl.u32 %v553, 7
        %v555 = vsub.s32 7, %v554
        %v556 = vrot.slane %v404, %v555
        %v557 = vsub.f32 %v276, %v556
        %v558 = vsub.f32 %v277, %v556
        %v559 = vsub.f32 %v278, %v556
        %v560 = vsub.f32 %v279, %v556
        %v561 = vsub.f32 %v280, %v556
        %v562 = vsub.f32 %v281, %v556
        %v563 = vsub.f32 %v282, %v556
        %v564 = vsub.f32 %v283, %v556
        %v565 = vsub.f32 %v284, %v556
        %v566 = vsub.f32 %v285, %v556
        %v567 = vsub.f32 %v286, %v556
        %v568 = vsub.f32 %v287, %v556
        %v569 = vsub.f32 %v288, %v556
        %v570 = vsub.f32 %v289, %v556
        %v571 = vsub.f32 %v290, %v556
        %v572 = vsub.f32 %v291, %v556
        %v573 = vlaneseq
        %v574 = vshrl.u32 %v573, 7
        %v575 = vsub.s32 0, %v574
        %v576 = vrot.slane %v405, %v575
        %v577 = vsub.f32 %v276, %v576
        %v578 = vsub.f32 %v277, %v576
        %v579 = vsub.f32 %v278, %v576
        %v580 = vsub.f32 %v279, %v576
        %v581 = vsub.f32 %v280, %v576
        %v582 = vsub.f32 %v281, %v576
        %v583 = vsub.f32 %v282, %v576
        %v584 = vsub.f32 %v283, %v576
        %v585 = vsub.f32 %v284, %v576
        %v586 = vsub.f32 %v285, %v576
        %v587 = vsub.f32 %v286, %v576
        %v588 = vsub.f32 %v287, %v576
        %v589 = vsub.f32 %v288, %v576
        %v590 = vsub.f32 %v289, %v576
        %v591 = vsub.f32 %v290, %v576
        %v592 = vsub.f32 %v291, %v576
        %v593 = vlaneseq
        %v594 = vshrl.u32 %v593, 7
        %v595 = vsub.s32 1, %v594
        %v596 = vrot.slane %v405, %v595
        %v597 = vsub.f32 %v276, %v596
        %v598 = vsub.f32 %v277, %v596
        %v599 = vsub.f32 %v278, %v596
        %v600 = vsub.f32 %v279, %v596
        %v601 = vsub.f32 %v280, %v596
        %v602 = vsub.f32 %v281, %v596
        %v603 = vsub.f32 %v282, %v596
        %v604 = vsub.f32 %v283, %v596
        %v605 = vsub.f32 %v284, %v596
        %v606 = vsub.f32 %v285, %v596
        %v607 = vsub.f32 %v286, %v596
        %v608 = vsub.f32 %v287, %v596
        %v609 = vsub.f32 %v288, %v596
        %v610 = vsub.f32 %v289, %v596
        %v611 = vsub.f32 %v290, %v596
        %v612 = vsub.f32 %v291, %v596
        %v613 = vlaneseq
        %v614 = vshrl.u32 %v613, 7
        %v615 = vsub.s32 2, %v614
        %v616 = vrot.slane %v405, %v615
        %v617 = vsub.f32 %v276, %v616
        %v618 = vsub.f32 %v277, %v616
        %v619 = vsub.f32 %v278, %v616
        %v620 = vsub.f32 %v279, %v616
        %v621 = vsub.f32 %v280, %v616
        %v622 = vsub.f32 %v281, %v616
        %v623 = vsub.f32 %v282, %v616
        %v624 = vsub.f32 %v283, %v616
        %v625 = vsub.f32 %v284, %v616
        %v626 = vsub.f32 %v285, %v616
        %v627 = vsub.f32 %v286, %v616
        %v628 = vsub.f32 %v287, %v616
        %v629 = vsub.f32 %v288, %v616
        %v630 = vsub.f32 %v289, %v616
        %v631 = vsub.f32 %v290, %v616
        %v632 = vsub.f32 %v291, %v616
        %v633 = vlaneseq
        %v634 = vshrl.u32 %v633, 7
        %v635 = vsub.s32 3, %v634
        %v636 = vrot.slane %v405, %v635
        %v637 = vsub.f32 %v276, %v636
        %v638 = vsub.f32 %v277, %v636
        %v639 = vsub.f32 %v278, %v636
        %v640 = vsub.f32 %v279, %v636
        %v641 = vsub.f32 %v280, %v636
        %v642 = vsub.f32 %v281, %v636
        %v643 = vsub.f32 %v282, %v636
        %v644 = vsub.f32 %v283, %v636
        %v645 = vsub.f32 %v284, %v636
        %v646 = vsub.f32 %v285, %v636
        %v647 = vsub.f32 %v286, %v636
        %v648 = vsub.f32 %v287, %v636
        %v649 = vsub.f32 %v288, %v636
        %v650 = vsub.f32 %v289, %v636
        %v651 = vsub.f32 %v290, %v636
        %v652 = vsub.f32 %v291, %v636
        %vm653 = vcmp.ge.f32.partialorder %v276, %v416
        %vm654 = vcmp.ge.f32.partialorder %v277, %v416
        %vm655 = vcmp.ge.f32.partialorder %v278, %v416
        %vm656 = vcmp.ge.f32.partialorder %v279, %v416
        %vm657 = vcmp.ge.f32.partialorder %v280, %v416
        %vm658 = vcmp.ge.f32.partialorder %v281, %v416
        %vm659 = vcmp.ge.f32.partialorder %v282, %v416
        %vm660 = vcmp.ge.f32.partialorder %v283, %v416
        %vm661 = vcmp.ge.f32.partialorder %v284, %v416
        %vm662 = vcmp.ge.f32.partialorder %v285, %v416
        %vm663 = vcmp.ge.f32.partialorder %v286, %v416
        %vm664 = vcmp.ge.f32.partialorder %v287, %v416
        %vm665 = vcmp.ge.f32.partialorder %v288, %v416
        %vm666 = vcmp.ge.f32.partialorder %v289, %v416
        %vm667 = vcmp.ge.f32.partialorder %v290, %v416
        %vm668 = vcmp.ge.f32.partialorder %v291, %v416
        %vm669 = vcmp.lt.f32.partialorder %v276, %v436
        %vm670 = vcmp.lt.f32.partialorder %v277, %v436
        %vm671 = vcmp.lt.f32.partialorder %v278, %v436
        %vm672 = vcmp.lt.f32.partialorder %v279, %v436
        %vm673 = vcmp.lt.f32.partialorder %v280, %v436
        %vm674 = vcmp.lt.f32.partialorder %v281, %v436
        %vm675 = vcmp.lt.f32.partialorder %v282, %v436
        %vm676 = vcmp.lt.f32.partialorder %v283, %v436
        %vm677 = vcmp.lt.f32.partialorder %v284, %v436
        %vm678 = vcmp.lt.f32.partialorder %v285, %v436
        %vm679 = vcmp.lt.f32.partialorder %v286, %v436
        %vm680 = vcmp.lt.f32.partialorder %v287, %v436
        %vm681 = vcmp.lt.f32.partialorder %v288, %v436
        %vm682 = vcmp.lt.f32.partialorder %v289, %v436
        %vm683 = vcmp.lt.f32.partialorder %v290, %v436
        %vm684 = vcmp.lt.f32.partialorder %v291, %v436
        %vm685 = vmand %vm653, %vm669
        %vm686 = vmand %vm654, %vm670
        %vm687 = vmand %vm655, %vm671
        %vm688 = vmand %vm656, %vm672
        %vm689 = vmand %vm657, %vm673
        %vm690 = vmand %vm658, %vm674
        %vm691 = vmand %vm659, %vm675
        %vm692 = vmand %vm660, %vm676
        %vm693 = vmand %vm661, %vm677
        %vm694 = vmand %vm662, %vm678
        %vm695 = vmand %vm663, %vm679
        %vm696 = vmand %vm664, %vm680
        %vm697 = vmand %vm665, %vm681
        %vm698 = vmand %vm666, %vm682
        %vm699 = vmand %vm667, %vm683
        %vm700 = vmand %vm668, %vm684
        %v701 = vsel %vm685, 1, 0
        %v702 = vsel %vm686, 1, 0
        %v703 = vsel %vm687, 1, 0
        %v704 = vsel %vm688, 1, 0
        %v705 = vsel %vm689, 1, 0
        %v706 = vsel %vm690, 1, 0
        %v707 = vsel %vm691, 1, 0
        %v708 = vsel %vm692, 1, 0
        %v709 = vsel %vm693, 1, 0
        %v710 = vsel %vm694, 1, 0
        %v711 = vsel %vm695, 1, 0
        %v712 = vsel %vm696, 1, 0
        %v713 = vsel %vm697, 1, 0
        %v714 = vsel %vm698, 1, 0
        %v715 = vsel %vm699, 1, 0
        %v716 = vsel %vm700, 1, 0
        %v717 = vcvt.s32.f32 %v701
        %v718 = vcvt.s32.f32 %v702
        %v719 = vcvt.s32.f32 %v703
        %v720 = vcvt.s32.f32 %v704
        %v721 = vcvt.s32.f32 %v705
        %v722 = vcvt.s32.f32 %v706
        %v723 = vcvt.s32.f32 %v707
        %v724 = vcvt.s32.f32 %v708
        %v725 = vcvt.s32.f32 %v709
        %v726 = vcvt.s32.f32 %v710
        %v727 = vcvt.s32.f32 %v711
        %v728 = vcvt.s32.f32 %v712
        %v729 = vcvt.s32.f32 %v713
        %v730 = vcvt.s32.f32 %v714
        %v731 = vcvt.s32.f32 %v715
        %v732 = vcvt.s32.f32 %v716
        %vm733 = vcmp.ge.f32.partialorder %v276, %v436
        %vm734 = vcmp.ge.f32.partialorder %v277, %v436
        %vm735 = vcmp.ge.f32.partialorder %v278, %v436
        %vm736 = vcmp.ge.f32.partialorder %v279, %v436
        %vm737 = vcmp.ge.f32.partialorder %v280, %v436
        %vm738 = vcmp.ge.f32.partialorder %v281, %v436
        %vm739 = vcmp.ge.f32.partialorder %v282, %v436
        %vm740 = vcmp.ge.f32.partialorder %v283, %v436
        %vm741 = vcmp.ge.f32.partialorder %v284, %v436
        %vm742 = vcmp.ge.f32.partialorder %v285, %v436
        %vm743 = vcmp.ge.f32.partialorder %v286, %v436
        %vm744 = vcmp.ge.f32.partialorder %v287, %v436
        %vm745 = vcmp.ge.f32.partialorder %v288, %v436
        %vm746 = vcmp.ge.f32.partialorder %v289, %v436
        %vm747 = vcmp.ge.f32.partialorder %v290, %v436
        %vm748 = vcmp.ge.f32.partialorder %v291, %v436
        %vm749 = vcmp.lt.f32.partialorder %v276, %v456
        %vm750 = vcmp.lt.f32.partialorder %v277, %v456
        %vm751 = vcmp.lt.f32.partialorder %v278, %v456
        %vm752 = vcmp.lt.f32.partialorder %v279, %v456
        %vm753 = vcmp.lt.f32.partialorder %v280, %v456
        %vm754 = vcmp.lt.f32.partialorder %v281, %v456
        %vm755 = vcmp.lt.f32.partialorder %v282, %v456
        %vm756 = vcmp.lt.f32.partialorder %v283, %v456
        %vm757 = vcmp.lt.f32.partialorder %v284, %v456
        %vm758 = vcmp.lt.f32.partialorder %v285, %v456
        %vm759 = vcmp.lt.f32.partialorder %v286, %v456
        %vm760 = vcmp.lt.f32.partialorder %v287, %v456
        %vm761 = vcmp.lt.f32.partialorder %v288, %v456
        %vm762 = vcmp.lt.f32.partialorder %v289, %v456
        %vm763 = vcmp.lt.f32.partialorder %v290, %v456
        %vm764 = vcmp.lt.f32.partialorder %v291, %v456
        %vm765 = vmand %vm733, %vm749
        %vm766 = vmand %vm734, %vm750
        %vm767 = vmand %vm735, %vm751
        %vm768 = vmand %vm736, %vm752
        %vm769 = vmand %vm737, %vm753
        %vm770 = vmand %vm738, %vm754
        %vm771 = vmand %vm739, %vm755
        %vm772 = vmand %vm740, %vm756
        %vm773 = vmand %vm741, %vm757
        %vm774 = vmand %vm742, %vm758
        %vm775 = vmand %vm743, %vm759
        %vm776 = vmand %vm744, %vm760
        %vm777 = vmand %vm745, %vm761
        %vm778 = vmand %vm746, %vm762
        %vm779 = vmand %vm747, %vm763
        %vm780 = vmand %vm748, %vm764
        %v781 = vsel %vm765, 1, 0
        %v782 = vsel %vm766, 1, 0
        %v783 = vsel %vm767, 1, 0
        %v784 = vsel %vm768, 1, 0
        %v785 = vsel %vm769, 1, 0
        %v786 = vsel %vm770, 1, 0
        %v787 = vsel %vm771, 1, 0
        %v788 = vsel %vm772, 1, 0
        %v789 = vsel %vm773, 1, 0
        %v790 = vsel %vm774, 1, 0
        %v791 = vsel %vm775, 1, 0
        %v792 = vsel %vm776, 1, 0
        %v793 = vsel %vm777, 1, 0
        %v794 = vsel %vm778, 1, 0
        %v795 = vsel %vm779, 1, 0
        %v796 = vsel %vm780, 1, 0
        %v797 = vcvt.s32.f32 %v781
        %v798 = vcvt.s32.f32 %v782
        %v799 = vcvt.s32.f32 %v783
        %v800 = vcvt.s32.f32 %v784
        %v801 = vcvt.s32.f32 %v785
        %v802 = vcvt.s32.f32 %v786
        %v803 = vcvt.s32.f32 %v787
        %v804 = vcvt.s32.f32 %v788
        %v805 = vcvt.s32.f32 %v789
        %v806 = vcvt.s32.f32 %v790
        %v807 = vcvt.s32.f32 %v791
        %v808 = vcvt.s32.f32 %v792
        %v809 = vcvt.s32.f32 %v793
        %v810 = vcvt.s32.f32 %v794
        %v811 = vcvt.s32.f32 %v795
        %v812 = vcvt.s32.f32 %v796
        %vm813 = vcmp.ge.f32.partialorder %v276, %v456
        %vm814 = vcmp.ge.f32.partialorder %v277, %v456
        %vm815 = vcmp.ge.f32.partialorder %v278, %v456
        %vm816 = vcmp.ge.f32.partialorder %v279, %v456
        %vm817 = vcmp.ge.f32.partialorder %v280, %v456
        %vm818 = vcmp.ge.f32.partialorder %v281, %v456
        %vm819 = vcmp.ge.f32.partialorder %v282, %v456
        %vm820 = vcmp.ge.f32.partialorder %v283, %v456
        %vm821 = vcmp.ge.f32.partialorder %v284, %v456
        %vm822 = vcmp.ge.f32.partialorder %v285, %v456
        %vm823 = vcmp.ge.f32.partialorder %v286, %v456
        %vm824 = vcmp.ge.f32.partialorder %v287, %v456
        %vm825 = vcmp.ge.f32.partialorder %v288, %v456
        %vm826 = vcmp.ge.f32.partialorder %v289, %v456
        %vm827 = vcmp.ge.f32.partialorder %v290, %v456
        %vm828 = vcmp.ge.f32.partialorder %v291, %v456
        %vm829 = vcmp.lt.f32.partialorder %v276, %v476
        %vm830 = vcmp.lt.f32.partialorder %v277, %v476
        %vm831 = vcmp.lt.f32.partialorder %v278, %v476
        %vm832 = vcmp.lt.f32.partialorder %v279, %v476
        %vm833 = vcmp.lt.f32.partialorder %v280, %v476
        %vm834 = vcmp.lt.f32.partialorder %v281, %v476
        %vm835 = vcmp.lt.f32.partialorder %v282, %v476
        %vm836 = vcmp.lt.f32.partialorder %v283, %v476
        %vm837 = vcmp.lt.f32.partialorder %v284, %v476
        %vm838 = vcmp.lt.f32.partialorder %v285, %v476
        %vm839 = vcmp.lt.f32.partialorder %v286, %v476
        %vm840 = vcmp.lt.f32.partialorder %v287, %v476
        %vm841 = vcmp.lt.f32.partialorder %v288, %v476
        %vm842 = vcmp.lt.f32.partialorder %v289, %v476
        %vm843 = vcmp.lt.f32.partialorder %v290, %v476
        %vm844 = vcmp.lt.f32.partialorder %v291, %v476
        %vm845 = vmand %vm813, %vm829
        %vm846 = vmand %vm814, %vm830
        %vm847 = vmand %vm815, %vm831
        %vm848 = vmand %vm816, %vm832
        %vm849 = vmand %vm817, %vm833
        %vm850 = vmand %vm818, %vm834
        %vm851 = vmand %vm819, %vm835
        %vm852 = vmand %vm820, %vm836
        %vm853 = vmand %vm821, %vm837
        %vm854 = vmand %vm822, %vm838
        %vm855 = vmand %vm823, %vm839
        %vm856 = vmand %vm824, %vm840
        %vm857 = vmand %vm825, %vm841
        %vm858 = vmand %vm826, %vm842
        %vm859 = vmand %vm827, %vm843
        %vm860 = vmand %vm828, %vm844
        %v861 = vsel %vm845, 1, 0
        %v862 = vsel %vm846, 1, 0
        %v863 = vsel %vm847, 1, 0
        %v864 = vsel %vm848, 1, 0
        %v865 = vsel %vm849, 1, 0
        %v866 = vsel %vm850, 1, 0
        %v867 = vsel %vm851, 1, 0
        %v868 = vsel %vm852, 1, 0
        %v869 = vsel %vm853, 1, 0
        %v870 = vsel %vm854, 1, 0
        %v871 = vsel %vm855, 1, 0
        %v872 = vsel %vm856, 1, 0
        %v873 = vsel %vm857, 1, 0
        %v874 = vsel %vm858, 1, 0
        %v875 = vsel %vm859, 1, 0
        %v876 = vsel %vm860, 1, 0
        %v877 = vcvt.s32.f32 %v861
        %v878 = vcvt.s32.f32 %v862
        %v879 = vcvt.s32.f32 %v863
        %v880 = vcvt.s32.f32 %v864
        %v881 = vcvt.s32.f32 %v865
        %v882 = vcvt.s32.f32 %v866
        %v883 = vcvt.s32.f32 %v867
        %v884 = vcvt.s32.f32 %v868
        %v885 = vcvt.s32.f32 %v869
        %v886 = vcvt.s32.f32 %v870
        %v887 = vcvt.s32.f32 %v871
        %v888 = vcvt.s32.f32 %v872
        %v889 = vcvt.s32.f32 %v873
        %v890 = vcvt.s32.f32 %v874
        %v891 = vcvt.s32.f32 %v875
        %v892 = vcvt.s32.f32 %v876
        %vm893 = vcmp.ge.f32.partialorder %v276, %v476
        %vm894 = vcmp.ge.f32.partialorder %v277, %v476
        %vm895 = vcmp.ge.f32.partialorder %v278, %v476
        %vm896 = vcmp.ge.f32.partialorder %v279, %v476
        %vm897 = vcmp.ge.f32.partialorder %v280, %v476
        %vm898 = vcmp.ge.f32.partialorder %v281, %v476
        %vm899 = vcmp.ge.f32.partialorder %v282, %v476
        %vm900 = vcmp.ge.f32.partialorder %v283, %v476
        %vm901 = vcmp.ge.f32.partialorder %v284, %v476
        %vm902 = vcmp.ge.f32.partialorder %v285, %v476
        %vm903 = vcmp.ge.f32.partialorder %v286, %v476
        %vm904 = vcmp.ge.f32.partialorder %v287, %v476
        %vm905 = vcmp.ge.f32.partialorder %v288, %v476
        %vm906 = vcmp.ge.f32.partialorder %v289, %v476
        %vm907 = vcmp.ge.f32.partialorder %v290, %v476
        %vm908 = vcmp.ge.f32.partialorder %v291, %v476
        %vm909 = vcmp.lt.f32.partialorder %v276, %v496
        %vm910 = vcmp.lt.f32.partialorder %v277, %v496
        %vm911 = vcmp.lt.f32.partialorder %v278, %v496
        %vm912 = vcmp.lt.f32.partialorder %v279, %v496
        %vm913 = vcmp.lt.f32.partialorder %v280, %v496
        %vm914 = vcmp.lt.f32.partialorder %v281, %v496
        %vm915 = vcmp.lt.f32.partialorder %v282, %v496
        %vm916 = vcmp.lt.f32.partialorder %v283, %v496
        %vm917 = vcmp.lt.f32.partialorder %v284, %v496
        %vm918 = vcmp.lt.f32.partialorder %v285, %v496
        %vm919 = vcmp.lt.f32.partialorder %v286, %v496
        %vm920 = vcmp.lt.f32.partialorder %v287, %v496
        %vm921 = vcmp.lt.f32.partialorder %v288, %v496
        %vm922 = vcmp.lt.f32.partialorder %v289, %v496
        %vm923 = vcmp.lt.f32.partialorder %v290, %v496
        %vm924 = vcmp.lt.f32.partialorder %v291, %v496
        %vm925 = vmand %vm893, %vm909
        %vm926 = vmand %vm894, %vm910
        %vm927 = vmand %vm895, %vm911
        %vm928 = vmand %vm896, %vm912
        %vm929 = vmand %vm897, %vm913
        %vm930 = vmand %vm898, %vm914
        %vm931 = vmand %vm899, %vm915
        %vm932 = vmand %vm900, %vm916
        %vm933 = vmand %vm901, %vm917
        %vm934 = vmand %vm902, %vm918
        %vm935 = vmand %vm903, %vm919
        %vm936 = vmand %vm904, %vm920
        %vm937 = vmand %vm905, %vm921
        %vm938 = vmand %vm906, %vm922
        %vm939 = vmand %vm907, %vm923
        %vm940 = vmand %vm908, %vm924
        %v941 = vsel %vm925, 1, 0
        %v942 = vsel %vm926, 1, 0
        %v943 = vsel %vm927, 1, 0
        %v944 = vsel %vm928, 1, 0
        %v945 = vsel %vm929, 1, 0
        %v946 = vsel %vm930, 1, 0
        %v947 = vsel %vm931, 1, 0
        %v948 = vsel %vm932, 1, 0
        %v949 = vsel %vm933, 1, 0
        %v950 = vsel %vm934, 1, 0
        %v951 = vsel %vm935, 1, 0
        %v952 = vsel %vm936, 1, 0
        %v953 = vsel %vm937, 1, 0
        %v954 = vsel %vm938, 1, 0
        %v955 = vsel %vm939, 1, 0
        %v956 = vsel %vm940, 1, 0
        %v957 = vcvt.s32.f32 %v941
        %v958 = vcvt.s32.f32 %v942
        %v959 = vcvt.s32.f32 %v943
        %v960 = vcvt.s32.f32 %v944
        %v961 = vcvt.s32.f32 %v945
        %v962 = vcvt.s32.f32 %v946
        %v963 = vcvt.s32.f32 %v947
        %v964 = vcvt.s32.f32 %v948
        %v965 = vcvt.s32.f32 %v949
        %v966 = vcvt.s32.f32 %v950
        %v967 = vcvt.s32.f32 %v951
        %v968 = vcvt.s32.f32 %v952
        %v969 = vcvt.s32.f32 %v953
        %v970 = vcvt.s32.f32 %v954
        %v971 = vcvt.s32.f32 %v955
        %v972 = vcvt.s32.f32 %v956
        %vm973 = vcmp.ge.f32.partialorder %v276, %v496
        %vm974 = vcmp.ge.f32.partialorder %v277, %v496
        %vm975 = vcmp.ge.f32.partialorder %v278, %v496
        %vm976 = vcmp.ge.f32.partialorder %v279, %v496
        %vm977 = vcmp.ge.f32.partialorder %v280, %v496
        %vm978 = vcmp.ge.f32.partialorder %v281, %v496
        %vm979 = vcmp.ge.f32.partialorder %v282, %v496
        %vm980 = vcmp.ge.f32.partialorder %v283, %v496
        %vm981 = vcmp.ge.f32.partialorder %v284, %v496
        %vm982 = vcmp.ge.f32.partialorder %v285, %v496
        %vm983 = vcmp.ge.f32.partialorder %v286, %v496
        %vm984 = vcmp.ge.f32.partialorder %v287, %v496
        %vm985 = vcmp.ge.f32.partialorder %v288, %v496
        %vm986 = vcmp.ge.f32.partialorder %v289, %v496
        %vm987 = vcmp.ge.f32.partialorder %v290, %v496
        %vm988 = vcmp.ge.f32.partialorder %v291, %v496
        %vm989 = vcmp.lt.f32.partialorder %v276, %v516
        %vm990 = vcmp.lt.f32.partialorder %v277, %v516
        %vm991 = vcmp.lt.f32.partialorder %v278, %v516
        %vm992 = vcmp.lt.f32.partialorder %v279, %v516
        %vm993 = vcmp.lt.f32.partialorder %v280, %v516
        %vm994 = vcmp.lt.f32.partialorder %v281, %v516
        %vm995 = vcmp.lt.f32.partialorder %v282, %v516
        %vm996 = vcmp.lt.f32.partialorder %v283, %v516
        %vm997 = vcmp.lt.f32.partialorder %v284, %v516
        %vm998 = vcmp.lt.f32.partialorder %v285, %v516
        %vm999 = vcmp.lt.f32.partialorder %v286, %v516
        %vm1000 = vcmp.lt.f32.partialorder %v287, %v516
        %vm1001 = vcmp.lt.f32.partialorder %v288, %v516
        %vm1002 = vcmp.lt.f32.partialorder %v289, %v516
        %vm1003 = vcmp.lt.f32.partialorder %v290, %v516
        %vm1004 = vcmp.lt.f32.partialorder %v291, %v516
        %vm1005 = vmand %vm973, %vm989
        %vm1006 = vmand %vm974, %vm990
        %vm1007 = vmand %vm975, %vm991
        %vm1008 = vmand %vm976, %vm992
        %vm1009 = vmand %vm977, %vm993
        %vm1010 = vmand %vm978, %vm994
        %vm1011 = vmand %vm979, %vm995
        %vm1012 = vmand %vm980, %vm996
        %vm1013 = vmand %vm981, %vm997
        %vm1014 = vmand %vm982, %vm998
        %vm1015 = vmand %vm983, %vm999
        %vm1016 = vmand %vm984, %vm1000
        %vm1017 = vmand %vm985, %vm1001
        %vm1018 = vmand %vm986, %vm1002
        %vm1019 = vmand %vm987, %vm1003
        %vm1020 = vmand %vm988, %vm1004
        %v1021 = vsel %vm1005, 1, 0
        %v1022 = vsel %vm1006, 1, 0
        %v1023 = vsel %vm1007, 1, 0
        %v1024 = vsel %vm1008, 1, 0
        %v1025 = vsel %vm1009, 1, 0
        %v1026 = vsel %vm1010, 1, 0
        %v1027 = vsel %vm1011, 1, 0
        %v1028 = vsel %vm1012, 1, 0
        %v1029 = vsel %vm1013, 1, 0
        %v1030 = vsel %vm1014, 1, 0
        %v1031 = vsel %vm1015, 1, 0
        %v1032 = vsel %vm1016, 1, 0
        %v1033 = vsel %vm1017, 1, 0
        %v1034 = vsel %vm1018, 1, 0
        %v1035 = vsel %vm1019, 1, 0
        %v1036 = vsel %vm1020, 1, 0
        %v1037 = vcvt.s32.f32 %v1021
        %v1038 = vcvt.s32.f32 %v1022
        %v1039 = vcvt.s32.f32 %v1023
        %v1040 = vcvt.s32.f32 %v1024
        %v1041 = vcvt.s32.f32 %v1025
        %v1042 = vcvt.s32.f32 %v1026
        %v1043 = vcvt.s32.f32 %v1027
        %v1044 = vcvt.s32.f32 %v1028
        %v1045 = vcvt.s32.f32 %v1029
        %v1046 = vcvt.s32.f32 %v1030
        %v1047 = vcvt.s32.f32 %v1031
        %v1048 = vcvt.s32.f32 %v1032
        %v1049 = vcvt.s32.f32 %v1033
        %v1050 = vcvt.s32.f32 %v1034
        %v1051 = vcvt.s32.f32 %v1035
        %v1052 = vcvt.s32.f32 %v1036
        %vm1053 = vcmp.ge.f32.partialorder %v276, %v516
        %vm1054 = vcmp.ge.f32.partialorder %v277, %v516
        %vm1055 = vcmp.ge.f32.partialorder %v278, %v516
        %vm1056 = vcmp.ge.f32.partialorder %v279, %v516
        %vm1057 = vcmp.ge.f32.partialorder %v280, %v516
        %vm1058 = vcmp.ge.f32.partialorder %v281, %v516
        %vm1059 = vcmp.ge.f32.partialorder %v282, %v516
        %vm1060 = vcmp.ge.f32.partialorder %v283, %v516
        %vm1061 = vcmp.ge.f32.partialorder %v284, %v516
        %vm1062 = vcmp.ge.f32.partialorder %v285, %v516
        %vm1063 = vcmp.ge.f32.partialorder %v286, %v516
        %vm1064 = vcmp.ge.f32.partialorder %v287, %v516
        %vm1065 = vcmp.ge.f32.partialorder %v288, %v516
        %vm1066 = vcmp.ge.f32.partialorder %v289, %v516
        %vm1067 = vcmp.ge.f32.partialorder %v290, %v516
        %vm1068 = vcmp.ge.f32.partialorder %v291, %v516
        %vm1069 = vcmp.lt.f32.partialorder %v276, %v536
        %vm1070 = vcmp.lt.f32.partialorder %v277, %v536
        %vm1071 = vcmp.lt.f32.partialorder %v278, %v536
        %vm1072 = vcmp.lt.f32.partialorder %v279, %v536
        %vm1073 = vcmp.lt.f32.partialorder %v280, %v536
        %vm1074 = vcmp.lt.f32.partialorder %v281, %v536
        %vm1075 = vcmp.lt.f32.partialorder %v282, %v536
        %vm1076 = vcmp.lt.f32.partialorder %v283, %v536
        %vm1077 = vcmp.lt.f32.partialorder %v284, %v536
        %vm1078 = vcmp.lt.f32.partialorder %v285, %v536
        %vm1079 = vcmp.lt.f32.partialorder %v286, %v536
        %vm1080 = vcmp.lt.f32.partialorder %v287, %v536
        %vm1081 = vcmp.lt.f32.partialorder %v288, %v536
        %vm1082 = vcmp.lt.f32.partialorder %v289, %v536
        %vm1083 = vcmp.lt.f32.partialorder %v290, %v536
        %vm1084 = vcmp.lt.f32.partialorder %v291, %v536
        %vm1085 = vmand %vm1053, %vm1069
        %vm1086 = vmand %vm1054, %vm1070
        %vm1087 = vmand %vm1055, %vm1071
        %vm1088 = vmand %vm1056, %vm1072
        %vm1089 = vmand %vm1057, %vm1073
        %vm1090 = vmand %vm1058, %vm1074
        %vm1091 = vmand %vm1059, %vm1075
        %vm1092 = vmand %vm1060, %vm1076
        %vm1093 = vmand %vm1061, %vm1077
        %vm1094 = vmand %vm1062, %vm1078
        %vm1095 = vmand %vm1063, %vm1079
        %vm1096 = vmand %vm1064, %vm1080
        %vm1097 = vmand %vm1065, %vm1081
        %vm1098 = vmand %vm1066, %vm1082
        %vm1099 = vmand %vm1067, %vm1083
        %vm1100 = vmand %vm1068, %vm1084
        %v1101 = vsel %vm1085, 1, 0
        %v1102 = vsel %vm1086, 1, 0
        %v1103 = vsel %vm1087, 1, 0
        %v1104 = vsel %vm1088, 1, 0
        %v1105 = vsel %vm1089, 1, 0
        %v1106 = vsel %vm1090, 1, 0
        %v1107 = vsel %vm1091, 1, 0
        %v1108 = vsel %vm1092, 1, 0
        %v1109 = vsel %vm1093, 1, 0
        %v1110 = vsel %vm1094, 1, 0
        %v1111 = vsel %vm1095, 1, 0
        %v1112 = vsel %vm1096, 1, 0
        %v1113 = vsel %vm1097, 1, 0
        %v1114 = vsel %vm1098, 1, 0
        %v1115 = vsel %vm1099, 1, 0
        %v1116 = vsel %vm1100, 1, 0
        %v1117 = vcvt.s32.f32 %v1101
        %v1118 = vcvt.s32.f32 %v1102
        %v1119 = vcvt.s32.f32 %v1103
        %v1120 = vcvt.s32.f32 %v1104
        %v1121 = vcvt.s32.f32 %v1105
        %v1122 = vcvt.s32.f32 %v1106
        %v1123 = vcvt.s32.f32 %v1107
        %v1124 = vcvt.s32.f32 %v1108
        %v1125 = vcvt.s32.f32 %v1109
        %v1126 = vcvt.s32.f32 %v1110
        %v1127 = vcvt.s32.f32 %v1111
        %v1128 = vcvt.s32.f32 %v1112
        %v1129 = vcvt.s32.f32 %v1113
        %v1130 = vcvt.s32.f32 %v1114
        %v1131 = vcvt.s32.f32 %v1115
        %v1132 = vcvt.s32.f32 %v1116
        %vm1133 = vcmp.ge.f32.partialorder %v276, %v536
        %vm1134 = vcmp.ge.f32.partialorder %v277, %v536
        %vm1135 = vcmp.ge.f32.partialorder %v278, %v536
        %vm1136 = vcmp.ge.f32.partialorder %v279, %v536
        %vm1137 = vcmp.ge.f32.partialorder %v280, %v536
        %vm1138 = vcmp.ge.f32.partialorder %v281, %v536
        %vm1139 = vcmp.ge.f32.partialorder %v282, %v536
        %vm1140 = vcmp.ge.f32.partialorder %v283, %v536
        %vm1141 = vcmp.ge.f32.partialorder %v284, %v536
        %vm1142 = vcmp.ge.f32.partialorder %v285, %v536
        %vm1143 = vcmp.ge.f32.partialorder %v286, %v536
        %vm1144 = vcmp.ge.f32.partialorder %v287, %v536
        %vm1145 = vcmp.ge.f32.partialorder %v288, %v536
        %vm1146 = vcmp.ge.f32.partialorder %v289, %v536
        %vm1147 = vcmp.ge.f32.partialorder %v290, %v536
        %vm1148 = vcmp.ge.f32.partialorder %v291, %v536
        %vm1149 = vcmp.lt.f32.partialorder %v276, %v556
        %vm1150 = vcmp.lt.f32.partialorder %v277, %v556
        %vm1151 = vcmp.lt.f32.partialorder %v278, %v556
        %vm1152 = vcmp.lt.f32.partialorder %v279, %v556
        %vm1153 = vcmp.lt.f32.partialorder %v280, %v556
        %vm1154 = vcmp.lt.f32.partialorder %v281, %v556
        %vm1155 = vcmp.lt.f32.partialorder %v282, %v556
        %vm1156 = vcmp.lt.f32.partialorder %v283, %v556
        %vm1157 = vcmp.lt.f32.partialorder %v284, %v556
        %vm1158 = vcmp.lt.f32.partialorder %v285, %v556
        %vm1159 = vcmp.lt.f32.partialorder %v286, %v556
        %vm1160 = vcmp.lt.f32.partialorder %v287, %v556
        %vm1161 = vcmp.lt.f32.partialorder %v288, %v556
        %vm1162 = vcmp.lt.f32.partialorder %v289, %v556
        %vm1163 = vcmp.lt.f32.partialorder %v290, %v556
        %vm1164 = vcmp.lt.f32.partialorder %v291, %v556
        %vm1165 = vmand %vm1133, %vm1149
        %vm1166 = vmand %vm1134, %vm1150
        %vm1167 = vmand %vm1135, %vm1151
        %vm1168 = vmand %vm1136, %vm1152
        %vm1169 = vmand %vm1137, %vm1153
        %vm1170 = vmand %vm1138, %vm1154
        %vm1171 = vmand %vm1139, %vm1155
        %vm1172 = vmand %vm1140, %vm1156
        %vm1173 = vmand %vm1141, %vm1157
        %vm1174 = vmand %vm1142, %vm1158
        %vm1175 = vmand %vm1143, %vm1159
        %vm1176 = vmand %vm1144, %vm1160
        %vm1177 = vmand %vm1145, %vm1161
        %vm1178 = vmand %vm1146, %vm1162
        %vm1179 = vmand %vm1147, %vm1163
        %vm1180 = vmand %vm1148, %vm1164
        %v1181 = vsel %vm1165, 1, 0
        %v1182 = vsel %vm1166, 1, 0
        %v1183 = vsel %vm1167, 1, 0
        %v1184 = vsel %vm1168, 1, 0
        %v1185 = vsel %vm1169, 1, 0
        %v1186 = vsel %vm1170, 1, 0
        %v1187 = vsel %vm1171, 1, 0
        %v1188 = vsel %vm1172, 1, 0
        %v1189 = vsel %vm1173, 1, 0
        %v1190 = vsel %vm1174, 1, 0
        %v1191 = vsel %vm1175, 1, 0
        %v1192 = vsel %vm1176, 1, 0
        %v1193 = vsel %vm1177, 1, 0
        %v1194 = vsel %vm1178, 1, 0
        %v1195 = vsel %vm1179, 1, 0
        %v1196 = vsel %vm1180, 1, 0
        %v1197 = vcvt.s32.f32 %v1181
        %v1198 = vcvt.s32.f32 %v1182
        %v1199 = vcvt.s32.f32 %v1183
        %v1200 = vcvt.s32.f32 %v1184
        %v1201 = vcvt.s32.f32 %v1185
        %v1202 = vcvt.s32.f32 %v1186
        %v1203 = vcvt.s32.f32 %v1187
        %v1204 = vcvt.s32.f32 %v1188
        %v1205 = vcvt.s32.f32 %v1189
        %v1206 = vcvt.s32.f32 %v1190
        %v1207 = vcvt.s32.f32 %v1191
        %v1208 = vcvt.s32.f32 %v1192
        %v1209 = vcvt.s32.f32 %v1193
        %v1210 = vcvt.s32.f32 %v1194
        %v1211 = vcvt.s32.f32 %v1195
        %v1212 = vcvt.s32.f32 %v1196
        %vm1213 = vcmp.ge.f32.partialorder %v276, %v556
        %vm1214 = vcmp.ge.f32.partialorder %v277, %v556
        %vm1215 = vcmp.ge.f32.partialorder %v278, %v556
        %vm1216 = vcmp.ge.f32.partialorder %v279, %v556
        %vm1217 = vcmp.ge.f32.partialorder %v280, %v556
        %vm1218 = vcmp.ge.f32.partialorder %v281, %v556
        %vm1219 = vcmp.ge.f32.partialorder %v282, %v556
        %vm1220 = vcmp.ge.f32.partialorder %v283, %v556
        %vm1221 = vcmp.ge.f32.partialorder %v284, %v556
        %vm1222 = vcmp.ge.f32.partialorder %v285, %v556
        %vm1223 = vcmp.ge.f32.partialorder %v286, %v556
        %vm1224 = vcmp.ge.f32.partialorder %v287, %v556
        %vm1225 = vcmp.ge.f32.partialorder %v288, %v556
        %vm1226 = vcmp.ge.f32.partialorder %v289, %v556
        %vm1227 = vcmp.ge.f32.partialorder %v290, %v556
        %vm1228 = vcmp.ge.f32.partialorder %v291, %v556
        %vm1229 = vcmp.lt.f32.partialorder %v276, %v576
        %vm1230 = vcmp.lt.f32.partialorder %v277, %v576
        %vm1231 = vcmp.lt.f32.partialorder %v278, %v576
        %vm1232 = vcmp.lt.f32.partialorder %v279, %v576
        %vm1233 = vcmp.lt.f32.partialorder %v280, %v576
        %vm1234 = vcmp.lt.f32.partialorder %v281, %v576
        %vm1235 = vcmp.lt.f32.partialorder %v282, %v576
        %vm1236 = vcmp.lt.f32.partialorder %v283, %v576
        %vm1237 = vcmp.lt.f32.partialorder %v284, %v576
        %vm1238 = vcmp.lt.f32.partialorder %v285, %v576
        %vm1239 = vcmp.lt.f32.partialorder %v286, %v576
        %vm1240 = vcmp.lt.f32.partialorder %v287, %v576
        %vm1241 = vcmp.lt.f32.partialorder %v288, %v576
        %vm1242 = vcmp.lt.f32.partialorder %v289, %v576
        %vm1243 = vcmp.lt.f32.partialorder %v290, %v576
        %vm1244 = vcmp.lt.f32.partialorder %v291, %v576
        %vm1245 = vmand %vm1213, %vm1229
        %vm1246 = vmand %vm1214, %vm1230
        %vm1247 = vmand %vm1215, %vm1231
        %vm1248 = vmand %vm1216, %vm1232
        %vm1249 = vmand %vm1217, %vm1233
        %vm1250 = vmand %vm1218, %vm1234
        %vm1251 = vmand %vm1219, %vm1235
        %vm1252 = vmand %vm1220, %vm1236
        %vm1253 = vmand %vm1221, %vm1237
        %vm1254 = vmand %vm1222, %vm1238
        %vm1255 = vmand %vm1223, %vm1239
        %vm1256 = vmand %vm1224, %vm1240
        %vm1257 = vmand %vm1225, %vm1241
        %vm1258 = vmand %vm1226, %vm1242
        %vm1259 = vmand %vm1227, %vm1243
        %vm1260 = vmand %vm1228, %vm1244
        %v1261 = vsel %vm1245, 1, 0
        %v1262 = vsel %vm1246, 1, 0
        %v1263 = vsel %vm1247, 1, 0
        %v1264 = vsel %vm1248, 1, 0
        %v1265 = vsel %vm1249, 1, 0
        %v1266 = vsel %vm1250, 1, 0
        %v1267 = vsel %vm1251, 1, 0
        %v1268 = vsel %vm1252, 1, 0
        %v1269 = vsel %vm1253, 1, 0
        %v1270 = vsel %vm1254, 1, 0
        %v1271 = vsel %vm1255, 1, 0
        %v1272 = vsel %vm1256, 1, 0
        %v1273 = vsel %vm1257, 1, 0
        %v1274 = vsel %vm1258, 1, 0
        %v1275 = vsel %vm1259, 1, 0
        %v1276 = vsel %vm1260, 1, 0
        %v1277 = vcvt.s32.f32 %v1261
        %v1278 = vcvt.s32.f32 %v1262
        %v1279 = vcvt.s32.f32 %v1263
        %v1280 = vcvt.s32.f32 %v1264
        %v1281 = vcvt.s32.f32 %v1265
        %v1282 = vcvt.s32.f32 %v1266
        %v1283 = vcvt.s32.f32 %v1267
        %v1284 = vcvt.s32.f32 %v1268
        %v1285 = vcvt.s32.f32 %v1269
        %v1286 = vcvt.s32.f32 %v1270
        %v1287 = vcvt.s32.f32 %v1271
        %v1288 = vcvt.s32.f32 %v1272
        %v1289 = vcvt.s32.f32 %v1273
        %v1290 = vcvt.s32.f32 %v1274
        %v1291 = vcvt.s32.f32 %v1275
        %v1292 = vcvt.s32.f32 %v1276
        %vm1293 = vcmp.ge.f32.partialorder %v276, %v576
        %vm1294 = vcmp.ge.f32.partialorder %v277, %v576
        %vm1295 = vcmp.ge.f32.partialorder %v278, %v576
        %vm1296 = vcmp.ge.f32.partialorder %v279, %v576
        %vm1297 = vcmp.ge.f32.partialorder %v280, %v576
        %vm1298 = vcmp.ge.f32.partialorder %v281, %v576
        %vm1299 = vcmp.ge.f32.partialorder %v282, %v576
        %vm1300 = vcmp.ge.f32.partialorder %v283, %v576
        %vm1301 = vcmp.ge.f32.partialorder %v284, %v576
        %vm1302 = vcmp.ge.f32.partialorder %v285, %v576
        %vm1303 = vcmp.ge.f32.partialorder %v286, %v576
        %vm1304 = vcmp.ge.f32.partialorder %v287, %v576
        %vm1305 = vcmp.ge.f32.partialorder %v288, %v576
        %vm1306 = vcmp.ge.f32.partialorder %v289, %v576
        %vm1307 = vcmp.ge.f32.partialorder %v290, %v576
        %vm1308 = vcmp.ge.f32.partialorder %v291, %v576
        %vm1309 = vcmp.lt.f32.partialorder %v276, %v596
        %vm1310 = vcmp.lt.f32.partialorder %v277, %v596
        %vm1311 = vcmp.lt.f32.partialorder %v278, %v596
        %vm1312 = vcmp.lt.f32.partialorder %v279, %v596
        %vm1313 = vcmp.lt.f32.partialorder %v280, %v596
        %vm1314 = vcmp.lt.f32.partialorder %v281, %v596
        %vm1315 = vcmp.lt.f32.partialorder %v282, %v596
        %vm1316 = vcmp.lt.f32.partialorder %v283, %v596
        %vm1317 = vcmp.lt.f32.partialorder %v284, %v596
        %vm1318 = vcmp.lt.f32.partialorder %v285, %v596
        %vm1319 = vcmp.lt.f32.partialorder %v286, %v596
        %vm1320 = vcmp.lt.f32.partialorder %v287, %v596
        %vm1321 = vcmp.lt.f32.partialorder %v288, %v596
        %vm1322 = vcmp.lt.f32.partialorder %v289, %v596
        %vm1323 = vcmp.lt.f32.partialorder %v290, %v596
        %vm1324 = vcmp.lt.f32.partialorder %v291, %v596
        %vm1325 = vmand %vm1293, %vm1309
        %vm1326 = vmand %vm1294, %vm1310
        %vm1327 = vmand %vm1295, %vm1311
        %vm1328 = vmand %vm1296, %vm1312
        %vm1329 = vmand %vm1297, %vm1313
        %vm1330 = vmand %vm1298, %vm1314
        %vm1331 = vmand %vm1299, %vm1315
        %vm1332 = vmand %vm1300, %vm1316
        %vm1333 = vmand %vm1301, %vm1317
        %vm1334 = vmand %vm1302, %vm1318
        %vm1335 = vmand %vm1303, %vm1319
        %vm1336 = vmand %vm1304, %vm1320
        %vm1337 = vmand %vm1305, %vm1321
        %vm1338 = vmand %vm1306, %vm1322
        %vm1339 = vmand %vm1307, %vm1323
        %vm1340 = vmand %vm1308, %vm1324
        %v1341 = vsel %vm1325, 1, 0
        %v1342 = vsel %vm1326, 1, 0
        %v1343 = vsel %vm1327, 1, 0
        %v1344 = vsel %vm1328, 1, 0
        %v1345 = vsel %vm1329, 1, 0
        %v1346 = vsel %vm1330, 1, 0
        %v1347 = vsel %vm1331, 1, 0
        %v1348 = vsel %vm1332, 1, 0
        %v1349 = vsel %vm1333, 1, 0
        %v1350 = vsel %vm1334, 1, 0
        %v1351 = vsel %vm1335, 1, 0
        %v1352 = vsel %vm1336, 1, 0
        %v1353 = vsel %vm1337, 1, 0
        %v1354 = vsel %vm1338, 1, 0
        %v1355 = vsel %vm1339, 1, 0
        %v1356 = vsel %vm1340, 1, 0
        %v1357 = vcvt.s32.f32 %v1341
        %v1358 = vcvt.s32.f32 %v1342
        %v1359 = vcvt.s32.f32 %v1343
        %v1360 = vcvt.s32.f32 %v1344
        %v1361 = vcvt.s32.f32 %v1345
        %v1362 = vcvt.s32.f32 %v1346
        %v1363 = vcvt.s32.f32 %v1347
        %v1364 = vcvt.s32.f32 %v1348
        %v1365 = vcvt.s32.f32 %v1349
        %v1366 = vcvt.s32.f32 %v1350
        %v1367 = vcvt.s32.f32 %v1351
        %v1368 = vcvt.s32.f32 %v1352
        %v1369 = vcvt.s32.f32 %v1353
        %v1370 = vcvt.s32.f32 %v1354
        %v1371 = vcvt.s32.f32 %v1355
        %v1372 = vcvt.s32.f32 %v1356
        %vm1373 = vcmp.ge.f32.partialorder %v276, %v596
        %vm1374 = vcmp.ge.f32.partialorder %v277, %v596
        %vm1375 = vcmp.ge.f32.partialorder %v278, %v596
        %vm1376 = vcmp.ge.f32.partialorder %v279, %v596
        %vm1377 = vcmp.ge.f32.partialorder %v280, %v596
        %vm1378 = vcmp.ge.f32.partialorder %v281, %v596
        %vm1379 = vcmp.ge.f32.partialorder %v282, %v596
        %vm1380 = vcmp.ge.f32.partialorder %v283, %v596
        %vm1381 = vcmp.ge.f32.partialorder %v284, %v596
        %vm1382 = vcmp.ge.f32.partialorder %v285, %v596
        %vm1383 = vcmp.ge.f32.partialorder %v286, %v596
        %vm1384 = vcmp.ge.f32.partialorder %v287, %v596
        %vm1385 = vcmp.ge.f32.partialorder %v288, %v596
        %vm1386 = vcmp.ge.f32.partialorder %v289, %v596
        %vm1387 = vcmp.ge.f32.partialorder %v290, %v596
        %vm1388 = vcmp.ge.f32.partialorder %v291, %v596
        %vm1389 = vcmp.lt.f32.partialorder %v276, %v616
        %vm1390 = vcmp.lt.f32.partialorder %v277, %v616
        %vm1391 = vcmp.lt.f32.partialorder %v278, %v616
        %vm1392 = vcmp.lt.f32.partialorder %v279, %v616
        %vm1393 = vcmp.lt.f32.partialorder %v280, %v616
        %vm1394 = vcmp.lt.f32.partialorder %v281, %v616
        %vm1395 = vcmp.lt.f32.partialorder %v282, %v616
        %vm1396 = vcmp.lt.f32.partialorder %v283, %v616
        %vm1397 = vcmp.lt.f32.partialorder %v284, %v616
        %vm1398 = vcmp.lt.f32.partialorder %v285, %v616
        %vm1399 = vcmp.lt.f32.partialorder %v286, %v616
        %vm1400 = vcmp.lt.f32.partialorder %v287, %v616
        %vm1401 = vcmp.lt.f32.partialorder %v288, %v616
        %vm1402 = vcmp.lt.f32.partialorder %v289, %v616
        %vm1403 = vcmp.lt.f32.partialorder %v290, %v616
        %vm1404 = vcmp.lt.f32.partialorder %v291, %v616
        %vm1405 = vmand %vm1373, %vm1389
        %vm1406 = vmand %vm1374, %vm1390
        %vm1407 = vmand %vm1375, %vm1391
        %vm1408 = vmand %vm1376, %vm1392
        %vm1409 = vmand %vm1377, %vm1393
        %vm1410 = vmand %vm1378, %vm1394
        %vm1411 = vmand %vm1379, %vm1395
        %vm1412 = vmand %vm1380, %vm1396
        %vm1413 = vmand %vm1381, %vm1397
        %vm1414 = vmand %vm1382, %vm1398
        %vm1415 = vmand %vm1383, %vm1399
        %vm1416 = vmand %vm1384, %vm1400
        %vm1417 = vmand %vm1385, %vm1401
        %vm1418 = vmand %vm1386, %vm1402
        %vm1419 = vmand %vm1387, %vm1403
        %vm1420 = vmand %vm1388, %vm1404
        %v1421 = vsel %vm1405, 1, 0
        %v1422 = vsel %vm1406, 1, 0
        %v1423 = vsel %vm1407, 1, 0
        %v1424 = vsel %vm1408, 1, 0
        %v1425 = vsel %vm1409, 1, 0
        %v1426 = vsel %vm1410, 1, 0
        %v1427 = vsel %vm1411, 1, 0
        %v1428 = vsel %vm1412, 1, 0
        %v1429 = vsel %vm1413, 1, 0
        %v1430 = vsel %vm1414, 1, 0
        %v1431 = vsel %vm1415, 1, 0
        %v1432 = vsel %vm1416, 1, 0
        %v1433 = vsel %vm1417, 1, 0
        %v1434 = vsel %vm1418, 1, 0
        %v1435 = vsel %vm1419, 1, 0
        %v1436 = vsel %vm1420, 1, 0
        %v1437 = vcvt.s32.f32 %v1421
        %v1438 = vcvt.s32.f32 %v1422
        %v1439 = vcvt.s32.f32 %v1423
        %v1440 = vcvt.s32.f32 %v1424
        %v1441 = vcvt.s32.f32 %v1425
        %v1442 = vcvt.s32.f32 %v1426
        %v1443 = vcvt.s32.f32 %v1427
        %v1444 = vcvt.s32.f32 %v1428
        %v1445 = vcvt.s32.f32 %v1429
        %v1446 = vcvt.s32.f32 %v1430
        %v1447 = vcvt.s32.f32 %v1431
        %v1448 = vcvt.s32.f32 %v1432
        %v1449 = vcvt.s32.f32 %v1433
        %v1450 = vcvt.s32.f32 %v1434
        %v1451 = vcvt.s32.f32 %v1435
        %v1452 = vcvt.s32.f32 %v1436
        %vm1453 = vcmp.ge.f32.partialorder %v276, %v616
        %vm1454 = vcmp.ge.f32.partialorder %v277, %v616
        %vm1455 = vcmp.ge.f32.partialorder %v278, %v616
        %vm1456 = vcmp.ge.f32.partialorder %v279, %v616
        %vm1457 = vcmp.ge.f32.partialorder %v280, %v616
        %vm1458 = vcmp.ge.f32.partialorder %v281, %v616
        %vm1459 = vcmp.ge.f32.partialorder %v282, %v616
        %vm1460 = vcmp.ge.f32.partialorder %v283, %v616
        %vm1461 = vcmp.ge.f32.partialorder %v284, %v616
        %vm1462 = vcmp.ge.f32.partialorder %v285, %v616
        %vm1463 = vcmp.ge.f32.partialorder %v286, %v616
        %vm1464 = vcmp.ge.f32.partialorder %v287, %v616
        %vm1465 = vcmp.ge.f32.partialorder %v288, %v616
        %vm1466 = vcmp.ge.f32.partialorder %v289, %v616
        %vm1467 = vcmp.ge.f32.partialorder %v290, %v616
        %vm1468 = vcmp.ge.f32.partialorder %v291, %v616
        %vm1469 = vcmp.lt.f32.partialorder %v276, %v636
        %vm1470 = vcmp.lt.f32.partialorder %v277, %v636
        %vm1471 = vcmp.lt.f32.partialorder %v278, %v636
        %vm1472 = vcmp.lt.f32.partialorder %v279, %v636
        %vm1473 = vcmp.lt.f32.partialorder %v280, %v636
        %vm1474 = vcmp.lt.f32.partialorder %v281, %v636
        %vm1475 = vcmp.lt.f32.partialorder %v282, %v636
        %vm1476 = vcmp.lt.f32.partialorder %v283, %v636
        %vm1477 = vcmp.lt.f32.partialorder %v284, %v636
        %vm1478 = vcmp.lt.f32.partialorder %v285, %v636
        %vm1479 = vcmp.lt.f32.partialorder %v286, %v636
        %vm1480 = vcmp.lt.f32.partialorder %v287, %v636
        %vm1481 = vcmp.lt.f32.partialorder %v288, %v636
        %vm1482 = vcmp.lt.f32.partialorder %v289, %v636
        %vm1483 = vcmp.lt.f32.partialorder %v290, %v636
        %vm1484 = vcmp.lt.f32.partialorder %v291, %v636
        %vm1485 = vmand %vm1453, %vm1469
        %vm1486 = vmand %vm1454, %vm1470
        %vm1487 = vmand %vm1455, %vm1471
        %vm1488 = vmand %vm1456, %vm1472
        %vm1489 = vmand %vm1457, %vm1473
        %vm1490 = vmand %vm1458, %vm1474
        %vm1491 = vmand %vm1459, %vm1475
        %vm1492 = vmand %vm1460, %vm1476
        %vm1493 = vmand %vm1461, %vm1477
        %vm1494 = vmand %vm1462, %vm1478
        %vm1495 = vmand %vm1463, %vm1479
        %vm1496 = vmand %vm1464, %vm1480
        %vm1497 = vmand %vm1465, %vm1481
        %vm1498 = vmand %vm1466, %vm1482
        %vm1499 = vmand %vm1467, %vm1483
        %vm1500 = vmand %vm1468, %vm1484
        %v1501 = vsel %vm1485, 1, 0
        %v1502 = vsel %vm1486, 1, 0
        %v1503 = vsel %vm1487, 1, 0
        %v1504 = vsel %vm1488, 1, 0
        %v1505 = vsel %vm1489, 1, 0
        %v1506 = vsel %vm1490, 1, 0
        %v1507 = vsel %vm1491, 1, 0
        %v1508 = vsel %vm1492, 1, 0
        %v1509 = vsel %vm1493, 1, 0
        %v1510 = vsel %vm1494, 1, 0
        %v1511 = vsel %vm1495, 1, 0
        %v1512 = vsel %vm1496, 1, 0
        %v1513 = vsel %vm1497, 1, 0
        %v1514 = vsel %vm1498, 1, 0
        %v1515 = vsel %vm1499, 1, 0
        %v1516 = vsel %vm1500, 1, 0
        %v1517 = vcvt.s32.f32 %v1501
        %v1518 = vcvt.s32.f32 %v1502
        %v1519 = vcvt.s32.f32 %v1503
        %v1520 = vcvt.s32.f32 %v1504
        %v1521 = vcvt.s32.f32 %v1505
        %v1522 = vcvt.s32.f32 %v1506
        %v1523 = vcvt.s32.f32 %v1507
        %v1524 = vcvt.s32.f32 %v1508
        %v1525 = vcvt.s32.f32 %v1509
        %v1526 = vcvt.s32.f32 %v1510
        %v1527 = vcvt.s32.f32 %v1511
        %v1528 = vcvt.s32.f32 %v1512
        %v1529 = vcvt.s32.f32 %v1513
        %v1530 = vcvt.s32.f32 %v1514
        %v1531 = vcvt.s32.f32 %v1515
        %v1532 = vcvt.s32.f32 %v1516
        %v1533 = vlaneseq
        %v1534 = vshrl.u32 %v1533, 7
        %v1535 = vsub.s32 0, %v1534
        %v1536 = vrot.slane %v406, %v1535
        %v1537 = vmul.f32 %v417, %v1536
        %v1538 = vmul.f32 %v418, %v1536
        %v1539 = vmul.f32 %v419, %v1536
        %v1540 = vmul.f32 %v420, %v1536
        %v1541 = vmul.f32 %v421, %v1536
        %v1542 = vmul.f32 %v422, %v1536
        %v1543 = vmul.f32 %v423, %v1536
        %v1544 = vmul.f32 %v424, %v1536
        %v1545 = vmul.f32 %v425, %v1536
        %v1546 = vmul.f32 %v426, %v1536
        %v1547 = vmul.f32 %v427, %v1536
        %v1548 = vmul.f32 %v428, %v1536
        %v1549 = vmul.f32 %v429, %v1536
        %v1550 = vmul.f32 %v430, %v1536
        %v1551 = vmul.f32 %v431, %v1536
        %v1552 = vmul.f32 %v432, %v1536
        %v1553 = vmul.f32 %v1537, %v717
        %v1554 = vmul.f32 %v1538, %v718
        %v1555 = vmul.f32 %v1539, %v719
        %v1556 = vmul.f32 %v1540, %v720
        %v1557 = vmul.f32 %v1541, %v721
        %v1558 = vmul.f32 %v1542, %v722
        %v1559 = vmul.f32 %v1543, %v723
        %v1560 = vmul.f32 %v1544, %v724
        %v1561 = vmul.f32 %v1545, %v725
        %v1562 = vmul.f32 %v1546, %v726
        %v1563 = vmul.f32 %v1547, %v727
        %v1564 = vmul.f32 %v1548, %v728
        %v1565 = vmul.f32 %v1549, %v729
        %v1566 = vmul.f32 %v1550, %v730
        %v1567 = vmul.f32 %v1551, %v731
        %v1568 = vmul.f32 %v1552, %v732
        %v1569 = vlaneseq
        %v1570 = vshrl.u32 %v1569, 7
        %v1571 = vsub.s32 1, %v1570
        %v1572 = vrot.slane %v406, %v1571
        %v1573 = vmul.f32 %v457, %v1572
        %v1574 = vmul.f32 %v458, %v1572
        %v1575 = vmul.f32 %v459, %v1572
        %v1576 = vmul.f32 %v460, %v1572
        %v1577 = vmul.f32 %v461, %v1572
        %v1578 = vmul.f32 %v462, %v1572
        %v1579 = vmul.f32 %v463, %v1572
        %v1580 = vmul.f32 %v464, %v1572
        %v1581 = vmul.f32 %v465, %v1572
        %v1582 = vmul.f32 %v466, %v1572
        %v1583 = vmul.f32 %v467, %v1572
        %v1584 = vmul.f32 %v468, %v1572
        %v1585 = vmul.f32 %v469, %v1572
        %v1586 = vmul.f32 %v470, %v1572
        %v1587 = vmul.f32 %v471, %v1572
        %v1588 = vmul.f32 %v472, %v1572
        %v1589 = vmul.f32 %v1573, %v797
        %v1590 = vmul.f32 %v1574, %v798
        %v1591 = vmul.f32 %v1575, %v799
        %v1592 = vmul.f32 %v1576, %v800
        %v1593 = vmul.f32 %v1577, %v801
        %v1594 = vmul.f32 %v1578, %v802
        %v1595 = vmul.f32 %v1579, %v803
        %v1596 = vmul.f32 %v1580, %v804
        %v1597 = vmul.f32 %v1581, %v805
        %v1598 = vmul.f32 %v1582, %v806
        %v1599 = vmul.f32 %v1583, %v807
        %v1600 = vmul.f32 %v1584, %v808
        %v1601 = vmul.f32 %v1585, %v809
        %v1602 = vmul.f32 %v1586, %v810
        %v1603 = vmul.f32 %v1587, %v811
        %v1604 = vmul.f32 %v1588, %v812
        %v1605 = vadd.f32 %v1553, %v1589
        %v1606 = vadd.f32 %v1554, %v1590
        %v1607 = vadd.f32 %v1555, %v1591
        %v1608 = vadd.f32 %v1556, %v1592
        %v1609 = vadd.f32 %v1557, %v1593
        %v1610 = vadd.f32 %v1558, %v1594
        %v1611 = vadd.f32 %v1559, %v1595
        %v1612 = vadd.f32 %v1560, %v1596
        %v1613 = vadd.f32 %v1561, %v1597
        %v1614 = vadd.f32 %v1562, %v1598
        %v1615 = vadd.f32 %v1563, %v1599
        %v1616 = vadd.f32 %v1564, %v1600
        %v1617 = vadd.f32 %v1565, %v1601
        %v1618 = vadd.f32 %v1566, %v1602
        %v1619 = vadd.f32 %v1567, %v1603
        %v1620 = vadd.f32 %v1568, %v1604
        %v1621 = vlaneseq
        %v1622 = vshrl.u32 %v1621, 7
        %v1623 = vsub.s32 2, %v1622
        %v1624 = vrot.slane %v406, %v1623
        %v1625 = vmul.f32 %v437, %v1624
        %v1626 = vmul.f32 %v438, %v1624
        %v1627 = vmul.f32 %v439, %v1624
        %v1628 = vmul.f32 %v440, %v1624
        %v1629 = vmul.f32 %v441, %v1624
        %v1630 = vmul.f32 %v442, %v1624
        %v1631 = vmul.f32 %v443, %v1624
        %v1632 = vmul.f32 %v444, %v1624
        %v1633 = vmul.f32 %v445, %v1624
        %v1634 = vmul.f32 %v446, %v1624
        %v1635 = vmul.f32 %v447, %v1624
        %v1636 = vmul.f32 %v448, %v1624
        %v1637 = vmul.f32 %v449, %v1624
        %v1638 = vmul.f32 %v450, %v1624
        %v1639 = vmul.f32 %v451, %v1624
        %v1640 = vmul.f32 %v452, %v1624
        %v1641 = vmul.f32 %v1625, %v797
        %v1642 = vmul.f32 %v1626, %v798
        %v1643 = vmul.f32 %v1627, %v799
        %v1644 = vmul.f32 %v1628, %v800
        %v1645 = vmul.f32 %v1629, %v801
        %v1646 = vmul.f32 %v1630, %v802
        %v1647 = vmul.f32 %v1631, %v803
        %v1648 = vmul.f32 %v1632, %v804
        %v1649 = vmul.f32 %v1633, %v805
        %v1650 = vmul.f32 %v1634, %v806
        %v1651 = vmul.f32 %v1635, %v807
        %v1652 = vmul.f32 %v1636, %v808
        %v1653 = vmul.f32 %v1637, %v809
        %v1654 = vmul.f32 %v1638, %v810
        %v1655 = vmul.f32 %v1639, %v811
        %v1656 = vmul.f32 %v1640, %v812
        %v1657 = vlaneseq
        %v1658 = vshrl.u32 %v1657, 7
        %v1659 = vsub.s32 3, %v1658
        %v1660 = vrot.slane %v406, %v1659
        %v1661 = vmul.f32 %v477, %v1660
        %v1662 = vmul.f32 %v478, %v1660
        %v1663 = vmul.f32 %v479, %v1660
        %v1664 = vmul.f32 %v480, %v1660
        %v1665 = vmul.f32 %v481, %v1660
        %v1666 = vmul.f32 %v482, %v1660
        %v1667 = vmul.f32 %v483, %v1660
        %v1668 = vmul.f32 %v484, %v1660
        %v1669 = vmul.f32 %v485, %v1660
        %v1670 = vmul.f32 %v486, %v1660
        %v1671 = vmul.f32 %v487, %v1660
        %v1672 = vmul.f32 %v488, %v1660
        %v1673 = vmul.f32 %v489, %v1660
        %v1674 = vmul.f32 %v490, %v1660
        %v1675 = vmul.f32 %v491, %v1660
        %v1676 = vmul.f32 %v492, %v1660
        %v1677 = vmul.f32 %v1661, %v877
        %v1678 = vmul.f32 %v1662, %v878
        %v1679 = vmul.f32 %v1663, %v879
        %v1680 = vmul.f32 %v1664, %v880
        %v1681 = vmul.f32 %v1665, %v881
        %v1682 = vmul.f32 %v1666, %v882
        %v1683 = vmul.f32 %v1667, %v883
        %v1684 = vmul.f32 %v1668, %v884
        %v1685 = vmul.f32 %v1669, %v885
        %v1686 = vmul.f32 %v1670, %v886
        %v1687 = vmul.f32 %v1671, %v887
        %v1688 = vmul.f32 %v1672, %v888
        %v1689 = vmul.f32 %v1673, %v889
        %v1690 = vmul.f32 %v1674, %v890
        %v1691 = vmul.f32 %v1675, %v891
        %v1692 = vmul.f32 %v1676, %v892
        %v1693 = vadd.f32 %v1641, %v1677
        %v1694 = vadd.f32 %v1642, %v1678
        %v1695 = vadd.f32 %v1643, %v1679
        %v1696 = vadd.f32 %v1644, %v1680
        %v1697 = vadd.f32 %v1645, %v1681
        %v1698 = vadd.f32 %v1646, %v1682
        %v1699 = vadd.f32 %v1647, %v1683
        %v1700 = vadd.f32 %v1648, %v1684
        %v1701 = vadd.f32 %v1649, %v1685
        %v1702 = vadd.f32 %v1650, %v1686
        %v1703 = vadd.f32 %v1651, %v1687
        %v1704 = vadd.f32 %v1652, %v1688
        %v1705 = vadd.f32 %v1653, %v1689
        %v1706 = vadd.f32 %v1654, %v1690
        %v1707 = vadd.f32 %v1655, %v1691
        %v1708 = vadd.f32 %v1656, %v1692
        %v1709 = vlaneseq
        %v1710 = vshrl.u32 %v1709, 7
        %v1711 = vsub.s32 4, %v1710
        %v1712 = vrot.slane %v406, %v1711
        %v1713 = vmul.f32 %v457, %v1712
        %v1714 = vmul.f32 %v458, %v1712
        %v1715 = vmul.f32 %v459, %v1712
        %v1716 = vmul.f32 %v460, %v1712
        %v1717 = vmul.f32 %v461, %v1712
        %v1718 = vmul.f32 %v462, %v1712
        %v1719 = vmul.f32 %v463, %v1712
        %v1720 = vmul.f32 %v464, %v1712
        %v1721 = vmul.f32 %v465, %v1712
        %v1722 = vmul.f32 %v466, %v1712
        %v1723 = vmul.f32 %v467, %v1712
        %v1724 = vmul.f32 %v468, %v1712
        %v1725 = vmul.f32 %v469, %v1712
        %v1726 = vmul.f32 %v470, %v1712
        %v1727 = vmul.f32 %v471, %v1712
        %v1728 = vmul.f32 %v472, %v1712
        %v1729 = vmul.f32 %v1713, %v877
        %v1730 = vmul.f32 %v1714, %v878
        %v1731 = vmul.f32 %v1715, %v879
        %v1732 = vmul.f32 %v1716, %v880
        %v1733 = vmul.f32 %v1717, %v881
        %v1734 = vmul.f32 %v1718, %v882
        %v1735 = vmul.f32 %v1719, %v883
        %v1736 = vmul.f32 %v1720, %v884
        %v1737 = vmul.f32 %v1721, %v885
        %v1738 = vmul.f32 %v1722, %v886
        %v1739 = vmul.f32 %v1723, %v887
        %v1740 = vmul.f32 %v1724, %v888
        %v1741 = vmul.f32 %v1725, %v889
        %v1742 = vmul.f32 %v1726, %v890
        %v1743 = vmul.f32 %v1727, %v891
        %v1744 = vmul.f32 %v1728, %v892
        %v1745 = vlaneseq
        %v1746 = vshrl.u32 %v1745, 7
        %v1747 = vsub.s32 5, %v1746
        %v1748 = vrot.slane %v406, %v1747
        %v1749 = vmul.f32 %v497, %v1748
        %v1750 = vmul.f32 %v498, %v1748
        %v1751 = vmul.f32 %v499, %v1748
        %v1752 = vmul.f32 %v500, %v1748
        %v1753 = vmul.f32 %v501, %v1748
        %v1754 = vmul.f32 %v502, %v1748
        %v1755 = vmul.f32 %v503, %v1748
        %v1756 = vmul.f32 %v504, %v1748
        %v1757 = vmul.f32 %v505, %v1748
        %v1758 = vmul.f32 %v506, %v1748
        %v1759 = vmul.f32 %v507, %v1748
        %v1760 = vmul.f32 %v508, %v1748
        %v1761 = vmul.f32 %v509, %v1748
        %v1762 = vmul.f32 %v510, %v1748
        %v1763 = vmul.f32 %v511, %v1748
        %v1764 = vmul.f32 %v512, %v1748
        %v1765 = vmul.f32 %v1749, %v957
        %v1766 = vmul.f32 %v1750, %v958
        %v1767 = vmul.f32 %v1751, %v959
        %v1768 = vmul.f32 %v1752, %v960
        %v1769 = vmul.f32 %v1753, %v961
        %v1770 = vmul.f32 %v1754, %v962
        %v1771 = vmul.f32 %v1755, %v963
        %v1772 = vmul.f32 %v1756, %v964
        %v1773 = vmul.f32 %v1757, %v965
        %v1774 = vmul.f32 %v1758, %v966
        %v1775 = vmul.f32 %v1759, %v967
        %v1776 = vmul.f32 %v1760, %v968
        %v1777 = vmul.f32 %v1761, %v969
        %v1778 = vmul.f32 %v1762, %v970
        %v1779 = vmul.f32 %v1763, %v971
        %v1780 = vmul.f32 %v1764, %v972
        %v1781 = vadd.f32 %v1729, %v1765
        %v1782 = vadd.f32 %v1730, %v1766
        %v1783 = vadd.f32 %v1731, %v1767
        %v1784 = vadd.f32 %v1732, %v1768
        %v1785 = vadd.f32 %v1733, %v1769
        %v1786 = vadd.f32 %v1734, %v1770
        %v1787 = vadd.f32 %v1735, %v1771
        %v1788 = vadd.f32 %v1736, %v1772
        %v1789 = vadd.f32 %v1737, %v1773
        %v1790 = vadd.f32 %v1738, %v1774
        %v1791 = vadd.f32 %v1739, %v1775
        %v1792 = vadd.f32 %v1740, %v1776
        %v1793 = vadd.f32 %v1741, %v1777
        %v1794 = vadd.f32 %v1742, %v1778
        %v1795 = vadd.f32 %v1743, %v1779
        %v1796 = vadd.f32 %v1744, %v1780
        %v1797 = vlaneseq
        %v1798 = vshrl.u32 %v1797, 7
        %v1799 = vsub.s32 6, %v1798
        %v1800 = vrot.slane %v406, %v1799
        %v1801 = vmul.f32 %v477, %v1800
        %v1802 = vmul.f32 %v478, %v1800
        %v1803 = vmul.f32 %v479, %v1800
        %v1804 = vmul.f32 %v480, %v1800
        %v1805 = vmul.f32 %v481, %v1800
        %v1806 = vmul.f32 %v482, %v1800
        %v1807 = vmul.f32 %v483, %v1800
        %v1808 = vmul.f32 %v484, %v1800
        %v1809 = vmul.f32 %v485, %v1800
        %v1810 = vmul.f32 %v486, %v1800
        %v1811 = vmul.f32 %v487, %v1800
        %v1812 = vmul.f32 %v488, %v1800
        %v1813 = vmul.f32 %v489, %v1800
        %v1814 = vmul.f32 %v490, %v1800
        %v1815 = vmul.f32 %v491, %v1800
        %v1816 = vmul.f32 %v492, %v1800
        %v1817 = vmul.f32 %v1801, %v957
        %v1818 = vmul.f32 %v1802, %v958
        %v1819 = vmul.f32 %v1803, %v959
        %v1820 = vmul.f32 %v1804, %v960
        %v1821 = vmul.f32 %v1805, %v961
        %v1822 = vmul.f32 %v1806, %v962
        %v1823 = vmul.f32 %v1807, %v963
        %v1824 = vmul.f32 %v1808, %v964
        %v1825 = vmul.f32 %v1809, %v965
        %v1826 = vmul.f32 %v1810, %v966
        %v1827 = vmul.f32 %v1811, %v967
        %v1828 = vmul.f32 %v1812, %v968
        %v1829 = vmul.f32 %v1813, %v969
        %v1830 = vmul.f32 %v1814, %v970
        %v1831 = vmul.f32 %v1815, %v971
        %v1832 = vmul.f32 %v1816, %v972
        %v1833 = vlaneseq
        %v1834 = vshrl.u32 %v1833, 7
        %v1835 = vsub.s32 7, %v1834
        %v1836 = vrot.slane %v406, %v1835
        %v1837 = vmul.f32 %v517, %v1836
        %v1838 = vmul.f32 %v518, %v1836
        %v1839 = vmul.f32 %v519, %v1836
        %v1840 = vmul.f32 %v520, %v1836
        %v1841 = vmul.f32 %v521, %v1836
        %v1842 = vmul.f32 %v522, %v1836
        %v1843 = vmul.f32 %v523, %v1836
        %v1844 = vmul.f32 %v524, %v1836
        %v1845 = vmul.f32 %v525, %v1836
        %v1846 = vmul.f32 %v526, %v1836
        %v1847 = vmul.f32 %v527, %v1836
        %v1848 = vmul.f32 %v528, %v1836
        %v1849 = vmul.f32 %v529, %v1836
        %v1850 = vmul.f32 %v530, %v1836
        %v1851 = vmul.f32 %v531, %v1836
        %v1852 = vmul.f32 %v532, %v1836
        %v1853 = vmul.f32 %v1837, %v1037
        %v1854 = vmul.f32 %v1838, %v1038
        %v1855 = vmul.f32 %v1839, %v1039
        %v1856 = vmul.f32 %v1840, %v1040
        %v1857 = vmul.f32 %v1841, %v1041
        %v1858 = vmul.f32 %v1842, %v1042
        %v1859 = vmul.f32 %v1843, %v1043
        %v1860 = vmul.f32 %v1844, %v1044
        %v1861 = vmul.f32 %v1845, %v1045
        %v1862 = vmul.f32 %v1846, %v1046
        %v1863 = vmul.f32 %v1847, %v1047
        %v1864 = vmul.f32 %v1848, %v1048
        %v1865 = vmul.f32 %v1849, %v1049
        %v1866 = vmul.f32 %v1850, %v1050
        %v1867 = vmul.f32 %v1851, %v1051
        %v1868 = vmul.f32 %v1852, %v1052
        %v1869 = vadd.f32 %v1817, %v1853
        %v1870 = vadd.f32 %v1818, %v1854
        %v1871 = vadd.f32 %v1819, %v1855
        %v1872 = vadd.f32 %v1820, %v1856
        %v1873 = vadd.f32 %v1821, %v1857
        %v1874 = vadd.f32 %v1822, %v1858
        %v1875 = vadd.f32 %v1823, %v1859
        %v1876 = vadd.f32 %v1824, %v1860
        %v1877 = vadd.f32 %v1825, %v1861
        %v1878 = vadd.f32 %v1826, %v1862
        %v1879 = vadd.f32 %v1827, %v1863
        %v1880 = vadd.f32 %v1828, %v1864
        %v1881 = vadd.f32 %v1829, %v1865
        %v1882 = vadd.f32 %v1830, %v1866
        %v1883 = vadd.f32 %v1831, %v1867
        %v1884 = vadd.f32 %v1832, %v1868
        %v1885 = vlaneseq
        %v1886 = vshrl.u32 %v1885, 7
        %v1887 = vsub.s32 0, %v1886
        %v1888 = vrot.slane %v407, %v1887
        %v1889 = vmul.f32 %v497, %v1888
        %v1890 = vmul.f32 %v498, %v1888
        %v1891 = vmul.f32 %v499, %v1888
        %v1892 = vmul.f32 %v500, %v1888
        %v1893 = vmul.f32 %v501, %v1888
        %v1894 = vmul.f32 %v502, %v1888
        %v1895 = vmul.f32 %v503, %v1888
        %v1896 = vmul.f32 %v504, %v1888
        %v1897 = vmul.f32 %v505, %v1888
        %v1898 = vmul.f32 %v506, %v1888
        %v1899 = vmul.f32 %v507, %v1888
        %v1900 = vmul.f32 %v508, %v1888
        %v1901 = vmul.f32 %v509, %v1888
        %v1902 = vmul.f32 %v510, %v1888
        %v1903 = vmul.f32 %v511, %v1888
        %v1904 = vmul.f32 %v512, %v1888
        %v1905 = vmul.f32 %v1889, %v1037
        %v1906 = vmul.f32 %v1890, %v1038
        %v1907 = vmul.f32 %v1891, %v1039
        %v1908 = vmul.f32 %v1892, %v1040
        %v1909 = vmul.f32 %v1893, %v1041
        %v1910 = vmul.f32 %v1894, %v1042
        %v1911 = vmul.f32 %v1895, %v1043
        %v1912 = vmul.f32 %v1896, %v1044
        %v1913 = vmul.f32 %v1897, %v1045
        %v1914 = vmul.f32 %v1898, %v1046
        %v1915 = vmul.f32 %v1899, %v1047
        %v1916 = vmul.f32 %v1900, %v1048
        %v1917 = vmul.f32 %v1901, %v1049
        %v1918 = vmul.f32 %v1902, %v1050
        %v1919 = vmul.f32 %v1903, %v1051
        %v1920 = vmul.f32 %v1904, %v1052
        %v1921 = vlaneseq
        %v1922 = vshrl.u32 %v1921, 7
        %v1923 = vsub.s32 1, %v1922
        %v1924 = vrot.slane %v407, %v1923
        %v1925 = vmul.f32 %v537, %v1924
        %v1926 = vmul.f32 %v538, %v1924
        %v1927 = vmul.f32 %v539, %v1924
        %v1928 = vmul.f32 %v540, %v1924
        %v1929 = vmul.f32 %v541, %v1924
        %v1930 = vmul.f32 %v542, %v1924
        %v1931 = vmul.f32 %v543, %v1924
        %v1932 = vmul.f32 %v544, %v1924
        %v1933 = vmul.f32 %v545, %v1924
        %v1934 = vmul.f32 %v546, %v1924
        %v1935 = vmul.f32 %v547, %v1924
        %v1936 = vmul.f32 %v548, %v1924
        %v1937 = vmul.f32 %v549, %v1924
        %v1938 = vmul.f32 %v550, %v1924
        %v1939 = vmul.f32 %v551, %v1924
        %v1940 = vmul.f32 %v552, %v1924
        %v1941 = vmul.f32 %v1925, %v1117
        %v1942 = vmul.f32 %v1926, %v1118
        %v1943 = vmul.f32 %v1927, %v1119
        %v1944 = vmul.f32 %v1928, %v1120
        %v1945 = vmul.f32 %v1929, %v1121
        %v1946 = vmul.f32 %v1930, %v1122
        %v1947 = vmul.f32 %v1931, %v1123
        %v1948 = vmul.f32 %v1932, %v1124
        %v1949 = vmul.f32 %v1933, %v1125
        %v1950 = vmul.f32 %v1934, %v1126
        %v1951 = vmul.f32 %v1935, %v1127
        %v1952 = vmul.f32 %v1936, %v1128
        %v1953 = vmul.f32 %v1937, %v1129
        %v1954 = vmul.f32 %v1938, %v1130
        %v1955 = vmul.f32 %v1939, %v1131
        %v1956 = vmul.f32 %v1940, %v1132
        %v1957 = vadd.f32 %v1905, %v1941
        %v1958 = vadd.f32 %v1906, %v1942
        %v1959 = vadd.f32 %v1907, %v1943
        %v1960 = vadd.f32 %v1908, %v1944
        %v1961 = vadd.f32 %v1909, %v1945
        %v1962 = vadd.f32 %v1910, %v1946
        %v1963 = vadd.f32 %v1911, %v1947
        %v1964 = vadd.f32 %v1912, %v1948
        %v1965 = vadd.f32 %v1913, %v1949
        %v1966 = vadd.f32 %v1914, %v1950
        %v1967 = vadd.f32 %v1915, %v1951
        %v1968 = vadd.f32 %v1916, %v1952
        %v1969 = vadd.f32 %v1917, %v1953
        %v1970 = vadd.f32 %v1918, %v1954
        %v1971 = vadd.f32 %v1919, %v1955
        %v1972 = vadd.f32 %v1920, %v1956
        %v1973 = vlaneseq
        %v1974 = vshrl.u32 %v1973, 7
        %v1975 = vsub.s32 2, %v1974
        %v1976 = vrot.slane %v407, %v1975
        %v1977 = vmul.f32 %v517, %v1976
        %v1978 = vmul.f32 %v518, %v1976
        %v1979 = vmul.f32 %v519, %v1976
        %v1980 = vmul.f32 %v520, %v1976
        %v1981 = vmul.f32 %v521, %v1976
        %v1982 = vmul.f32 %v522, %v1976
        %v1983 = vmul.f32 %v523, %v1976
        %v1984 = vmul.f32 %v524, %v1976
        %v1985 = vmul.f32 %v525, %v1976
        %v1986 = vmul.f32 %v526, %v1976
        %v1987 = vmul.f32 %v527, %v1976
        %v1988 = vmul.f32 %v528, %v1976
        %v1989 = vmul.f32 %v529, %v1976
        %v1990 = vmul.f32 %v530, %v1976
        %v1991 = vmul.f32 %v531, %v1976
        %v1992 = vmul.f32 %v532, %v1976
        %v1993 = vmul.f32 %v1977, %v1117
        %v1994 = vmul.f32 %v1978, %v1118
        %v1995 = vmul.f32 %v1979, %v1119
        %v1996 = vmul.f32 %v1980, %v1120
        %v1997 = vmul.f32 %v1981, %v1121
        %v1998 = vmul.f32 %v1982, %v1122
        %v1999 = vmul.f32 %v1983, %v1123
        %v2000 = vmul.f32 %v1984, %v1124
        %v2001 = vmul.f32 %v1985, %v1125
        %v2002 = vmul.f32 %v1986, %v1126
        %v2003 = vmul.f32 %v1987, %v1127
        %v2004 = vmul.f32 %v1988, %v1128
        %v2005 = vmul.f32 %v1989, %v1129
        %v2006 = vmul.f32 %v1990, %v1130
        %v2007 = vmul.f32 %v1991, %v1131
        %v2008 = vmul.f32 %v1992, %v1132
        %v2009 = vlaneseq
        %v2010 = vshrl.u32 %v2009, 7
        %v2011 = vsub.s32 3, %v2010
        %v2012 = vrot.slane %v407, %v2011
        %v2013 = vmul.f32 %v557, %v2012
        %v2014 = vmul.f32 %v558, %v2012
        %v2015 = vmul.f32 %v559, %v2012
        %v2016 = vmul.f32 %v560, %v2012
        %v2017 = vmul.f32 %v561, %v2012
        %v2018 = vmul.f32 %v562, %v2012
        %v2019 = vmul.f32 %v563, %v2012
        %v2020 = vmul.f32 %v564, %v2012
        %v2021 = vmul.f32 %v565, %v2012
        %v2022 = vmul.f32 %v566, %v2012
        %v2023 = vmul.f32 %v567, %v2012
        %v2024 = vmul.f32 %v568, %v2012
        %v2025 = vmul.f32 %v569, %v2012
        %v2026 = vmul.f32 %v570, %v2012
        %v2027 = vmul.f32 %v571, %v2012
        %v2028 = vmul.f32 %v572, %v2012
        %v2029 = vmul.f32 %v2013, %v1197
        %v2030 = vmul.f32 %v2014, %v1198
        %v2031 = vmul.f32 %v2015, %v1199
        %v2032 = vmul.f32 %v2016, %v1200
        %v2033 = vmul.f32 %v2017, %v1201
        %v2034 = vmul.f32 %v2018, %v1202
        %v2035 = vmul.f32 %v2019, %v1203
        %v2036 = vmul.f32 %v2020, %v1204
        %v2037 = vmul.f32 %v2021, %v1205
        %v2038 = vmul.f32 %v2022, %v1206
        %v2039 = vmul.f32 %v2023, %v1207
        %v2040 = vmul.f32 %v2024, %v1208
        %v2041 = vmul.f32 %v2025, %v1209
        %v2042 = vmul.f32 %v2026, %v1210
        %v2043 = vmul.f32 %v2027, %v1211
        %v2044 = vmul.f32 %v2028, %v1212
        %v2045 = vadd.f32 %v1993, %v2029
        %v2046 = vadd.f32 %v1994, %v2030
        %v2047 = vadd.f32 %v1995, %v2031
        %v2048 = vadd.f32 %v1996, %v2032
        %v2049 = vadd.f32 %v1997, %v2033
        %v2050 = vadd.f32 %v1998, %v2034
        %v2051 = vadd.f32 %v1999, %v2035
        %v2052 = vadd.f32 %v2000, %v2036
        %v2053 = vadd.f32 %v2001, %v2037
        %v2054 = vadd.f32 %v2002, %v2038
        %v2055 = vadd.f32 %v2003, %v2039
        %v2056 = vadd.f32 %v2004, %v2040
        %v2057 = vadd.f32 %v2005, %v2041
        %v2058 = vadd.f32 %v2006, %v2042
        %v2059 = vadd.f32 %v2007, %v2043
        %v2060 = vadd.f32 %v2008, %v2044
        %v2061 = vlaneseq
        %v2062 = vshrl.u32 %v2061, 7
        %v2063 = vsub.s32 4, %v2062
        %v2064 = vrot.slane %v407, %v2063
        %v2065 = vmul.f32 %v537, %v2064
        %v2066 = vmul.f32 %v538, %v2064
        %v2067 = vmul.f32 %v539, %v2064
        %v2068 = vmul.f32 %v540, %v2064
        %v2069 = vmul.f32 %v541, %v2064
        %v2070 = vmul.f32 %v542, %v2064
        %v2071 = vmul.f32 %v543, %v2064
        %v2072 = vmul.f32 %v544, %v2064
        %v2073 = vmul.f32 %v545, %v2064
        %v2074 = vmul.f32 %v546, %v2064
        %v2075 = vmul.f32 %v547, %v2064
        %v2076 = vmul.f32 %v548, %v2064
        %v2077 = vmul.f32 %v549, %v2064
        %v2078 = vmul.f32 %v550, %v2064
        %v2079 = vmul.f32 %v551, %v2064
        %v2080 = vmul.f32 %v552, %v2064
        %v2081 = vmul.f32 %v2065, %v1197
        %v2082 = vmul.f32 %v2066, %v1198
        %v2083 = vmul.f32 %v2067, %v1199
        %v2084 = vmul.f32 %v2068, %v1200
        %v2085 = vmul.f32 %v2069, %v1201
        %v2086 = vmul.f32 %v2070, %v1202
        %v2087 = vmul.f32 %v2071, %v1203
        %v2088 = vmul.f32 %v2072, %v1204
        %v2089 = vmul.f32 %v2073, %v1205
        %v2090 = vmul.f32 %v2074, %v1206
        %v2091 = vmul.f32 %v2075, %v1207
        %v2092 = vmul.f32 %v2076, %v1208
        %v2093 = vmul.f32 %v2077, %v1209
        %v2094 = vmul.f32 %v2078, %v1210
        %v2095 = vmul.f32 %v2079, %v1211
        %v2096 = vmul.f32 %v2080, %v1212
        %v2097 = vlaneseq
        %v2098 = vshrl.u32 %v2097, 7
        %v2099 = vsub.s32 5, %v2098
        %v2100 = vrot.slane %v407, %v2099
        %v2101 = vmul.f32 %v577, %v2100
        %v2102 = vmul.f32 %v578, %v2100
        %v2103 = vmul.f32 %v579, %v2100
        %v2104 = vmul.f32 %v580, %v2100
        %v2105 = vmul.f32 %v581, %v2100
        %v2106 = vmul.f32 %v582, %v2100
        %v2107 = vmul.f32 %v583, %v2100
        %v2108 = vmul.f32 %v584, %v2100
        %v2109 = vmul.f32 %v585, %v2100
        %v2110 = vmul.f32 %v586, %v2100
        %v2111 = vmul.f32 %v587, %v2100
        %v2112 = vmul.f32 %v588, %v2100
        %v2113 = vmul.f32 %v589, %v2100
        %v2114 = vmul.f32 %v590, %v2100
        %v2115 = vmul.f32 %v591, %v2100
        %v2116 = vmul.f32 %v592, %v2100
        %v2117 = vmul.f32 %v2101, %v1277
        %v2118 = vmul.f32 %v2102, %v1278
        %v2119 = vmul.f32 %v2103, %v1279
        %v2120 = vmul.f32 %v2104, %v1280
        %v2121 = vmul.f32 %v2105, %v1281
        %v2122 = vmul.f32 %v2106, %v1282
        %v2123 = vmul.f32 %v2107, %v1283
        %v2124 = vmul.f32 %v2108, %v1284
        %v2125 = vmul.f32 %v2109, %v1285
        %v2126 = vmul.f32 %v2110, %v1286
        %v2127 = vmul.f32 %v2111, %v1287
        %v2128 = vmul.f32 %v2112, %v1288
        %v2129 = vmul.f32 %v2113, %v1289
        %v2130 = vmul.f32 %v2114, %v1290
        %v2131 = vmul.f32 %v2115, %v1291
        %v2132 = vmul.f32 %v2116, %v1292
        %v2133 = vadd.f32 %v2081, %v2117
        %v2134 = vadd.f32 %v2082, %v2118
        %v2135 = vadd.f32 %v2083, %v2119
        %v2136 = vadd.f32 %v2084, %v2120
        %v2137 = vadd.f32 %v2085, %v2121
        %v2138 = vadd.f32 %v2086, %v2122
        %v2139 = vadd.f32 %v2087, %v2123
        %v2140 = vadd.f32 %v2088, %v2124
        %v2141 = vadd.f32 %v2089, %v2125
        %v2142 = vadd.f32 %v2090, %v2126
        %v2143 = vadd.f32 %v2091, %v2127
        %v2144 = vadd.f32 %v2092, %v2128
        %v2145 = vadd.f32 %v2093, %v2129
        %v2146 = vadd.f32 %v2094, %v2130
        %v2147 = vadd.f32 %v2095, %v2131
        %v2148 = vadd.f32 %v2096, %v2132
        %v2149 = vlaneseq
        %v2150 = vshrl.u32 %v2149, 7
        %v2151 = vsub.s32 6, %v2150
        %v2152 = vrot.slane %v407, %v2151
        %v2153 = vmul.f32 %v557, %v2152
        %v2154 = vmul.f32 %v558, %v2152
        %v2155 = vmul.f32 %v559, %v2152
        %v2156 = vmul.f32 %v560, %v2152
        %v2157 = vmul.f32 %v561, %v2152
        %v2158 = vmul.f32 %v562, %v2152
        %v2159 = vmul.f32 %v563, %v2152
        %v2160 = vmul.f32 %v564, %v2152
        %v2161 = vmul.f32 %v565, %v2152
        %v2162 = vmul.f32 %v566, %v2152
        %v2163 = vmul.f32 %v567, %v2152
        %v2164 = vmul.f32 %v568, %v2152
        %v2165 = vmul.f32 %v569, %v2152
        %v2166 = vmul.f32 %v570, %v2152
        %v2167 = vmul.f32 %v571, %v2152
        %v2168 = vmul.f32 %v572, %v2152
        %v2169 = vmul.f32 %v2153, %v1277
        %v2170 = vmul.f32 %v2154, %v1278
        %v2171 = vmul.f32 %v2155, %v1279
        %v2172 = vmul.f32 %v2156, %v1280
        %v2173 = vmul.f32 %v2157, %v1281
        %v2174 = vmul.f32 %v2158, %v1282
        %v2175 = vmul.f32 %v2159, %v1283
        %v2176 = vmul.f32 %v2160, %v1284
        %v2177 = vmul.f32 %v2161, %v1285
        %v2178 = vmul.f32 %v2162, %v1286
        %v2179 = vmul.f32 %v2163, %v1287
        %v2180 = vmul.f32 %v2164, %v1288
        %v2181 = vmul.f32 %v2165, %v1289
        %v2182 = vmul.f32 %v2166, %v1290
        %v2183 = vmul.f32 %v2167, %v1291
        %v2184 = vmul.f32 %v2168, %v1292
        %v2185 = vlaneseq
        %v2186 = vshrl.u32 %v2185, 7
        %v2187 = vsub.s32 7, %v2186
        %v2188 = vrot.slane %v407, %v2187
        %v2189 = vmul.f32 %v597, %v2188
        %v2190 = vmul.f32 %v598, %v2188
        %v2191 = vmul.f32 %v599, %v2188
        %v2192 = vmul.f32 %v600, %v2188
        %v2193 = vmul.f32 %v601, %v2188
        %v2194 = vmul.f32 %v602, %v2188
        %v2195 = vmul.f32 %v603, %v2188
        %v2196 = vmul.f32 %v604, %v2188
        %v2197 = vmul.f32 %v605, %v2188
        %v2198 = vmul.f32 %v606, %v2188
        %v2199 = vmul.f32 %v607, %v2188
        %v2200 = vmul.f32 %v608, %v2188
        %v2201 = vmul.f32 %v609, %v2188
        %v2202 = vmul.f32 %v610, %v2188
        %v2203 = vmul.f32 %v611, %v2188
        %v2204 = vmul.f32 %v612, %v2188
        %v2205 = vmul.f32 %v2189, %v1357
        %v2206 = vmul.f32 %v2190, %v1358
        %v2207 = vmul.f32 %v2191, %v1359
        %v2208 = vmul.f32 %v2192, %v1360
        %v2209 = vmul.f32 %v2193, %v1361
        %v2210 = vmul.f32 %v2194, %v1362
        %v2211 = vmul.f32 %v2195, %v1363
        %v2212 = vmul.f32 %v2196, %v1364
        %v2213 = vmul.f32 %v2197, %v1365
        %v2214 = vmul.f32 %v2198, %v1366
        %v2215 = vmul.f32 %v2199, %v1367
        %v2216 = vmul.f32 %v2200, %v1368
        %v2217 = vmul.f32 %v2201, %v1369
        %v2218 = vmul.f32 %v2202, %v1370
        %v2219 = vmul.f32 %v2203, %v1371
        %v2220 = vmul.f32 %v2204, %v1372
        %v2221 = vadd.f32 %v2169, %v2205
        %v2222 = vadd.f32 %v2170, %v2206
        %v2223 = vadd.f32 %v2171, %v2207
        %v2224 = vadd.f32 %v2172, %v2208
        %v2225 = vadd.f32 %v2173, %v2209
        %v2226 = vadd.f32 %v2174, %v2210
        %v2227 = vadd.f32 %v2175, %v2211
        %v2228 = vadd.f32 %v2176, %v2212
        %v2229 = vadd.f32 %v2177, %v2213
        %v2230 = vadd.f32 %v2178, %v2214
        %v2231 = vadd.f32 %v2179, %v2215
        %v2232 = vadd.f32 %v2180, %v2216
        %v2233 = vadd.f32 %v2181, %v2217
        %v2234 = vadd.f32 %v2182, %v2218
        %v2235 = vadd.f32 %v2183, %v2219
        %v2236 = vadd.f32 %v2184, %v2220
        %v2237 = vlaneseq
        %v2238 = vshrl.u32 %v2237, 7
        %v2239 = vsub.s32 0, %v2238
        %v2240 = vrot.slane %v408, %v2239
        %v2241 = vmul.f32 %v577, %v2240
        %v2242 = vmul.f32 %v578, %v2240
        %v2243 = vmul.f32 %v579, %v2240
        %v2244 = vmul.f32 %v580, %v2240
        %v2245 = vmul.f32 %v581, %v2240
        %v2246 = vmul.f32 %v582, %v2240
        %v2247 = vmul.f32 %v583, %v2240
        %v2248 = vmul.f32 %v584, %v2240
        %v2249 = vmul.f32 %v585, %v2240
        %v2250 = vmul.f32 %v586, %v2240
        %v2251 = vmul.f32 %v587, %v2240
        %v2252 = vmul.f32 %v588, %v2240
        %v2253 = vmul.f32 %v589, %v2240
        %v2254 = vmul.f32 %v590, %v2240
        %v2255 = vmul.f32 %v591, %v2240
        %v2256 = vmul.f32 %v592, %v2240
        %v2257 = vmul.f32 %v2241, %v1357
        %v2258 = vmul.f32 %v2242, %v1358
        %v2259 = vmul.f32 %v2243, %v1359
        %v2260 = vmul.f32 %v2244, %v1360
        %v2261 = vmul.f32 %v2245, %v1361
        %v2262 = vmul.f32 %v2246, %v1362
        %v2263 = vmul.f32 %v2247, %v1363
        %v2264 = vmul.f32 %v2248, %v1364
        %v2265 = vmul.f32 %v2249, %v1365
        %v2266 = vmul.f32 %v2250, %v1366
        %v2267 = vmul.f32 %v2251, %v1367
        %v2268 = vmul.f32 %v2252, %v1368
        %v2269 = vmul.f32 %v2253, %v1369
        %v2270 = vmul.f32 %v2254, %v1370
        %v2271 = vmul.f32 %v2255, %v1371
        %v2272 = vmul.f32 %v2256, %v1372
        %v2273 = vlaneseq
        %v2274 = vshrl.u32 %v2273, 7
        %v2275 = vsub.s32 1, %v2274
        %v2276 = vrot.slane %v408, %v2275
        %v2277 = vmul.f32 %v617, %v2276
        %v2278 = vmul.f32 %v618, %v2276
        %v2279 = vmul.f32 %v619, %v2276
        %v2280 = vmul.f32 %v620, %v2276
        %v2281 = vmul.f32 %v621, %v2276
        %v2282 = vmul.f32 %v622, %v2276
        %v2283 = vmul.f32 %v623, %v2276
        %v2284 = vmul.f32 %v624, %v2276
        %v2285 = vmul.f32 %v625, %v2276
        %v2286 = vmul.f32 %v626, %v2276
        %v2287 = vmul.f32 %v627, %v2276
        %v2288 = vmul.f32 %v628, %v2276
        %v2289 = vmul.f32 %v629, %v2276
        %v2290 = vmul.f32 %v630, %v2276
        %v2291 = vmul.f32 %v631, %v2276
        %v2292 = vmul.f32 %v632, %v2276
        %v2293 = vmul.f32 %v2277, %v1437
        %v2294 = vmul.f32 %v2278, %v1438
        %v2295 = vmul.f32 %v2279, %v1439
        %v2296 = vmul.f32 %v2280, %v1440
        %v2297 = vmul.f32 %v2281, %v1441
        %v2298 = vmul.f32 %v2282, %v1442
        %v2299 = vmul.f32 %v2283, %v1443
        %v2300 = vmul.f32 %v2284, %v1444
        %v2301 = vmul.f32 %v2285, %v1445
        %v2302 = vmul.f32 %v2286, %v1446
        %v2303 = vmul.f32 %v2287, %v1447
        %v2304 = vmul.f32 %v2288, %v1448
        %v2305 = vmul.f32 %v2289, %v1449
        %v2306 = vmul.f32 %v2290, %v1450
        %v2307 = vmul.f32 %v2291, %v1451
        %v2308 = vmul.f32 %v2292, %v1452
        %v2309 = vadd.f32 %v2257, %v2293
        %v2310 = vadd.f32 %v2258, %v2294
        %v2311 = vadd.f32 %v2259, %v2295
        %v2312 = vadd.f32 %v2260, %v2296
        %v2313 = vadd.f32 %v2261, %v2297
        %v2314 = vadd.f32 %v2262, %v2298
        %v2315 = vadd.f32 %v2263, %v2299
        %v2316 = vadd.f32 %v2264, %v2300
        %v2317 = vadd.f32 %v2265, %v2301
        %v2318 = vadd.f32 %v2266, %v2302
        %v2319 = vadd.f32 %v2267, %v2303
        %v2320 = vadd.f32 %v2268, %v2304
        %v2321 = vadd.f32 %v2269, %v2305
        %v2322 = vadd.f32 %v2270, %v2306
        %v2323 = vadd.f32 %v2271, %v2307
        %v2324 = vadd.f32 %v2272, %v2308
        %v2325 = vlaneseq
        %v2326 = vshrl.u32 %v2325, 7
        %v2327 = vsub.s32 2, %v2326
        %v2328 = vrot.slane %v408, %v2327
        %v2329 = vmul.f32 %v597, %v2328
        %v2330 = vmul.f32 %v598, %v2328
        %v2331 = vmul.f32 %v599, %v2328
        %v2332 = vmul.f32 %v600, %v2328
        %v2333 = vmul.f32 %v601, %v2328
        %v2334 = vmul.f32 %v602, %v2328
        %v2335 = vmul.f32 %v603, %v2328
        %v2336 = vmul.f32 %v604, %v2328
        %v2337 = vmul.f32 %v605, %v2328
        %v2338 = vmul.f32 %v606, %v2328
        %v2339 = vmul.f32 %v607, %v2328
        %v2340 = vmul.f32 %v608, %v2328
        %v2341 = vmul.f32 %v609, %v2328
        %v2342 = vmul.f32 %v610, %v2328
        %v2343 = vmul.f32 %v611, %v2328
        %v2344 = vmul.f32 %v612, %v2328
        %v2345 = vmul.f32 %v2329, %v1437
        %v2346 = vmul.f32 %v2330, %v1438
        %v2347 = vmul.f32 %v2331, %v1439
        %v2348 = vmul.f32 %v2332, %v1440
        %v2349 = vmul.f32 %v2333, %v1441
        %v2350 = vmul.f32 %v2334, %v1442
        %v2351 = vmul.f32 %v2335, %v1443
        %v2352 = vmul.f32 %v2336, %v1444
        %v2353 = vmul.f32 %v2337, %v1445
        %v2354 = vmul.f32 %v2338, %v1446
        %v2355 = vmul.f32 %v2339, %v1447
        %v2356 = vmul.f32 %v2340, %v1448
        %v2357 = vmul.f32 %v2341, %v1449
        %v2358 = vmul.f32 %v2342, %v1450
        %v2359 = vmul.f32 %v2343, %v1451
        %v2360 = vmul.f32 %v2344, %v1452
        %v2361 = vlaneseq
        %v2362 = vshrl.u32 %v2361, 7
        %v2363 = vsub.s32 3, %v2362
        %v2364 = vrot.slane %v408, %v2363
        %v2365 = vmul.f32 %v637, %v2364
        %v2366 = vmul.f32 %v638, %v2364
        %v2367 = vmul.f32 %v639, %v2364
        %v2368 = vmul.f32 %v640, %v2364
        %v2369 = vmul.f32 %v641, %v2364
        %v2370 = vmul.f32 %v642, %v2364
        %v2371 = vmul.f32 %v643, %v2364
        %v2372 = vmul.f32 %v644, %v2364
        %v2373 = vmul.f32 %v645, %v2364
        %v2374 = vmul.f32 %v646, %v2364
        %v2375 = vmul.f32 %v647, %v2364
        %v2376 = vmul.f32 %v648, %v2364
        %v2377 = vmul.f32 %v649, %v2364
        %v2378 = vmul.f32 %v650, %v2364
        %v2379 = vmul.f32 %v651, %v2364
        %v2380 = vmul.f32 %v652, %v2364
        %v2381 = vmul.f32 %v2365, %v1517
        %v2382 = vmul.f32 %v2366, %v1518
        %v2383 = vmul.f32 %v2367, %v1519
        %v2384 = vmul.f32 %v2368, %v1520
        %v2385 = vmul.f32 %v2369, %v1521
        %v2386 = vmul.f32 %v2370, %v1522
        %v2387 = vmul.f32 %v2371, %v1523
        %v2388 = vmul.f32 %v2372, %v1524
        %v2389 = vmul.f32 %v2373, %v1525
        %v2390 = vmul.f32 %v2374, %v1526
        %v2391 = vmul.f32 %v2375, %v1527
        %v2392 = vmul.f32 %v2376, %v1528
        %v2393 = vmul.f32 %v2377, %v1529
        %v2394 = vmul.f32 %v2378, %v1530
        %v2395 = vmul.f32 %v2379, %v1531
        %v2396 = vmul.f32 %v2380, %v1532
        %v2397 = vadd.f32 %v2345, %v2381
        %v2398 = vadd.f32 %v2346, %v2382
        %v2399 = vadd.f32 %v2347, %v2383
        %v2400 = vadd.f32 %v2348, %v2384
        %v2401 = vadd.f32 %v2349, %v2385
        %v2402 = vadd.f32 %v2350, %v2386
        %v2403 = vadd.f32 %v2351, %v2387
        %v2404 = vadd.f32 %v2352, %v2388
        %v2405 = vadd.f32 %v2353, %v2389
        %v2406 = vadd.f32 %v2354, %v2390
        %v2407 = vadd.f32 %v2355, %v2391
        %v2408 = vadd.f32 %v2356, %v2392
        %v2409 = vadd.f32 %v2357, %v2393
        %v2410 = vadd.f32 %v2358, %v2394
        %v2411 = vadd.f32 %v2359, %v2395
        %v2412 = vadd.f32 %v2360, %v2396
        %v2413 = vlaneseq
        %v2414 = vshrl.u32 %v2413, 7
        %v2415 = vsub.s32 4, %v2414
        %v2416 = vrot.slane %v408, %v2415
        %v2417 = vmul.f32 %v417, %v2416
        %v2418 = vmul.f32 %v418, %v2416
        %v2419 = vmul.f32 %v419, %v2416
        %v2420 = vmul.f32 %v420, %v2416
        %v2421 = vmul.f32 %v421, %v2416
        %v2422 = vmul.f32 %v422, %v2416
        %v2423 = vmul.f32 %v423, %v2416
        %v2424 = vmul.f32 %v424, %v2416
        %v2425 = vmul.f32 %v425, %v2416
        %v2426 = vmul.f32 %v426, %v2416
        %v2427 = vmul.f32 %v427, %v2416
        %v2428 = vmul.f32 %v428, %v2416
        %v2429 = vmul.f32 %v429, %v2416
        %v2430 = vmul.f32 %v430, %v2416
        %v2431 = vmul.f32 %v431, %v2416
        %v2432 = vmul.f32 %v432, %v2416
        %v2433 = vmul.f32 %v2417, %v1605
        %v2434 = vmul.f32 %v2418, %v1606
        %v2435 = vmul.f32 %v2419, %v1607
        %v2436 = vmul.f32 %v2420, %v1608
        %v2437 = vmul.f32 %v2421, %v1609
        %v2438 = vmul.f32 %v2422, %v1610
        %v2439 = vmul.f32 %v2423, %v1611
        %v2440 = vmul.f32 %v2424, %v1612
        %v2441 = vmul.f32 %v2425, %v1613
        %v2442 = vmul.f32 %v2426, %v1614
        %v2443 = vmul.f32 %v2427, %v1615
        %v2444 = vmul.f32 %v2428, %v1616
        %v2445 = vmul.f32 %v2429, %v1617
        %v2446 = vmul.f32 %v2430, %v1618
        %v2447 = vmul.f32 %v2431, %v1619
        %v2448 = vmul.f32 %v2432, %v1620
        %v2449 = vlaneseq
        %v2450 = vshrl.u32 %v2449, 7
        %v2451 = vsub.s32 5, %v2450
        %v2452 = vrot.slane %v408, %v2451
        %v2453 = vmul.f32 %v477, %v2452
        %v2454 = vmul.f32 %v478, %v2452
        %v2455 = vmul.f32 %v479, %v2452
        %v2456 = vmul.f32 %v480, %v2452
        %v2457 = vmul.f32 %v481, %v2452
        %v2458 = vmul.f32 %v482, %v2452
        %v2459 = vmul.f32 %v483, %v2452
        %v2460 = vmul.f32 %v484, %v2452
        %v2461 = vmul.f32 %v485, %v2452
        %v2462 = vmul.f32 %v486, %v2452
        %v2463 = vmul.f32 %v487, %v2452
        %v2464 = vmul.f32 %v488, %v2452
        %v2465 = vmul.f32 %v489, %v2452
        %v2466 = vmul.f32 %v490, %v2452
        %v2467 = vmul.f32 %v491, %v2452
        %v2468 = vmul.f32 %v492, %v2452
        %v2469 = vmul.f32 %v2453, %v1693
        %v2470 = vmul.f32 %v2454, %v1694
        %v2471 = vmul.f32 %v2455, %v1695
        %v2472 = vmul.f32 %v2456, %v1696
        %v2473 = vmul.f32 %v2457, %v1697
        %v2474 = vmul.f32 %v2458, %v1698
        %v2475 = vmul.f32 %v2459, %v1699
        %v2476 = vmul.f32 %v2460, %v1700
        %v2477 = vmul.f32 %v2461, %v1701
        %v2478 = vmul.f32 %v2462, %v1702
        %v2479 = vmul.f32 %v2463, %v1703
        %v2480 = vmul.f32 %v2464, %v1704
        %v2481 = vmul.f32 %v2465, %v1705
        %v2482 = vmul.f32 %v2466, %v1706
        %v2483 = vmul.f32 %v2467, %v1707
        %v2484 = vmul.f32 %v2468, %v1708
        %v2485 = vadd.f32 %v2433, %v2469
        %v2486 = vadd.f32 %v2434, %v2470
        %v2487 = vadd.f32 %v2435, %v2471
        %v2488 = vadd.f32 %v2436, %v2472
        %v2489 = vadd.f32 %v2437, %v2473
        %v2490 = vadd.f32 %v2438, %v2474
        %v2491 = vadd.f32 %v2439, %v2475
        %v2492 = vadd.f32 %v2440, %v2476
        %v2493 = vadd.f32 %v2441, %v2477
        %v2494 = vadd.f32 %v2442, %v2478
        %v2495 = vadd.f32 %v2443, %v2479
        %v2496 = vadd.f32 %v2444, %v2480
        %v2497 = vadd.f32 %v2445, %v2481
        %v2498 = vadd.f32 %v2446, %v2482
        %v2499 = vadd.f32 %v2447, %v2483
        %v2500 = vadd.f32 %v2448, %v2484
        %v2501 = vlaneseq
        %v2502 = vshrl.u32 %v2501, 7
        %v2503 = vsub.s32 6, %v2502
        %v2504 = vrot.slane %v408, %v2503
        %v2505 = vmul.f32 %v437, %v2504
        %v2506 = vmul.f32 %v438, %v2504
        %v2507 = vmul.f32 %v439, %v2504
        %v2508 = vmul.f32 %v440, %v2504
        %v2509 = vmul.f32 %v441, %v2504
        %v2510 = vmul.f32 %v442, %v2504
        %v2511 = vmul.f32 %v443, %v2504
        %v2512 = vmul.f32 %v444, %v2504
        %v2513 = vmul.f32 %v445, %v2504
        %v2514 = vmul.f32 %v446, %v2504
        %v2515 = vmul.f32 %v447, %v2504
        %v2516 = vmul.f32 %v448, %v2504
        %v2517 = vmul.f32 %v449, %v2504
        %v2518 = vmul.f32 %v450, %v2504
        %v2519 = vmul.f32 %v451, %v2504
        %v2520 = vmul.f32 %v452, %v2504
        %v2521 = vmul.f32 %v2505, %v1693
        %v2522 = vmul.f32 %v2506, %v1694
        %v2523 = vmul.f32 %v2507, %v1695
        %v2524 = vmul.f32 %v2508, %v1696
        %v2525 = vmul.f32 %v2509, %v1697
        %v2526 = vmul.f32 %v2510, %v1698
        %v2527 = vmul.f32 %v2511, %v1699
        %v2528 = vmul.f32 %v2512, %v1700
        %v2529 = vmul.f32 %v2513, %v1701
        %v2530 = vmul.f32 %v2514, %v1702
        %v2531 = vmul.f32 %v2515, %v1703
        %v2532 = vmul.f32 %v2516, %v1704
        %v2533 = vmul.f32 %v2517, %v1705
        %v2534 = vmul.f32 %v2518, %v1706
        %v2535 = vmul.f32 %v2519, %v1707
        %v2536 = vmul.f32 %v2520, %v1708
        %v2537 = vlaneseq
        %v2538 = vshrl.u32 %v2537, 7
        %v2539 = vsub.s32 7, %v2538
        %v2540 = vrot.slane %v408, %v2539
        %v2541 = vmul.f32 %v497, %v2540
        %v2542 = vmul.f32 %v498, %v2540
        %v2543 = vmul.f32 %v499, %v2540
        %v2544 = vmul.f32 %v500, %v2540
        %v2545 = vmul.f32 %v501, %v2540
        %v2546 = vmul.f32 %v502, %v2540
        %v2547 = vmul.f32 %v503, %v2540
        %v2548 = vmul.f32 %v504, %v2540
        %v2549 = vmul.f32 %v505, %v2540
        %v2550 = vmul.f32 %v506, %v2540
        %v2551 = vmul.f32 %v507, %v2540
        %v2552 = vmul.f32 %v508, %v2540
        %v2553 = vmul.f32 %v509, %v2540
        %v2554 = vmul.f32 %v510, %v2540
        %v2555 = vmul.f32 %v511, %v2540
        %v2556 = vmul.f32 %v512, %v2540
        %v2557 = vmul.f32 %v2541, %v1781
        %v2558 = vmul.f32 %v2542, %v1782
        %v2559 = vmul.f32 %v2543, %v1783
        %v2560 = vmul.f32 %v2544, %v1784
        %v2561 = vmul.f32 %v2545, %v1785
        %v2562 = vmul.f32 %v2546, %v1786
        %v2563 = vmul.f32 %v2547, %v1787
        %v2564 = vmul.f32 %v2548, %v1788
        %v2565 = vmul.f32 %v2549, %v1789
        %v2566 = vmul.f32 %v2550, %v1790
        %v2567 = vmul.f32 %v2551, %v1791
        %v2568 = vmul.f32 %v2552, %v1792
        %v2569 = vmul.f32 %v2553, %v1793
        %v2570 = vmul.f32 %v2554, %v1794
        %v2571 = vmul.f32 %v2555, %v1795
        %v2572 = vmul.f32 %v2556, %v1796
        %v2573 = vadd.f32 %v2521, %v2557
        %v2574 = vadd.f32 %v2522, %v2558
        %v2575 = vadd.f32 %v2523, %v2559
        %v2576 = vadd.f32 %v2524, %v2560
        %v2577 = vadd.f32 %v2525, %v2561
        %v2578 = vadd.f32 %v2526, %v2562
        %v2579 = vadd.f32 %v2527, %v2563
        %v2580 = vadd.f32 %v2528, %v2564
        %v2581 = vadd.f32 %v2529, %v2565
        %v2582 = vadd.f32 %v2530, %v2566
        %v2583 = vadd.f32 %v2531, %v2567
        %v2584 = vadd.f32 %v2532, %v2568
        %v2585 = vadd.f32 %v2533, %v2569
        %v2586 = vadd.f32 %v2534, %v2570
        %v2587 = vadd.f32 %v2535, %v2571
        %v2588 = vadd.f32 %v2536, %v2572
        %v2589 = vlaneseq
        %v2590 = vshrl.u32 %v2589, 7
        %v2591 = vsub.s32 0, %v2590
        %v2592 = vrot.slane %v409, %v2591
        %v2593 = vmul.f32 %v457, %v2592
        %v2594 = vmul.f32 %v458, %v2592
        %v2595 = vmul.f32 %v459, %v2592
        %v2596 = vmul.f32 %v460, %v2592
        %v2597 = vmul.f32 %v461, %v2592
        %v2598 = vmul.f32 %v462, %v2592
        %v2599 = vmul.f32 %v463, %v2592
        %v2600 = vmul.f32 %v464, %v2592
        %v2601 = vmul.f32 %v465, %v2592
        %v2602 = vmul.f32 %v466, %v2592
        %v2603 = vmul.f32 %v467, %v2592
        %v2604 = vmul.f32 %v468, %v2592
        %v2605 = vmul.f32 %v469, %v2592
        %v2606 = vmul.f32 %v470, %v2592
        %v2607 = vmul.f32 %v471, %v2592
        %v2608 = vmul.f32 %v472, %v2592
        %v2609 = vmul.f32 %v2593, %v1781
        %v2610 = vmul.f32 %v2594, %v1782
        %v2611 = vmul.f32 %v2595, %v1783
        %v2612 = vmul.f32 %v2596, %v1784
        %v2613 = vmul.f32 %v2597, %v1785
        %v2614 = vmul.f32 %v2598, %v1786
        %v2615 = vmul.f32 %v2599, %v1787
        %v2616 = vmul.f32 %v2600, %v1788
        %v2617 = vmul.f32 %v2601, %v1789
        %v2618 = vmul.f32 %v2602, %v1790
        %v2619 = vmul.f32 %v2603, %v1791
        %v2620 = vmul.f32 %v2604, %v1792
        %v2621 = vmul.f32 %v2605, %v1793
        %v2622 = vmul.f32 %v2606, %v1794
        %v2623 = vmul.f32 %v2607, %v1795
        %v2624 = vmul.f32 %v2608, %v1796
        %v2625 = vlaneseq
        %v2626 = vshrl.u32 %v2625, 7
        %v2627 = vsub.s32 1, %v2626
        %v2628 = vrot.slane %v409, %v2627
        %v2629 = vmul.f32 %v517, %v2628
        %v2630 = vmul.f32 %v518, %v2628
        %v2631 = vmul.f32 %v519, %v2628
        %v2632 = vmul.f32 %v520, %v2628
        %v2633 = vmul.f32 %v521, %v2628
        %v2634 = vmul.f32 %v522, %v2628
        %v2635 = vmul.f32 %v523, %v2628
        %v2636 = vmul.f32 %v524, %v2628
        %v2637 = vmul.f32 %v525, %v2628
        %v2638 = vmul.f32 %v526, %v2628
        %v2639 = vmul.f32 %v527, %v2628
        %v2640 = vmul.f32 %v528, %v2628
        %v2641 = vmul.f32 %v529, %v2628
        %v2642 = vmul.f32 %v530, %v2628
        %v2643 = vmul.f32 %v531, %v2628
        %v2644 = vmul.f32 %v532, %v2628
        %v2645 = vmul.f32 %v2629, %v1869
        %v2646 = vmul.f32 %v2630, %v1870
        %v2647 = vmul.f32 %v2631, %v1871
        %v2648 = vmul.f32 %v2632, %v1872
        %v2649 = vmul.f32 %v2633, %v1873
        %v2650 = vmul.f32 %v2634, %v1874
        %v2651 = vmul.f32 %v2635, %v1875
        %v2652 = vmul.f32 %v2636, %v1876
        %v2653 = vmul.f32 %v2637, %v1877
        %v2654 = vmul.f32 %v2638, %v1878
        %v2655 = vmul.f32 %v2639, %v1879
        %v2656 = vmul.f32 %v2640, %v1880
        %v2657 = vmul.f32 %v2641, %v1881
        %v2658 = vmul.f32 %v2642, %v1882
        %v2659 = vmul.f32 %v2643, %v1883
        %v2660 = vmul.f32 %v2644, %v1884
        %v2661 = vadd.f32 %v2609, %v2645
        %v2662 = vadd.f32 %v2610, %v2646
        %v2663 = vadd.f32 %v2611, %v2647
        %v2664 = vadd.f32 %v2612, %v2648
        %v2665 = vadd.f32 %v2613, %v2649
        %v2666 = vadd.f32 %v2614, %v2650
        %v2667 = vadd.f32 %v2615, %v2651
        %v2668 = vadd.f32 %v2616, %v2652
        %v2669 = vadd.f32 %v2617, %v2653
        %v2670 = vadd.f32 %v2618, %v2654
        %v2671 = vadd.f32 %v2619, %v2655
        %v2672 = vadd.f32 %v2620, %v2656
        %v2673 = vadd.f32 %v2621, %v2657
        %v2674 = vadd.f32 %v2622, %v2658
        %v2675 = vadd.f32 %v2623, %v2659
        %v2676 = vadd.f32 %v2624, %v2660
        %v2677 = vlaneseq
        %v2678 = vshrl.u32 %v2677, 7
        %v2679 = vsub.s32 2, %v2678
        %v2680 = vrot.slane %v409, %v2679
        %v2681 = vmul.f32 %v477, %v2680
        %v2682 = vmul.f32 %v478, %v2680
        %v2683 = vmul.f32 %v479, %v2680
        %v2684 = vmul.f32 %v480, %v2680
        %v2685 = vmul.f32 %v481, %v2680
        %v2686 = vmul.f32 %v482, %v2680
        %v2687 = vmul.f32 %v483, %v2680
        %v2688 = vmul.f32 %v484, %v2680
        %v2689 = vmul.f32 %v485, %v2680
        %v2690 = vmul.f32 %v486, %v2680
        %v2691 = vmul.f32 %v487, %v2680
        %v2692 = vmul.f32 %v488, %v2680
        %v2693 = vmul.f32 %v489, %v2680
        %v2694 = vmul.f32 %v490, %v2680
        %v2695 = vmul.f32 %v491, %v2680
        %v2696 = vmul.f32 %v492, %v2680
        %v2697 = vmul.f32 %v2681, %v1869
        %v2698 = vmul.f32 %v2682, %v1870
        %v2699 = vmul.f32 %v2683, %v1871
        %v2700 = vmul.f32 %v2684, %v1872
        %v2701 = vmul.f32 %v2685, %v1873
        %v2702 = vmul.f32 %v2686, %v1874
        %v2703 = vmul.f32 %v2687, %v1875
        %v2704 = vmul.f32 %v2688, %v1876
        %v2705 = vmul.f32 %v2689, %v1877
        %v2706 = vmul.f32 %v2690, %v1878
        %v2707 = vmul.f32 %v2691, %v1879
        %v2708 = vmul.f32 %v2692, %v1880
        %v2709 = vmul.f32 %v2693, %v1881
        %v2710 = vmul.f32 %v2694, %v1882
        %v2711 = vmul.f32 %v2695, %v1883
        %v2712 = vmul.f32 %v2696, %v1884
        %v2713 = vlaneseq
        %v2714 = vshrl.u32 %v2713, 7
        %v2715 = vsub.s32 3, %v2714
        %v2716 = vrot.slane %v409, %v2715
        %v2717 = vmul.f32 %v537, %v2716
        %v2718 = vmul.f32 %v538, %v2716
        %v2719 = vmul.f32 %v539, %v2716
        %v2720 = vmul.f32 %v540, %v2716
        %v2721 = vmul.f32 %v541, %v2716
        %v2722 = vmul.f32 %v542, %v2716
        %v2723 = vmul.f32 %v543, %v2716
        %v2724 = vmul.f32 %v544, %v2716
        %v2725 = vmul.f32 %v545, %v2716
        %v2726 = vmul.f32 %v546, %v2716
        %v2727 = vmul.f32 %v547, %v2716
        %v2728 = vmul.f32 %v548, %v2716
        %v2729 = vmul.f32 %v549, %v2716
        %v2730 = vmul.f32 %v550, %v2716
        %v2731 = vmul.f32 %v551, %v2716
        %v2732 = vmul.f32 %v552, %v2716
        %v2733 = vmul.f32 %v2717, %v1957
        %v2734 = vmul.f32 %v2718, %v1958
        %v2735 = vmul.f32 %v2719, %v1959
        %v2736 = vmul.f32 %v2720, %v1960
        %v2737 = vmul.f32 %v2721, %v1961
        %v2738 = vmul.f32 %v2722, %v1962
        %v2739 = vmul.f32 %v2723, %v1963
        %v2740 = vmul.f32 %v2724, %v1964
        %v2741 = vmul.f32 %v2725, %v1965
        %v2742 = vmul.f32 %v2726, %v1966
        %v2743 = vmul.f32 %v2727, %v1967
        %v2744 = vmul.f32 %v2728, %v1968
        %v2745 = vmul.f32 %v2729, %v1969
        %v2746 = vmul.f32 %v2730, %v1970
        %v2747 = vmul.f32 %v2731, %v1971
        %v2748 = vmul.f32 %v2732, %v1972
        %v2749 = vadd.f32 %v2697, %v2733
        %v2750 = vadd.f32 %v2698, %v2734
        %v2751 = vadd.f32 %v2699, %v2735
        %v2752 = vadd.f32 %v2700, %v2736
        %v2753 = vadd.f32 %v2701, %v2737
        %v2754 = vadd.f32 %v2702, %v2738
        %v2755 = vadd.f32 %v2703, %v2739
        %v2756 = vadd.f32 %v2704, %v2740
        %v2757 = vadd.f32 %v2705, %v2741
        %v2758 = vadd.f32 %v2706, %v2742
        %v2759 = vadd.f32 %v2707, %v2743
        %v2760 = vadd.f32 %v2708, %v2744
        %v2761 = vadd.f32 %v2709, %v2745
        %v2762 = vadd.f32 %v2710, %v2746
        %v2763 = vadd.f32 %v2711, %v2747
        %v2764 = vadd.f32 %v2712, %v2748
        %v2765 = vlaneseq
        %v2766 = vshrl.u32 %v2765, 7
        %v2767 = vsub.s32 4, %v2766
        %v2768 = vrot.slane %v409, %v2767
        %v2769 = vmul.f32 %v497, %v2768
        %v2770 = vmul.f32 %v498, %v2768
        %v2771 = vmul.f32 %v499, %v2768
        %v2772 = vmul.f32 %v500, %v2768
        %v2773 = vmul.f32 %v501, %v2768
        %v2774 = vmul.f32 %v502, %v2768
        %v2775 = vmul.f32 %v503, %v2768
        %v2776 = vmul.f32 %v504, %v2768
        %v2777 = vmul.f32 %v505, %v2768
        %v2778 = vmul.f32 %v506, %v2768
        %v2779 = vmul.f32 %v507, %v2768
        %v2780 = vmul.f32 %v508, %v2768
        %v2781 = vmul.f32 %v509, %v2768
        %v2782 = vmul.f32 %v510, %v2768
        %v2783 = vmul.f32 %v511, %v2768
        %v2784 = vmul.f32 %v512, %v2768
        %v2785 = vmul.f32 %v2769, %v1957
        %v2786 = vmul.f32 %v2770, %v1958
        %v2787 = vmul.f32 %v2771, %v1959
        %v2788 = vmul.f32 %v2772, %v1960
        %v2789 = vmul.f32 %v2773, %v1961
        %v2790 = vmul.f32 %v2774, %v1962
        %v2791 = vmul.f32 %v2775, %v1963
        %v2792 = vmul.f32 %v2776, %v1964
        %v2793 = vmul.f32 %v2777, %v1965
        %v2794 = vmul.f32 %v2778, %v1966
        %v2795 = vmul.f32 %v2779, %v1967
        %v2796 = vmul.f32 %v2780, %v1968
        %v2797 = vmul.f32 %v2781, %v1969
        %v2798 = vmul.f32 %v2782, %v1970
        %v2799 = vmul.f32 %v2783, %v1971
        %v2800 = vmul.f32 %v2784, %v1972
        %v2801 = vlaneseq
        %v2802 = vshrl.u32 %v2801, 7
        %v2803 = vsub.s32 5, %v2802
        %v2804 = vrot.slane %v409, %v2803
        %v2805 = vmul.f32 %v557, %v2804
        %v2806 = vmul.f32 %v558, %v2804
        %v2807 = vmul.f32 %v559, %v2804
        %v2808 = vmul.f32 %v560, %v2804
        %v2809 = vmul.f32 %v561, %v2804
        %v2810 = vmul.f32 %v562, %v2804
        %v2811 = vmul.f32 %v563, %v2804
        %v2812 = vmul.f32 %v564, %v2804
        %v2813 = vmul.f32 %v565, %v2804
        %v2814 = vmul.f32 %v566, %v2804
        %v2815 = vmul.f32 %v567, %v2804
        %v2816 = vmul.f32 %v568, %v2804
        %v2817 = vmul.f32 %v569, %v2804
        %v2818 = vmul.f32 %v570, %v2804
        %v2819 = vmul.f32 %v571, %v2804
        %v2820 = vmul.f32 %v572, %v2804
        %v2821 = vmul.f32 %v2805, %v2045
        %v2822 = vmul.f32 %v2806, %v2046
        %v2823 = vmul.f32 %v2807, %v2047
        %v2824 = vmul.f32 %v2808, %v2048
        %v2825 = vmul.f32 %v2809, %v2049
        %v2826 = vmul.f32 %v2810, %v2050
        %v2827 = vmul.f32 %v2811, %v2051
        %v2828 = vmul.f32 %v2812, %v2052
        %v2829 = vmul.f32 %v2813, %v2053
        %v2830 = vmul.f32 %v2814, %v2054
        %v2831 = vmul.f32 %v2815, %v2055
        %v2832 = vmul.f32 %v2816, %v2056
        %v2833 = vmul.f32 %v2817, %v2057
        %v2834 = vmul.f32 %v2818, %v2058
        %v2835 = vmul.f32 %v2819, %v2059
        %v2836 = vmul.f32 %v2820, %v2060
        %v2837 = vadd.f32 %v2785, %v2821
        %v2838 = vadd.f32 %v2786, %v2822
        %v2839 = vadd.f32 %v2787, %v2823
        %v2840 = vadd.f32 %v2788, %v2824
        %v2841 = vadd.f32 %v2789, %v2825
        %v2842 = vadd.f32 %v2790, %v2826
        %v2843 = vadd.f32 %v2791, %v2827
        %v2844 = vadd.f32 %v2792, %v2828
        %v2845 = vadd.f32 %v2793, %v2829
        %v2846 = vadd.f32 %v2794, %v2830
        %v2847 = vadd.f32 %v2795, %v2831
        %v2848 = vadd.f32 %v2796, %v2832
        %v2849 = vadd.f32 %v2797, %v2833
        %v2850 = vadd.f32 %v2798, %v2834
        %v2851 = vadd.f32 %v2799, %v2835
        %v2852 = vadd.f32 %v2800, %v2836
        %v2853 = vlaneseq
        %v2854 = vshrl.u32 %v2853, 7
        %v2855 = vsub.s32 6, %v2854
        %v2856 = vrot.slane %v409, %v2855
        %v2857 = vmul.f32 %v517, %v2856
        %v2858 = vmul.f32 %v518, %v2856
        %v2859 = vmul.f32 %v519, %v2856
        %v2860 = vmul.f32 %v520, %v2856
        %v2861 = vmul.f32 %v521, %v2856
        %v2862 = vmul.f32 %v522, %v2856
        %v2863 = vmul.f32 %v523, %v2856
        %v2864 = vmul.f32 %v524, %v2856
        %v2865 = vmul.f32 %v525, %v2856
        %v2866 = vmul.f32 %v526, %v2856
        %v2867 = vmul.f32 %v527, %v2856
        %v2868 = vmul.f32 %v528, %v2856
        %v2869 = vmul.f32 %v529, %v2856
        %v2870 = vmul.f32 %v530, %v2856
        %v2871 = vmul.f32 %v531, %v2856
        %v2872 = vmul.f32 %v532, %v2856
        %v2873 = vmul.f32 %v2857, %v2045
        %v2874 = vmul.f32 %v2858, %v2046
        %v2875 = vmul.f32 %v2859, %v2047
        %v2876 = vmul.f32 %v2860, %v2048
        %v2877 = vmul.f32 %v2861, %v2049
        %v2878 = vmul.f32 %v2862, %v2050
        %v2879 = vmul.f32 %v2863, %v2051
        %v2880 = vmul.f32 %v2864, %v2052
        %v2881 = vmul.f32 %v2865, %v2053
        %v2882 = vmul.f32 %v2866, %v2054
        %v2883 = vmul.f32 %v2867, %v2055
        %v2884 = vmul.f32 %v2868, %v2056
        %v2885 = vmul.f32 %v2869, %v2057
        %v2886 = vmul.f32 %v2870, %v2058
        %v2887 = vmul.f32 %v2871, %v2059
        %v2888 = vmul.f32 %v2872, %v2060
        %v2889 = vlaneseq
        %v2890 = vshrl.u32 %v2889, 7
        %v2891 = vsub.s32 7, %v2890
        %v2892 = vrot.slane %v409, %v2891
        %v2893 = vmul.f32 %v577, %v2892
        %v2894 = vmul.f32 %v578, %v2892
        %v2895 = vmul.f32 %v579, %v2892
        %v2896 = vmul.f32 %v580, %v2892
        %v2897 = vmul.f32 %v581, %v2892
        %v2898 = vmul.f32 %v582, %v2892
        %v2899 = vmul.f32 %v583, %v2892
        %v2900 = vmul.f32 %v584, %v2892
        %v2901 = vmul.f32 %v585, %v2892
        %v2902 = vmul.f32 %v586, %v2892
        %v2903 = vmul.f32 %v587, %v2892
        %v2904 = vmul.f32 %v588, %v2892
        %v2905 = vmul.f32 %v589, %v2892
        %v2906 = vmul.f32 %v590, %v2892
        %v2907 = vmul.f32 %v591, %v2892
        %v2908 = vmul.f32 %v592, %v2892
        %v2909 = vmul.f32 %v2893, %v2133
        %v2910 = vmul.f32 %v2894, %v2134
        %v2911 = vmul.f32 %v2895, %v2135
        %v2912 = vmul.f32 %v2896, %v2136
        %v2913 = vmul.f32 %v2897, %v2137
        %v2914 = vmul.f32 %v2898, %v2138
        %v2915 = vmul.f32 %v2899, %v2139
        %v2916 = vmul.f32 %v2900, %v2140
        %v2917 = vmul.f32 %v2901, %v2141
        %v2918 = vmul.f32 %v2902, %v2142
        %v2919 = vmul.f32 %v2903, %v2143
        %v2920 = vmul.f32 %v2904, %v2144
        %v2921 = vmul.f32 %v2905, %v2145
        %v2922 = vmul.f32 %v2906, %v2146
        %v2923 = vmul.f32 %v2907, %v2147
        %v2924 = vmul.f32 %v2908, %v2148
        %v2925 = vadd.f32 %v2873, %v2909
        %v2926 = vadd.f32 %v2874, %v2910
        %v2927 = vadd.f32 %v2875, %v2911
        %v2928 = vadd.f32 %v2876, %v2912
        %v2929 = vadd.f32 %v2877, %v2913
        %v2930 = vadd.f32 %v2878, %v2914
        %v2931 = vadd.f32 %v2879, %v2915
        %v2932 = vadd.f32 %v2880, %v2916
        %v2933 = vadd.f32 %v2881, %v2917
        %v2934 = vadd.f32 %v2882, %v2918
        %v2935 = vadd.f32 %v2883, %v2919
        %v2936 = vadd.f32 %v2884, %v2920
        %v2937 = vadd.f32 %v2885, %v2921
        %v2938 = vadd.f32 %v2886, %v2922
        %v2939 = vadd.f32 %v2887, %v2923
        %v2940 = vadd.f32 %v2888, %v2924
        %v2941 = vlaneseq
        %v2942 = vshrl.u32 %v2941, 7
        %v2943 = vsub.s32 0, %v2942
        %v2944 = vrot.slane %v410, %v2943
        %v2945 = vmul.f32 %v537, %v2944
        %v2946 = vmul.f32 %v538, %v2944
        %v2947 = vmul.f32 %v539, %v2944
        %v2948 = vmul.f32 %v540, %v2944
        %v2949 = vmul.f32 %v541, %v2944
        %v2950 = vmul.f32 %v542, %v2944
        %v2951 = vmul.f32 %v543, %v2944
        %v2952 = vmul.f32 %v544, %v2944
        %v2953 = vmul.f32 %v545, %v2944
        %v2954 = vmul.f32 %v546, %v2944
        %v2955 = vmul.f32 %v547, %v2944
        %v2956 = vmul.f32 %v548, %v2944
        %v2957 = vmul.f32 %v549, %v2944
        %v2958 = vmul.f32 %v550, %v2944
        %v2959 = vmul.f32 %v551, %v2944
        %v2960 = vmul.f32 %v552, %v2944
        %v2961 = vmul.f32 %v2945, %v2133
        %v2962 = vmul.f32 %v2946, %v2134
        %v2963 = vmul.f32 %v2947, %v2135
        %v2964 = vmul.f32 %v2948, %v2136
        %v2965 = vmul.f32 %v2949, %v2137
        %v2966 = vmul.f32 %v2950, %v2138
        %v2967 = vmul.f32 %v2951, %v2139
        %v2968 = vmul.f32 %v2952, %v2140
        %v2969 = vmul.f32 %v2953, %v2141
        %v2970 = vmul.f32 %v2954, %v2142
        %v2971 = vmul.f32 %v2955, %v2143
        %v2972 = vmul.f32 %v2956, %v2144
        %v2973 = vmul.f32 %v2957, %v2145
        %v2974 = vmul.f32 %v2958, %v2146
        %v2975 = vmul.f32 %v2959, %v2147
        %v2976 = vmul.f32 %v2960, %v2148
        %v2977 = vlaneseq
        %v2978 = vshrl.u32 %v2977, 7
        %v2979 = vsub.s32 1, %v2978
        %v2980 = vrot.slane %v410, %v2979
        %v2981 = vmul.f32 %v597, %v2980
        %v2982 = vmul.f32 %v598, %v2980
        %v2983 = vmul.f32 %v599, %v2980
        %v2984 = vmul.f32 %v600, %v2980
        %v2985 = vmul.f32 %v601, %v2980
        %v2986 = vmul.f32 %v602, %v2980
        %v2987 = vmul.f32 %v603, %v2980
        %v2988 = vmul.f32 %v604, %v2980
        %v2989 = vmul.f32 %v605, %v2980
        %v2990 = vmul.f32 %v606, %v2980
        %v2991 = vmul.f32 %v607, %v2980
        %v2992 = vmul.f32 %v608, %v2980
        %v2993 = vmul.f32 %v609, %v2980
        %v2994 = vmul.f32 %v610, %v2980
        %v2995 = vmul.f32 %v611, %v2980
        %v2996 = vmul.f32 %v612, %v2980
        %v2997 = vmul.f32 %v2981, %v2221
        %v2998 = vmul.f32 %v2982, %v2222
        %v2999 = vmul.f32 %v2983, %v2223
        %v3000 = vmul.f32 %v2984, %v2224
        %v3001 = vmul.f32 %v2985, %v2225
        %v3002 = vmul.f32 %v2986, %v2226
        %v3003 = vmul.f32 %v2987, %v2227
        %v3004 = vmul.f32 %v2988, %v2228
        %v3005 = vmul.f32 %v2989, %v2229
        %v3006 = vmul.f32 %v2990, %v2230
        %v3007 = vmul.f32 %v2991, %v2231
        %v3008 = vmul.f32 %v2992, %v2232
        %v3009 = vmul.f32 %v2993, %v2233
        %v3010 = vmul.f32 %v2994, %v2234
        %v3011 = vmul.f32 %v2995, %v2235
        %v3012 = vmul.f32 %v2996, %v2236
        %v3013 = vadd.f32 %v2961, %v2997
        %v3014 = vadd.f32 %v2962, %v2998
        %v3015 = vadd.f32 %v2963, %v2999
        %v3016 = vadd.f32 %v2964, %v3000
        %v3017 = vadd.f32 %v2965, %v3001
        %v3018 = vadd.f32 %v2966, %v3002
        %v3019 = vadd.f32 %v2967, %v3003
        %v3020 = vadd.f32 %v2968, %v3004
        %v3021 = vadd.f32 %v2969, %v3005
        %v3022 = vadd.f32 %v2970, %v3006
        %v3023 = vadd.f32 %v2971, %v3007
        %v3024 = vadd.f32 %v2972, %v3008
        %v3025 = vadd.f32 %v2973, %v3009
        %v3026 = vadd.f32 %v2974, %v3010
        %v3027 = vadd.f32 %v2975, %v3011
        %v3028 = vadd.f32 %v2976, %v3012
        %v3029 = vlaneseq
        %v3030 = vshrl.u32 %v3029, 7
        %v3031 = vsub.s32 2, %v3030
        %v3032 = vrot.slane %v410, %v3031
        %v3033 = vmul.f32 %v557, %v3032
        %v3034 = vmul.f32 %v558, %v3032
        %v3035 = vmul.f32 %v559, %v3032
        %v3036 = vmul.f32 %v560, %v3032
        %v3037 = vmul.f32 %v561, %v3032
        %v3038 = vmul.f32 %v562, %v3032
        %v3039 = vmul.f32 %v563, %v3032
        %v3040 = vmul.f32 %v564, %v3032
        %v3041 = vmul.f32 %v565, %v3032
        %v3042 = vmul.f32 %v566, %v3032
        %v3043 = vmul.f32 %v567, %v3032
        %v3044 = vmul.f32 %v568, %v3032
        %v3045 = vmul.f32 %v569, %v3032
        %v3046 = vmul.f32 %v570, %v3032
        %v3047 = vmul.f32 %v571, %v3032
        %v3048 = vmul.f32 %v572, %v3032
        %v3049 = vmul.f32 %v3033, %v2221
        %v3050 = vmul.f32 %v3034, %v2222
        %v3051 = vmul.f32 %v3035, %v2223
        %v3052 = vmul.f32 %v3036, %v2224
        %v3053 = vmul.f32 %v3037, %v2225
        %v3054 = vmul.f32 %v3038, %v2226
        %v3055 = vmul.f32 %v3039, %v2227
        %v3056 = vmul.f32 %v3040, %v2228
        %v3057 = vmul.f32 %v3041, %v2229
        %v3058 = vmul.f32 %v3042, %v2230
        %v3059 = vmul.f32 %v3043, %v2231
        %v3060 = vmul.f32 %v3044, %v2232
        %v3061 = vmul.f32 %v3045, %v2233
        %v3062 = vmul.f32 %v3046, %v2234
        %v3063 = vmul.f32 %v3047, %v2235
        %v3064 = vmul.f32 %v3048, %v2236
        %v3065 = vlaneseq
        %v3066 = vshrl.u32 %v3065, 7
        %v3067 = vsub.s32 3, %v3066
        %v3068 = vrot.slane %v410, %v3067
        %v3069 = vmul.f32 %v617, %v3068
        %v3070 = vmul.f32 %v618, %v3068
        %v3071 = vmul.f32 %v619, %v3068
        %v3072 = vmul.f32 %v620, %v3068
        %v3073 = vmul.f32 %v621, %v3068
        %v3074 = vmul.f32 %v622, %v3068
        %v3075 = vmul.f32 %v623, %v3068
        %v3076 = vmul.f32 %v624, %v3068
        %v3077 = vmul.f32 %v625, %v3068
        %v3078 = vmul.f32 %v626, %v3068
        %v3079 = vmul.f32 %v627, %v3068
        %v3080 = vmul.f32 %v628, %v3068
        %v3081 = vmul.f32 %v629, %v3068
        %v3082 = vmul.f32 %v630, %v3068
        %v3083 = vmul.f32 %v631, %v3068
        %v3084 = vmul.f32 %v632, %v3068
        %v3085 = vmul.f32 %v3069, %v2309
        %v3086 = vmul.f32 %v3070, %v2310
        %v3087 = vmul.f32 %v3071, %v2311
        %v3088 = vmul.f32 %v3072, %v2312
        %v3089 = vmul.f32 %v3073, %v2313
        %v3090 = vmul.f32 %v3074, %v2314
        %v3091 = vmul.f32 %v3075, %v2315
        %v3092 = vmul.f32 %v3076, %v2316
        %v3093 = vmul.f32 %v3077, %v2317
        %v3094 = vmul.f32 %v3078, %v2318
        %v3095 = vmul.f32 %v3079, %v2319
        %v3096 = vmul.f32 %v3080, %v2320
        %v3097 = vmul.f32 %v3081, %v2321
        %v3098 = vmul.f32 %v3082, %v2322
        %v3099 = vmul.f32 %v3083, %v2323
        %v3100 = vmul.f32 %v3084, %v2324
        %v3101 = vadd.f32 %v3049, %v3085
        %v3102 = vadd.f32 %v3050, %v3086
        %v3103 = vadd.f32 %v3051, %v3087
        %v3104 = vadd.f32 %v3052, %v3088
        %v3105 = vadd.f32 %v3053, %v3089
        %v3106 = vadd.f32 %v3054, %v3090
        %v3107 = vadd.f32 %v3055, %v3091
        %v3108 = vadd.f32 %v3056, %v3092
        %v3109 = vadd.f32 %v3057, %v3093
        %v3110 = vadd.f32 %v3058, %v3094
        %v3111 = vadd.f32 %v3059, %v3095
        %v3112 = vadd.f32 %v3060, %v3096
        %v3113 = vadd.f32 %v3061, %v3097
        %v3114 = vadd.f32 %v3062, %v3098
        %v3115 = vadd.f32 %v3063, %v3099
        %v3116 = vadd.f32 %v3064, %v3100
        %v3117 = vlaneseq
        %v3118 = vshrl.u32 %v3117, 7
        %v3119 = vsub.s32 4, %v3118
        %v3120 = vrot.slane %v410, %v3119
        %v3121 = vmul.f32 %v577, %v3120
        %v3122 = vmul.f32 %v578, %v3120
        %v3123 = vmul.f32 %v579, %v3120
        %v3124 = vmul.f32 %v580, %v3120
        %v3125 = vmul.f32 %v581, %v3120
        %v3126 = vmul.f32 %v582, %v3120
        %v3127 = vmul.f32 %v583, %v3120
        %v3128 = vmul.f32 %v584, %v3120
        %v3129 = vmul.f32 %v585, %v3120
        %v3130 = vmul.f32 %v586, %v3120
        %v3131 = vmul.f32 %v587, %v3120
        %v3132 = vmul.f32 %v588, %v3120
        %v3133 = vmul.f32 %v589, %v3120
        %v3134 = vmul.f32 %v590, %v3120
        %v3135 = vmul.f32 %v591, %v3120
        %v3136 = vmul.f32 %v592, %v3120
        %v3137 = vmul.f32 %v3121, %v2309
        %v3138 = vmul.f32 %v3122, %v2310
        %v3139 = vmul.f32 %v3123, %v2311
        %v3140 = vmul.f32 %v3124, %v2312
        %v3141 = vmul.f32 %v3125, %v2313
        %v3142 = vmul.f32 %v3126, %v2314
        %v3143 = vmul.f32 %v3127, %v2315
        %v3144 = vmul.f32 %v3128, %v2316
        %v3145 = vmul.f32 %v3129, %v2317
        %v3146 = vmul.f32 %v3130, %v2318
        %v3147 = vmul.f32 %v3131, %v2319
        %v3148 = vmul.f32 %v3132, %v2320
        %v3149 = vmul.f32 %v3133, %v2321
        %v3150 = vmul.f32 %v3134, %v2322
        %v3151 = vmul.f32 %v3135, %v2323
        %v3152 = vmul.f32 %v3136, %v2324
        %v3153 = vlaneseq
        %v3154 = vshrl.u32 %v3153, 7
        %v3155 = vsub.s32 5, %v3154
        %v3156 = vrot.slane %v410, %v3155
        %v3157 = vmul.f32 %v637, %v3156
        %v3158 = vmul.f32 %v638, %v3156
        %v3159 = vmul.f32 %v639, %v3156
        %v3160 = vmul.f32 %v640, %v3156
        %v3161 = vmul.f32 %v641, %v3156
        %v3162 = vmul.f32 %v642, %v3156
        %v3163 = vmul.f32 %v643, %v3156
        %v3164 = vmul.f32 %v644, %v3156
        %v3165 = vmul.f32 %v645, %v3156
        %v3166 = vmul.f32 %v646, %v3156
        %v3167 = vmul.f32 %v647, %v3156
        %v3168 = vmul.f32 %v648, %v3156
        %v3169 = vmul.f32 %v649, %v3156
        %v3170 = vmul.f32 %v650, %v3156
        %v3171 = vmul.f32 %v651, %v3156
        %v3172 = vmul.f32 %v652, %v3156
        %v3173 = vmul.f32 %v3157, %v2397
        %v3174 = vmul.f32 %v3158, %v2398
        %v3175 = vmul.f32 %v3159, %v2399
        %v3176 = vmul.f32 %v3160, %v2400
        %v3177 = vmul.f32 %v3161, %v2401
        %v3178 = vmul.f32 %v3162, %v2402
        %v3179 = vmul.f32 %v3163, %v2403
        %v3180 = vmul.f32 %v3164, %v2404
        %v3181 = vmul.f32 %v3165, %v2405
        %v3182 = vmul.f32 %v3166, %v2406
        %v3183 = vmul.f32 %v3167, %v2407
        %v3184 = vmul.f32 %v3168, %v2408
        %v3185 = vmul.f32 %v3169, %v2409
        %v3186 = vmul.f32 %v3170, %v2410
        %v3187 = vmul.f32 %v3171, %v2411
        %v3188 = vmul.f32 %v3172, %v2412
        %v3189 = vadd.f32 %v3137, %v3173
        %v3190 = vadd.f32 %v3138, %v3174
        %v3191 = vadd.f32 %v3139, %v3175
        %v3192 = vadd.f32 %v3140, %v3176
        %v3193 = vadd.f32 %v3141, %v3177
        %v3194 = vadd.f32 %v3142, %v3178
        %v3195 = vadd.f32 %v3143, %v3179
        %v3196 = vadd.f32 %v3144, %v3180
        %v3197 = vadd.f32 %v3145, %v3181
        %v3198 = vadd.f32 %v3146, %v3182
        %v3199 = vadd.f32 %v3147, %v3183
        %v3200 = vadd.f32 %v3148, %v3184
        %v3201 = vadd.f32 %v3149, %v3185
        %v3202 = vadd.f32 %v3150, %v3186
        %v3203 = vadd.f32 %v3151, %v3187
        %v3204 = vadd.f32 %v3152, %v3188
        %v3205 = vlaneseq
        %v3206 = vshrl.u32 %v3205, 7
        %v3207 = vsub.s32 6, %v3206
        %v3208 = vrot.slane %v410, %v3207
        %v3209 = vmul.f32 %v417, %v3208
        %v3210 = vmul.f32 %v418, %v3208
        %v3211 = vmul.f32 %v419, %v3208
        %v3212 = vmul.f32 %v420, %v3208
        %v3213 = vmul.f32 %v421, %v3208
        %v3214 = vmul.f32 %v422, %v3208
        %v3215 = vmul.f32 %v423, %v3208
        %v3216 = vmul.f32 %v424, %v3208
        %v3217 = vmul.f32 %v425, %v3208
        %v3218 = vmul.f32 %v426, %v3208
        %v3219 = vmul.f32 %v427, %v3208
        %v3220 = vmul.f32 %v428, %v3208
        %v3221 = vmul.f32 %v429, %v3208
        %v3222 = vmul.f32 %v430, %v3208
        %v3223 = vmul.f32 %v431, %v3208
        %v3224 = vmul.f32 %v432, %v3208
        %v3225 = vmul.f32 %v3209, %v2485
        %v3226 = vmul.f32 %v3210, %v2486
        %v3227 = vmul.f32 %v3211, %v2487
        %v3228 = vmul.f32 %v3212, %v2488
        %v3229 = vmul.f32 %v3213, %v2489
        %v3230 = vmul.f32 %v3214, %v2490
        %v3231 = vmul.f32 %v3215, %v2491
        %v3232 = vmul.f32 %v3216, %v2492
        %v3233 = vmul.f32 %v3217, %v2493
        %v3234 = vmul.f32 %v3218, %v2494
        %v3235 = vmul.f32 %v3219, %v2495
        %v3236 = vmul.f32 %v3220, %v2496
        %v3237 = vmul.f32 %v3221, %v2497
        %v3238 = vmul.f32 %v3222, %v2498
        %v3239 = vmul.f32 %v3223, %v2499
        %v3240 = vmul.f32 %v3224, %v2500
        %v3241 = vlaneseq
        %v3242 = vshrl.u32 %v3241, 7
        %v3243 = vsub.s32 7, %v3242
        %v3244 = vrot.slane %v410, %v3243
        %v3245 = vmul.f32 %v497, %v3244
        %v3246 = vmul.f32 %v498, %v3244
        %v3247 = vmul.f32 %v499, %v3244
        %v3248 = vmul.f32 %v500, %v3244
        %v3249 = vmul.f32 %v501, %v3244
        %v3250 = vmul.f32 %v502, %v3244
        %v3251 = vmul.f32 %v503, %v3244
        %v3252 = vmul.f32 %v504, %v3244
        %v3253 = vmul.f32 %v505, %v3244
        %v3254 = vmul.f32 %v506, %v3244
        %v3255 = vmul.f32 %v507, %v3244
        %v3256 = vmul.f32 %v508, %v3244
        %v3257 = vmul.f32 %v509, %v3244
        %v3258 = vmul.f32 %v510, %v3244
        %v3259 = vmul.f32 %v511, %v3244
        %v3260 = vmul.f32 %v512, %v3244
        %v3261 = vmul.f32 %v3245, %v2573
        %v3262 = vmul.f32 %v3246, %v2574
        %v3263 = vmul.f32 %v3247, %v2575
        %v3264 = vmul.f32 %v3248, %v2576
        %v3265 = vmul.f32 %v3249, %v2577
        %v3266 = vmul.f32 %v3250, %v2578
        %v3267 = vmul.f32 %v3251, %v2579
        %v3268 = vmul.f32 %v3252, %v2580
        %v3269 = vmul.f32 %v3253, %v2581
        %v3270 = vmul.f32 %v3254, %v2582
        %v3271 = vmul.f32 %v3255, %v2583
        %v3272 = vmul.f32 %v3256, %v2584
        %v3273 = vmul.f32 %v3257, %v2585
        %v3274 = vmul.f32 %v3258, %v2586
        %v3275 = vmul.f32 %v3259, %v2587
        %v3276 = vmul.f32 %v3260, %v2588
        %v3277 = vadd.f32 %v3225, %v3261
        %v3278 = vadd.f32 %v3226, %v3262
        %v3279 = vadd.f32 %v3227, %v3263
        %v3280 = vadd.f32 %v3228, %v3264
        %v3281 = vadd.f32 %v3229, %v3265
        %v3282 = vadd.f32 %v3230, %v3266
        %v3283 = vadd.f32 %v3231, %v3267
        %v3284 = vadd.f32 %v3232, %v3268
        %v3285 = vadd.f32 %v3233, %v3269
        %v3286 = vadd.f32 %v3234, %v3270
        %v3287 = vadd.f32 %v3235, %v3271
        %v3288 = vadd.f32 %v3236, %v3272
        %v3289 = vadd.f32 %v3237, %v3273
        %v3290 = vadd.f32 %v3238, %v3274
        %v3291 = vadd.f32 %v3239, %v3275
        %v3292 = vadd.f32 %v3240, %v3276
        %v3293 = vlaneseq
        %v3294 = vshrl.u32 %v3293, 7
        %v3295 = vsub.s32 0, %v3294
        %v3296 = vrot.slane %v411, %v3295
        %v3297 = vmul.f32 %v437, %v3296
        %v3298 = vmul.f32 %v438, %v3296
        %v3299 = vmul.f32 %v439, %v3296
        %v3300 = vmul.f32 %v440, %v3296
        %v3301 = vmul.f32 %v441, %v3296
        %v3302 = vmul.f32 %v442, %v3296
        %v3303 = vmul.f32 %v443, %v3296
        %v3304 = vmul.f32 %v444, %v3296
        %v3305 = vmul.f32 %v445, %v3296
        %v3306 = vmul.f32 %v446, %v3296
        %v3307 = vmul.f32 %v447, %v3296
        %v3308 = vmul.f32 %v448, %v3296
        %v3309 = vmul.f32 %v449, %v3296
        %v3310 = vmul.f32 %v450, %v3296
        %v3311 = vmul.f32 %v451, %v3296
        %v3312 = vmul.f32 %v452, %v3296
        %v3313 = vmul.f32 %v3297, %v2573
        %v3314 = vmul.f32 %v3298, %v2574
        %v3315 = vmul.f32 %v3299, %v2575
        %v3316 = vmul.f32 %v3300, %v2576
        %v3317 = vmul.f32 %v3301, %v2577
        %v3318 = vmul.f32 %v3302, %v2578
        %v3319 = vmul.f32 %v3303, %v2579
        %v3320 = vmul.f32 %v3304, %v2580
        %v3321 = vmul.f32 %v3305, %v2581
        %v3322 = vmul.f32 %v3306, %v2582
        %v3323 = vmul.f32 %v3307, %v2583
        %v3324 = vmul.f32 %v3308, %v2584
        %v3325 = vmul.f32 %v3309, %v2585
        %v3326 = vmul.f32 %v3310, %v2586
        %v3327 = vmul.f32 %v3311, %v2587
        %v3328 = vmul.f32 %v3312, %v2588
        %v3329 = vlaneseq
        %v3330 = vshrl.u32 %v3329, 7
        %v3331 = vsub.s32 1, %v3330
        %v3332 = vrot.slane %v411, %v3331
        %v3333 = vmul.f32 %v517, %v3332
        %v3334 = vmul.f32 %v518, %v3332
        %v3335 = vmul.f32 %v519, %v3332
        %v3336 = vmul.f32 %v520, %v3332
        %v3337 = vmul.f32 %v521, %v3332
        %v3338 = vmul.f32 %v522, %v3332
        %v3339 = vmul.f32 %v523, %v3332
        %v3340 = vmul.f32 %v524, %v3332
        %v3341 = vmul.f32 %v525, %v3332
        %v3342 = vmul.f32 %v526, %v3332
        %v3343 = vmul.f32 %v527, %v3332
        %v3344 = vmul.f32 %v528, %v3332
        %v3345 = vmul.f32 %v529, %v3332
        %v3346 = vmul.f32 %v530, %v3332
        %v3347 = vmul.f32 %v531, %v3332
        %v3348 = vmul.f32 %v532, %v3332
        %v3349 = vmul.f32 %v3333, %v2661
        %v3350 = vmul.f32 %v3334, %v2662
        %v3351 = vmul.f32 %v3335, %v2663
        %v3352 = vmul.f32 %v3336, %v2664
        %v3353 = vmul.f32 %v3337, %v2665
        %v3354 = vmul.f32 %v3338, %v2666
        %v3355 = vmul.f32 %v3339, %v2667
        %v3356 = vmul.f32 %v3340, %v2668
        %v3357 = vmul.f32 %v3341, %v2669
        %v3358 = vmul.f32 %v3342, %v2670
        %v3359 = vmul.f32 %v3343, %v2671
        %v3360 = vmul.f32 %v3344, %v2672
        %v3361 = vmul.f32 %v3345, %v2673
        %v3362 = vmul.f32 %v3346, %v2674
        %v3363 = vmul.f32 %v3347, %v2675
        %v3364 = vmul.f32 %v3348, %v2676
        %v3365 = vadd.f32 %v3313, %v3349
        %v3366 = vadd.f32 %v3314, %v3350
        %v3367 = vadd.f32 %v3315, %v3351
        %v3368 = vadd.f32 %v3316, %v3352
        %v3369 = vadd.f32 %v3317, %v3353
        %v3370 = vadd.f32 %v3318, %v3354
        %v3371 = vadd.f32 %v3319, %v3355
        %v3372 = vadd.f32 %v3320, %v3356
        %v3373 = vadd.f32 %v3321, %v3357
        %v3374 = vadd.f32 %v3322, %v3358
        %v3375 = vadd.f32 %v3323, %v3359
        %v3376 = vadd.f32 %v3324, %v3360
        %v3377 = vadd.f32 %v3325, %v3361
        %v3378 = vadd.f32 %v3326, %v3362
        %v3379 = vadd.f32 %v3327, %v3363
        %v3380 = vadd.f32 %v3328, %v3364
        %v3381 = vlaneseq
        %v3382 = vshrl.u32 %v3381, 7
        %v3383 = vsub.s32 2, %v3382
        %v3384 = vrot.slane %v411, %v3383
        %v3385 = vmul.f32 %v457, %v3384
        %v3386 = vmul.f32 %v458, %v3384
        %v3387 = vmul.f32 %v459, %v3384
        %v3388 = vmul.f32 %v460, %v3384
        %v3389 = vmul.f32 %v461, %v3384
        %v3390 = vmul.f32 %v462, %v3384
        %v3391 = vmul.f32 %v463, %v3384
        %v3392 = vmul.f32 %v464, %v3384
        %v3393 = vmul.f32 %v465, %v3384
        %v3394 = vmul.f32 %v466, %v3384
        %v3395 = vmul.f32 %v467, %v3384
        %v3396 = vmul.f32 %v468, %v3384
        %v3397 = vmul.f32 %v469, %v3384
        %v3398 = vmul.f32 %v470, %v3384
        %v3399 = vmul.f32 %v471, %v3384
        %v3400 = vmul.f32 %v472, %v3384
        %v3401 = vmul.f32 %v3385, %v2661
        %v3402 = vmul.f32 %v3386, %v2662
        %v3403 = vmul.f32 %v3387, %v2663
        %v3404 = vmul.f32 %v3388, %v2664
        %v3405 = vmul.f32 %v3389, %v2665
        %v3406 = vmul.f32 %v3390, %v2666
        %v3407 = vmul.f32 %v3391, %v2667
        %v3408 = vmul.f32 %v3392, %v2668
        %v3409 = vmul.f32 %v3393, %v2669
        %v3410 = vmul.f32 %v3394, %v2670
        %v3411 = vmul.f32 %v3395, %v2671
        %v3412 = vmul.f32 %v3396, %v2672
        %v3413 = vmul.f32 %v3397, %v2673
        %v3414 = vmul.f32 %v3398, %v2674
        %v3415 = vmul.f32 %v3399, %v2675
        %v3416 = vmul.f32 %v3400, %v2676
        %v3417 = vlaneseq
        %v3418 = vshrl.u32 %v3417, 7
        %v3419 = vsub.s32 3, %v3418
        %v3420 = vrot.slane %v411, %v3419
        %v3421 = vmul.f32 %v537, %v3420
        %v3422 = vmul.f32 %v538, %v3420
        %v3423 = vmul.f32 %v539, %v3420
        %v3424 = vmul.f32 %v540, %v3420
        %v3425 = vmul.f32 %v541, %v3420
        %v3426 = vmul.f32 %v542, %v3420
        %v3427 = vmul.f32 %v543, %v3420
        %v3428 = vmul.f32 %v544, %v3420
        %v3429 = vmul.f32 %v545, %v3420
        %v3430 = vmul.f32 %v546, %v3420
        %v3431 = vmul.f32 %v547, %v3420
        %v3432 = vmul.f32 %v548, %v3420
        %v3433 = vmul.f32 %v549, %v3420
        %v3434 = vmul.f32 %v550, %v3420
        %v3435 = vmul.f32 %v551, %v3420
        %v3436 = vmul.f32 %v552, %v3420
        %v3437 = vmul.f32 %v3421, %v2749
        %v3438 = vmul.f32 %v3422, %v2750
        %v3439 = vmul.f32 %v3423, %v2751
        %v3440 = vmul.f32 %v3424, %v2752
        %v3441 = vmul.f32 %v3425, %v2753
        %v3442 = vmul.f32 %v3426, %v2754
        %v3443 = vmul.f32 %v3427, %v2755
        %v3444 = vmul.f32 %v3428, %v2756
        %v3445 = vmul.f32 %v3429, %v2757
        %v3446 = vmul.f32 %v3430, %v2758
        %v3447 = vmul.f32 %v3431, %v2759
        %v3448 = vmul.f32 %v3432, %v2760
        %v3449 = vmul.f32 %v3433, %v2761
        %v3450 = vmul.f32 %v3434, %v2762
        %v3451 = vmul.f32 %v3435, %v2763
        %v3452 = vmul.f32 %v3436, %v2764
        %v3453 = vadd.f32 %v3401, %v3437
        %v3454 = vadd.f32 %v3402, %v3438
        %v3455 = vadd.f32 %v3403, %v3439
        %v3456 = vadd.f32 %v3404, %v3440
        %v3457 = vadd.f32 %v3405, %v3441
        %v3458 = vadd.f32 %v3406, %v3442
        %v3459 = vadd.f32 %v3407, %v3443
        %v3460 = vadd.f32 %v3408, %v3444
        %v3461 = vadd.f32 %v3409, %v3445
        %v3462 = vadd.f32 %v3410, %v3446
        %v3463 = vadd.f32 %v3411, %v3447
        %v3464 = vadd.f32 %v3412, %v3448
        %v3465 = vadd.f32 %v3413, %v3449
        %v3466 = vadd.f32 %v3414, %v3450
        %v3467 = vadd.f32 %v3415, %v3451
        %v3468 = vadd.f32 %v3416, %v3452
        %v3469 = vlaneseq
        %v3470 = vshrl.u32 %v3469, 7
        %v3471 = vsub.s32 4, %v3470
        %v3472 = vrot.slane %v411, %v3471
        %v3473 = vmul.f32 %v477, %v3472
        %v3474 = vmul.f32 %v478, %v3472
        %v3475 = vmul.f32 %v479, %v3472
        %v3476 = vmul.f32 %v480, %v3472
        %v3477 = vmul.f32 %v481, %v3472
        %v3478 = vmul.f32 %v482, %v3472
        %v3479 = vmul.f32 %v483, %v3472
        %v3480 = vmul.f32 %v484, %v3472
        %v3481 = vmul.f32 %v485, %v3472
        %v3482 = vmul.f32 %v486, %v3472
        %v3483 = vmul.f32 %v487, %v3472
        %v3484 = vmul.f32 %v488, %v3472
        %v3485 = vmul.f32 %v489, %v3472
        %v3486 = vmul.f32 %v490, %v3472
        %v3487 = vmul.f32 %v491, %v3472
        %v3488 = vmul.f32 %v492, %v3472
        %v3489 = vmul.f32 %v3473, %v2749
        %v3490 = vmul.f32 %v3474, %v2750
        %v3491 = vmul.f32 %v3475, %v2751
        %v3492 = vmul.f32 %v3476, %v2752
        %v3493 = vmul.f32 %v3477, %v2753
        %v3494 = vmul.f32 %v3478, %v2754
        %v3495 = vmul.f32 %v3479, %v2755
        %v3496 = vmul.f32 %v3480, %v2756
        %v3497 = vmul.f32 %v3481, %v2757
        %v3498 = vmul.f32 %v3482, %v2758
        %v3499 = vmul.f32 %v3483, %v2759
        %v3500 = vmul.f32 %v3484, %v2760
        %v3501 = vmul.f32 %v3485, %v2761
        %v3502 = vmul.f32 %v3486, %v2762
        %v3503 = vmul.f32 %v3487, %v2763
        %v3504 = vmul.f32 %v3488, %v2764
        %v3505 = vlaneseq
        %v3506 = vshrl.u32 %v3505, 7
        %v3507 = vsub.s32 5, %v3506
        %v3508 = vrot.slane %v411, %v3507
        %v3509 = vmul.f32 %v557, %v3508
        %v3510 = vmul.f32 %v558, %v3508
        %v3511 = vmul.f32 %v559, %v3508
        %v3512 = vmul.f32 %v560, %v3508
        %v3513 = vmul.f32 %v561, %v3508
        %v3514 = vmul.f32 %v562, %v3508
        %v3515 = vmul.f32 %v563, %v3508
        %v3516 = vmul.f32 %v564, %v3508
        %v3517 = vmul.f32 %v565, %v3508
        %v3518 = vmul.f32 %v566, %v3508
        %v3519 = vmul.f32 %v567, %v3508
        %v3520 = vmul.f32 %v568, %v3508
        %v3521 = vmul.f32 %v569, %v3508
        %v3522 = vmul.f32 %v570, %v3508
        %v3523 = vmul.f32 %v571, %v3508
        %v3524 = vmul.f32 %v572, %v3508
        %v3525 = vmul.f32 %v3509, %v2837
        %v3526 = vmul.f32 %v3510, %v2838
        %v3527 = vmul.f32 %v3511, %v2839
        %v3528 = vmul.f32 %v3512, %v2840
        %v3529 = vmul.f32 %v3513, %v2841
        %v3530 = vmul.f32 %v3514, %v2842
        %v3531 = vmul.f32 %v3515, %v2843
        %v3532 = vmul.f32 %v3516, %v2844
        %v3533 = vmul.f32 %v3517, %v2845
        %v3534 = vmul.f32 %v3518, %v2846
        %v3535 = vmul.f32 %v3519, %v2847
        %v3536 = vmul.f32 %v3520, %v2848
        %v3537 = vmul.f32 %v3521, %v2849
        %v3538 = vmul.f32 %v3522, %v2850
        %v3539 = vmul.f32 %v3523, %v2851
        %v3540 = vmul.f32 %v3524, %v2852
        %v3541 = vadd.f32 %v3489, %v3525
        %v3542 = vadd.f32 %v3490, %v3526
        %v3543 = vadd.f32 %v3491, %v3527
        %v3544 = vadd.f32 %v3492, %v3528
        %v3545 = vadd.f32 %v3493, %v3529
        %v3546 = vadd.f32 %v3494, %v3530
        %v3547 = vadd.f32 %v3495, %v3531
        %v3548 = vadd.f32 %v3496, %v3532
        %v3549 = vadd.f32 %v3497, %v3533
        %v3550 = vadd.f32 %v3498, %v3534
        %v3551 = vadd.f32 %v3499, %v3535
        %v3552 = vadd.f32 %v3500, %v3536
        %v3553 = vadd.f32 %v3501, %v3537
        %v3554 = vadd.f32 %v3502, %v3538
        %v3555 = vadd.f32 %v3503, %v3539
        %v3556 = vadd.f32 %v3504, %v3540
        %v3557 = vlaneseq
        %v3558 = vshrl.u32 %v3557, 7
        %v3559 = vsub.s32 6, %v3558
        %v3560 = vrot.slane %v411, %v3559
        %v3561 = vmul.f32 %v497, %v3560
        %v3562 = vmul.f32 %v498, %v3560
        %v3563 = vmul.f32 %v499, %v3560
        %v3564 = vmul.f32 %v500, %v3560
        %v3565 = vmul.f32 %v501, %v3560
        %v3566 = vmul.f32 %v502, %v3560
        %v3567 = vmul.f32 %v503, %v3560
        %v3568 = vmul.f32 %v504, %v3560
        %v3569 = vmul.f32 %v505, %v3560
        %v3570 = vmul.f32 %v506, %v3560
        %v3571 = vmul.f32 %v507, %v3560
        %v3572 = vmul.f32 %v508, %v3560
        %v3573 = vmul.f32 %v509, %v3560
        %v3574 = vmul.f32 %v510, %v3560
        %v3575 = vmul.f32 %v511, %v3560
        %v3576 = vmul.f32 %v512, %v3560
        %v3577 = vmul.f32 %v3561, %v2837
        %v3578 = vmul.f32 %v3562, %v2838
        %v3579 = vmul.f32 %v3563, %v2839
        %v3580 = vmul.f32 %v3564, %v2840
        %v3581 = vmul.f32 %v3565, %v2841
        %v3582 = vmul.f32 %v3566, %v2842
        %v3583 = vmul.f32 %v3567, %v2843
        %v3584 = vmul.f32 %v3568, %v2844
        %v3585 = vmul.f32 %v3569, %v2845
        %v3586 = vmul.f32 %v3570, %v2846
        %v3587 = vmul.f32 %v3571, %v2847
        %v3588 = vmul.f32 %v3572, %v2848
        %v3589 = vmul.f32 %v3573, %v2849
        %v3590 = vmul.f32 %v3574, %v2850
        %v3591 = vmul.f32 %v3575, %v2851
        %v3592 = vmul.f32 %v3576, %v2852
        %v3593 = vlaneseq
        %v3594 = vshrl.u32 %v3593, 7
        %v3595 = vsub.s32 7, %v3594
        %v3596 = vrot.slane %v411, %v3595
        %v3597 = vmul.f32 %v577, %v3596
        %v3598 = vmul.f32 %v578, %v3596
        %v3599 = vmul.f32 %v579, %v3596
        %v3600 = vmul.f32 %v580, %v3596
        %v3601 = vmul.f32 %v581, %v3596
        %v3602 = vmul.f32 %v582, %v3596
        %v3603 = vmul.f32 %v583, %v3596
        %v3604 = vmul.f32 %v584, %v3596
        %v3605 = vmul.f32 %v585, %v3596
        %v3606 = vmul.f32 %v586, %v3596
        %v3607 = vmul.f32 %v587, %v3596
        %v3608 = vmul.f32 %v588, %v3596
        %v3609 = vmul.f32 %v589, %v3596
        %v3610 = vmul.f32 %v590, %v3596
        %v3611 = vmul.f32 %v591, %v3596
        %v3612 = vmul.f32 %v592, %v3596
        %v3613 = vmul.f32 %v3597, %v2925
        %v3614 = vmul.f32 %v3598, %v2926
        %v3615 = vmul.f32 %v3599, %v2927
        %v3616 = vmul.f32 %v3600, %v2928
        %v3617 = vmul.f32 %v3601, %v2929
        %v3618 = vmul.f32 %v3602, %v2930
        %v3619 = vmul.f32 %v3603, %v2931
        %v3620 = vmul.f32 %v3604, %v2932
        %v3621 = vmul.f32 %v3605, %v2933
        %v3622 = vmul.f32 %v3606, %v2934
        %v3623 = vmul.f32 %v3607, %v2935
        %v3624 = vmul.f32 %v3608, %v2936
        %v3625 = vmul.f32 %v3609, %v2937
        %v3626 = vmul.f32 %v3610, %v2938
        %v3627 = vmul.f32 %v3611, %v2939
        %v3628 = vmul.f32 %v3612, %v2940
        %v3629 = vadd.f32 %v3577, %v3613
        %v3630 = vadd.f32 %v3578, %v3614
        %v3631 = vadd.f32 %v3579, %v3615
        %v3632 = vadd.f32 %v3580, %v3616
        %v3633 = vadd.f32 %v3581, %v3617
        %v3634 = vadd.f32 %v3582, %v3618
        %v3635 = vadd.f32 %v3583, %v3619
        %v3636 = vadd.f32 %v3584, %v3620
        %v3637 = vadd.f32 %v3585, %v3621
        %v3638 = vadd.f32 %v3586, %v3622
        %v3639 = vadd.f32 %v3587, %v3623
        %v3640 = vadd.f32 %v3588, %v3624
        %v3641 = vadd.f32 %v3589, %v3625
        %v3642 = vadd.f32 %v3590, %v3626
        %v3643 = vadd.f32 %v3591, %v3627
        %v3644 = vadd.f32 %v3592, %v3628
        %v3645 = vlaneseq
        %v3646 = vshrl.u32 %v3645, 7
        %v3647 = vsub.s32 0, %v3646
        %v3648 = vrot.slane %v412, %v3647
        %v3649 = vmul.f32 %v517, %v3648
        %v3650 = vmul.f32 %v518, %v3648
        %v3651 = vmul.f32 %v519, %v3648
        %v3652 = vmul.f32 %v520, %v3648
        %v3653 = vmul.f32 %v521, %v3648
        %v3654 = vmul.f32 %v522, %v3648
        %v3655 = vmul.f32 %v523, %v3648
        %v3656 = vmul.f32 %v524, %v3648
        %v3657 = vmul.f32 %v525, %v3648
        %v3658 = vmul.f32 %v526, %v3648
        %v3659 = vmul.f32 %v527, %v3648
        %v3660 = vmul.f32 %v528, %v3648
        %v3661 = vmul.f32 %v529, %v3648
        %v3662 = vmul.f32 %v530, %v3648
        %v3663 = vmul.f32 %v531, %v3648
        %v3664 = vmul.f32 %v532, %v3648
        %v3665 = vmul.f32 %v3649, %v2925
        %v3666 = vmul.f32 %v3650, %v2926
        %v3667 = vmul.f32 %v3651, %v2927
        %v3668 = vmul.f32 %v3652, %v2928
        %v3669 = vmul.f32 %v3653, %v2929
        %v3670 = vmul.f32 %v3654, %v2930
        %v3671 = vmul.f32 %v3655, %v2931
        %v3672 = vmul.f32 %v3656, %v2932
        %v3673 = vmul.f32 %v3657, %v2933
        %v3674 = vmul.f32 %v3658, %v2934
        %v3675 = vmul.f32 %v3659, %v2935
        %v3676 = vmul.f32 %v3660, %v2936
        %v3677 = vmul.f32 %v3661, %v2937
        %v3678 = vmul.f32 %v3662, %v2938
        %v3679 = vmul.f32 %v3663, %v2939
        %v3680 = vmul.f32 %v3664, %v2940
        %v3681 = vlaneseq
        %v3682 = vshrl.u32 %v3681, 7
        %v3683 = vsub.s32 1, %v3682
        %v3684 = vrot.slane %v412, %v3683
        %v3685 = vmul.f32 %v597, %v3684
        %v3686 = vmul.f32 %v598, %v3684
        %v3687 = vmul.f32 %v599, %v3684
        %v3688 = vmul.f32 %v600, %v3684
        %v3689 = vmul.f32 %v601, %v3684
        %v3690 = vmul.f32 %v602, %v3684
        %v3691 = vmul.f32 %v603, %v3684
        %v3692 = vmul.f32 %v604, %v3684
        %v3693 = vmul.f32 %v605, %v3684
        %v3694 = vmul.f32 %v606, %v3684
        %v3695 = vmul.f32 %v607, %v3684
        %v3696 = vmul.f32 %v608, %v3684
        %v3697 = vmul.f32 %v609, %v3684
        %v3698 = vmul.f32 %v610, %v3684
        %v3699 = vmul.f32 %v611, %v3684
        %v3700 = vmul.f32 %v612, %v3684
        %v3701 = vmul.f32 %v3685, %v3013
        %v3702 = vmul.f32 %v3686, %v3014
        %v3703 = vmul.f32 %v3687, %v3015
        %v3704 = vmul.f32 %v3688, %v3016
        %v3705 = vmul.f32 %v3689, %v3017
        %v3706 = vmul.f32 %v3690, %v3018
        %v3707 = vmul.f32 %v3691, %v3019
        %v3708 = vmul.f32 %v3692, %v3020
        %v3709 = vmul.f32 %v3693, %v3021
        %v3710 = vmul.f32 %v3694, %v3022
        %v3711 = vmul.f32 %v3695, %v3023
        %v3712 = vmul.f32 %v3696, %v3024
        %v3713 = vmul.f32 %v3697, %v3025
        %v3714 = vmul.f32 %v3698, %v3026
        %v3715 = vmul.f32 %v3699, %v3027
        %v3716 = vmul.f32 %v3700, %v3028
        %v3717 = vadd.f32 %v3665, %v3701
        %v3718 = vadd.f32 %v3666, %v3702
        %v3719 = vadd.f32 %v3667, %v3703
        %v3720 = vadd.f32 %v3668, %v3704
        %v3721 = vadd.f32 %v3669, %v3705
        %v3722 = vadd.f32 %v3670, %v3706
        %v3723 = vadd.f32 %v3671, %v3707
        %v3724 = vadd.f32 %v3672, %v3708
        %v3725 = vadd.f32 %v3673, %v3709
        %v3726 = vadd.f32 %v3674, %v3710
        %v3727 = vadd.f32 %v3675, %v3711
        %v3728 = vadd.f32 %v3676, %v3712
        %v3729 = vadd.f32 %v3677, %v3713
        %v3730 = vadd.f32 %v3678, %v3714
        %v3731 = vadd.f32 %v3679, %v3715
        %v3732 = vadd.f32 %v3680, %v3716
        %v3733 = vlaneseq
        %v3734 = vshrl.u32 %v3733, 7
        %v3735 = vsub.s32 2, %v3734
        %v3736 = vrot.slane %v412, %v3735
        %v3737 = vmul.f32 %v537, %v3736
        %v3738 = vmul.f32 %v538, %v3736
        %v3739 = vmul.f32 %v539, %v3736
        %v3740 = vmul.f32 %v540, %v3736
        %v3741 = vmul.f32 %v541, %v3736
        %v3742 = vmul.f32 %v542, %v3736
        %v3743 = vmul.f32 %v543, %v3736
        %v3744 = vmul.f32 %v544, %v3736
        %v3745 = vmul.f32 %v545, %v3736
        %v3746 = vmul.f32 %v546, %v3736
        %v3747 = vmul.f32 %v547, %v3736
        %v3748 = vmul.f32 %v548, %v3736
        %v3749 = vmul.f32 %v549, %v3736
        %v3750 = vmul.f32 %v550, %v3736
        %v3751 = vmul.f32 %v551, %v3736
        %v3752 = vmul.f32 %v552, %v3736
        %v3753 = vmul.f32 %v3737, %v3013
        %v3754 = vmul.f32 %v3738, %v3014
        %v3755 = vmul.f32 %v3739, %v3015
        %v3756 = vmul.f32 %v3740, %v3016
        %v3757 = vmul.f32 %v3741, %v3017
        %v3758 = vmul.f32 %v3742, %v3018
        %v3759 = vmul.f32 %v3743, %v3019
        %v3760 = vmul.f32 %v3744, %v3020
        %v3761 = vmul.f32 %v3745, %v3021
        %v3762 = vmul.f32 %v3746, %v3022
        %v3763 = vmul.f32 %v3747, %v3023
        %v3764 = vmul.f32 %v3748, %v3024
        %v3765 = vmul.f32 %v3749, %v3025
        %v3766 = vmul.f32 %v3750, %v3026
        %v3767 = vmul.f32 %v3751, %v3027
        %v3768 = vmul.f32 %v3752, %v3028
        %v3769 = vlaneseq
        %v3770 = vshrl.u32 %v3769, 7
        %v3771 = vsub.s32 3, %v3770
        %v3772 = vrot.slane %v412, %v3771
        %v3773 = vmul.f32 %v617, %v3772
        %v3774 = vmul.f32 %v618, %v3772
        %v3775 = vmul.f32 %v619, %v3772
        %v3776 = vmul.f32 %v620, %v3772
        %v3777 = vmul.f32 %v621, %v3772
        %v3778 = vmul.f32 %v622, %v3772
        %v3779 = vmul.f32 %v623, %v3772
        %v3780 = vmul.f32 %v624, %v3772
        %v3781 = vmul.f32 %v625, %v3772
        %v3782 = vmul.f32 %v626, %v3772
        %v3783 = vmul.f32 %v627, %v3772
        %v3784 = vmul.f32 %v628, %v3772
        %v3785 = vmul.f32 %v629, %v3772
        %v3786 = vmul.f32 %v630, %v3772
        %v3787 = vmul.f32 %v631, %v3772
        %v3788 = vmul.f32 %v632, %v3772
        %v3789 = vmul.f32 %v3773, %v3101
        %v3790 = vmul.f32 %v3774, %v3102
        %v3791 = vmul.f32 %v3775, %v3103
        %v3792 = vmul.f32 %v3776, %v3104
        %v3793 = vmul.f32 %v3777, %v3105
        %v3794 = vmul.f32 %v3778, %v3106
        %v3795 = vmul.f32 %v3779, %v3107
        %v3796 = vmul.f32 %v3780, %v3108
        %v3797 = vmul.f32 %v3781, %v3109
        %v3798 = vmul.f32 %v3782, %v3110
        %v3799 = vmul.f32 %v3783, %v3111
        %v3800 = vmul.f32 %v3784, %v3112
        %v3801 = vmul.f32 %v3785, %v3113
        %v3802 = vmul.f32 %v3786, %v3114
        %v3803 = vmul.f32 %v3787, %v3115
        %v3804 = vmul.f32 %v3788, %v3116
        %v3805 = vadd.f32 %v3753, %v3789
        %v3806 = vadd.f32 %v3754, %v3790
        %v3807 = vadd.f32 %v3755, %v3791
        %v3808 = vadd.f32 %v3756, %v3792
        %v3809 = vadd.f32 %v3757, %v3793
        %v3810 = vadd.f32 %v3758, %v3794
        %v3811 = vadd.f32 %v3759, %v3795
        %v3812 = vadd.f32 %v3760, %v3796
        %v3813 = vadd.f32 %v3761, %v3797
        %v3814 = vadd.f32 %v3762, %v3798
        %v3815 = vadd.f32 %v3763, %v3799
        %v3816 = vadd.f32 %v3764, %v3800
        %v3817 = vadd.f32 %v3765, %v3801
        %v3818 = vadd.f32 %v3766, %v3802
        %v3819 = vadd.f32 %v3767, %v3803
        %v3820 = vadd.f32 %v3768, %v3804
        %v3821 = vlaneseq
        %v3822 = vshrl.u32 %v3821, 7
        %v3823 = vsub.s32 4, %v3822
        %v3824 = vrot.slane %v412, %v3823
        %v3825 = vmul.f32 %v557, %v3824
        %v3826 = vmul.f32 %v558, %v3824
        %v3827 = vmul.f32 %v559, %v3824
        %v3828 = vmul.f32 %v560, %v3824
        %v3829 = vmul.f32 %v561, %v3824
        %v3830 = vmul.f32 %v562, %v3824
        %v3831 = vmul.f32 %v563, %v3824
        %v3832 = vmul.f32 %v564, %v3824
        %v3833 = vmul.f32 %v565, %v3824
        %v3834 = vmul.f32 %v566, %v3824
        %v3835 = vmul.f32 %v567, %v3824
        %v3836 = vmul.f32 %v568, %v3824
        %v3837 = vmul.f32 %v569, %v3824
        %v3838 = vmul.f32 %v570, %v3824
        %v3839 = vmul.f32 %v571, %v3824
        %v3840 = vmul.f32 %v572, %v3824
        %v3841 = vmul.f32 %v3825, %v3101
        %v3842 = vmul.f32 %v3826, %v3102
        %v3843 = vmul.f32 %v3827, %v3103
        %v3844 = vmul.f32 %v3828, %v3104
        %v3845 = vmul.f32 %v3829, %v3105
        %v3846 = vmul.f32 %v3830, %v3106
        %v3847 = vmul.f32 %v3831, %v3107
        %v3848 = vmul.f32 %v3832, %v3108
        %v3849 = vmul.f32 %v3833, %v3109
        %v3850 = vmul.f32 %v3834, %v3110
        %v3851 = vmul.f32 %v3835, %v3111
        %v3852 = vmul.f32 %v3836, %v3112
        %v3853 = vmul.f32 %v3837, %v3113
        %v3854 = vmul.f32 %v3838, %v3114
        %v3855 = vmul.f32 %v3839, %v3115
        %v3856 = vmul.f32 %v3840, %v3116
        %v3857 = vlaneseq
        %v3858 = vshrl.u32 %v3857, 7
        %v3859 = vsub.s32 5, %v3858
        %v3860 = vrot.slane %v412, %v3859
        %v3861 = vmul.f32 %v637, %v3860
        %v3862 = vmul.f32 %v638, %v3860
        %v3863 = vmul.f32 %v639, %v3860
        %v3864 = vmul.f32 %v640, %v3860
        %v3865 = vmul.f32 %v641, %v3860
        %v3866 = vmul.f32 %v642, %v3860
        %v3867 = vmul.f32 %v643, %v3860
        %v3868 = vmul.f32 %v644, %v3860
        %v3869 = vmul.f32 %v645, %v3860
        %v3870 = vmul.f32 %v646, %v3860
        %v3871 = vmul.f32 %v647, %v3860
        %v3872 = vmul.f32 %v648, %v3860
        %v3873 = vmul.f32 %v649, %v3860
        %v3874 = vmul.f32 %v650, %v3860
        %v3875 = vmul.f32 %v651, %v3860
        %v3876 = vmul.f32 %v652, %v3860
        %v3877 = vmul.f32 %v3861, %v3189
        %v3878 = vmul.f32 %v3862, %v3190
        %v3879 = vmul.f32 %v3863, %v3191
        %v3880 = vmul.f32 %v3864, %v3192
        %v3881 = vmul.f32 %v3865, %v3193
        %v3882 = vmul.f32 %v3866, %v3194
        %v3883 = vmul.f32 %v3867, %v3195
        %v3884 = vmul.f32 %v3868, %v3196
        %v3885 = vmul.f32 %v3869, %v3197
        %v3886 = vmul.f32 %v3870, %v3198
        %v3887 = vmul.f32 %v3871, %v3199
        %v3888 = vmul.f32 %v3872, %v3200
        %v3889 = vmul.f32 %v3873, %v3201
        %v3890 = vmul.f32 %v3874, %v3202
        %v3891 = vmul.f32 %v3875, %v3203
        %v3892 = vmul.f32 %v3876, %v3204
        %v3893 = vadd.f32 %v3841, %v3877
        %v3894 = vadd.f32 %v3842, %v3878
        %v3895 = vadd.f32 %v3843, %v3879
        %v3896 = vadd.f32 %v3844, %v3880
        %v3897 = vadd.f32 %v3845, %v3881
        %v3898 = vadd.f32 %v3846, %v3882
        %v3899 = vadd.f32 %v3847, %v3883
        %v3900 = vadd.f32 %v3848, %v3884
        %v3901 = vadd.f32 %v3849, %v3885
        %v3902 = vadd.f32 %v3850, %v3886
        %v3903 = vadd.f32 %v3851, %v3887
        %v3904 = vadd.f32 %v3852, %v3888
        %v3905 = vadd.f32 %v3853, %v3889
        %v3906 = vadd.f32 %v3854, %v3890
        %v3907 = vadd.f32 %v3855, %v3891
        %v3908 = vadd.f32 %v3856, %v3892
        %3925 = vrot.lane.b32.xlu0 %v3277, 32
        %v3926 = vpop.permute.xlu0 %3925
        %3927 = vrot.lane.b32.xlu0 %v3278, 32
        %v3928 = vpop.permute.xlu0 %3927
        %3929 = vrot.lane.b32.xlu0 %v3279, 32
        %v3930 = vpop.permute.xlu0 %3929
        %3931 = vrot.lane.b32.xlu0 %v3280, 32
        %v3932 = vpop.permute.xlu0 %3931
        %3933 = vrot.lane.b32.xlu0 %v3281, 32
        %v3934 = vpop.permute.xlu0 %3933
        %3935 = vrot.lane.b32.xlu0 %v3282, 32
        %v3936 = vpop.permute.xlu0 %3935
        %3937 = vrot.lane.b32.xlu0 %v3283, 32
        %v3938 = vpop.permute.xlu0 %3937
        %3939 = vrot.lane.b32.xlu0 %v3284, 32
        %v3940 = vpop.permute.xlu0 %3939
        %3941 = vrot.lane.b32.xlu0 %v3285, 32
        %v3942 = vpop.permute.xlu0 %3941
        %3943 = vrot.lane.b32.xlu0 %v3286, 32
        %v3944 = vpop.permute.xlu0 %3943
        %3945 = vrot.lane.b32.xlu0 %v3287, 32
        %v3946 = vpop.permute.xlu0 %3945
        %3947 = vrot.lane.b32.xlu0 %v3288, 32
        %v3948 = vpop.permute.xlu0 %3947
        %3949 = vrot.lane.b32.xlu0 %v3289, 32
        %v3950 = vpop.permute.xlu0 %3949
        %3951 = vrot.lane.b32.xlu0 %v3290, 32
        %v3952 = vpop.permute.xlu0 %3951
        %3953 = vrot.lane.b32.xlu0 %v3291, 32
        %v3954 = vpop.permute.xlu0 %3953
        %3955 = vrot.lane.b32.xlu0 %v3292, 32
        %v3956 = vpop.permute.xlu0 %3955
        %3989 = vrot.lane.b32.xlu0 %v3365, 64
        %v3990 = vpop.permute.xlu0 %3989
        %3991 = vrot.lane.b32.xlu0 %v3366, 64
        %v3992 = vpop.permute.xlu0 %3991
        %3993 = vrot.lane.b32.xlu0 %v3367, 64
        %v3994 = vpop.permute.xlu0 %3993
        %3995 = vrot.lane.b32.xlu0 %v3368, 64
        %v3996 = vpop.permute.xlu0 %3995
        %3997 = vrot.lane.b32.xlu0 %v3369, 64
        %v3998 = vpop.permute.xlu0 %3997
        %3999 = vrot.lane.b32.xlu0 %v3370, 64
        %v4000 = vpop.permute.xlu0 %3999
        %4001 = vrot.lane.b32.xlu0 %v3371, 64
        %v4002 = vpop.permute.xlu0 %4001
        %4003 = vrot.lane.b32.xlu0 %v3372, 64
        %v4004 = vpop.permute.xlu0 %4003
        %4005 = vrot.lane.b32.xlu0 %v3373, 64
        %v4006 = vpop.permute.xlu0 %4005
        %4007 = vrot.lane.b32.xlu0 %v3374, 64
        %v4008 = vpop.permute.xlu0 %4007
        %4009 = vrot.lane.b32.xlu0 %v3375, 64
        %v4010 = vpop.permute.xlu0 %4009
        %4011 = vrot.lane.b32.xlu0 %v3376, 64
        %v4012 = vpop.permute.xlu0 %4011
        %4013 = vrot.lane.b32.xlu0 %v3377, 64
        %v4014 = vpop.permute.xlu0 %4013
        %4015 = vrot.lane.b32.xlu0 %v3378, 64
        %v4016 = vpop.permute.xlu0 %4015
        %4017 = vrot.lane.b32.xlu0 %v3379, 64
        %v4018 = vpop.permute.xlu0 %4017
        %4019 = vrot.lane.b32.xlu0 %v3380, 64
        %v4020 = vpop.permute.xlu0 %4019
        %4053 = vrot.lane.b32.xlu0 %v3453, 96
        %v4054 = vpop.permute.xlu0 %4053
        %4055 = vrot.lane.b32.xlu0 %v3454, 96
        %v4056 = vpop.permute.xlu0 %4055
        %4057 = vrot.lane.b32.xlu0 %v3455, 96
        %v4058 = vpop.permute.xlu0 %4057
        %4059 = vrot.lane.b32.xlu0 %v3456, 96
        %v4060 = vpop.permute.xlu0 %4059
        %4061 = vrot.lane.b32.xlu0 %v3457, 96
        %v4062 = vpop.permute.xlu0 %4061
        %4063 = vrot.lane.b32.xlu0 %v3458, 96
        %v4064 = vpop.permute.xlu0 %4063
        %4065 = vrot.lane.b32.xlu0 %v3459, 96
        %v4066 = vpop.permute.xlu0 %4065
        %4067 = vrot.lane.b32.xlu0 %v3460, 96
        %v4068 = vpop.permute.xlu0 %4067
        %4069 = vrot.lane.b32.xlu0 %v3461, 96
        %v4070 = vpop.permute.xlu0 %4069
        %4071 = vrot.lane.b32.xlu0 %v3462, 96
        %v4072 = vpop.permute.xlu0 %4071
        %4073 = vrot.lane.b32.xlu0 %v3463, 96
        %v4074 = vpop.permute.xlu0 %4073
        %4075 = vrot.lane.b32.xlu0 %v3464, 96
        %v4076 = vpop.permute.xlu0 %4075
        %4077 = vrot.lane.b32.xlu0 %v3465, 96
        %v4078 = vpop.permute.xlu0 %4077
        %4079 = vrot.lane.b32.xlu0 %v3466, 96
        %v4080 = vpop.permute.xlu0 %4079
        %4081 = vrot.lane.b32.xlu0 %v3467, 96
        %v4082 = vpop.permute.xlu0 %4081
        %4083 = vrot.lane.b32.xlu0 %v3468, 96
        %v4084 = vpop.permute.xlu0 %4083
        %4117 = vrot.lane.b32.xlu0 %v3629, 32
        %v4118 = vpop.permute.xlu0 %4117
        %4119 = vrot.lane.b32.xlu0 %v3630, 32
        %v4120 = vpop.permute.xlu0 %4119
        %4121 = vrot.lane.b32.xlu0 %v3631, 32
        %v4122 = vpop.permute.xlu0 %4121
        %4123 = vrot.lane.b32.xlu0 %v3632, 32
        %v4124 = vpop.permute.xlu0 %4123
        %4125 = vrot.lane.b32.xlu0 %v3633, 32
        %v4126 = vpop.permute.xlu0 %4125
        %4127 = vrot.lane.b32.xlu0 %v3634, 32
        %v4128 = vpop.permute.xlu0 %4127
        %4129 = vrot.lane.b32.xlu0 %v3635, 32
        %v4130 = vpop.permute.xlu0 %4129
        %4131 = vrot.lane.b32.xlu0 %v3636, 32
        %v4132 = vpop.permute.xlu0 %4131
        %4133 = vrot.lane.b32.xlu0 %v3637, 32
        %v4134 = vpop.permute.xlu0 %4133
        %4135 = vrot.lane.b32.xlu0 %v3638, 32
        %v4136 = vpop.permute.xlu0 %4135
        %4137 = vrot.lane.b32.xlu0 %v3639, 32
        %v4138 = vpop.permute.xlu0 %4137
        %4139 = vrot.lane.b32.xlu0 %v3640, 32
        %v4140 = vpop.permute.xlu0 %4139
        %4141 = vrot.lane.b32.xlu0 %v3641, 32
        %v4142 = vpop.permute.xlu0 %4141
        %4143 = vrot.lane.b32.xlu0 %v3642, 32
        %v4144 = vpop.permute.xlu0 %4143
        %4145 = vrot.lane.b32.xlu0 %v3643, 32
        %v4146 = vpop.permute.xlu0 %4145
        %4147 = vrot.lane.b32.xlu0 %v3644, 32
        %v4148 = vpop.permute.xlu0 %4147
        %4181 = vrot.lane.b32.xlu0 %v3717, 64
        %v4182 = vpop.permute.xlu0 %4181
        %4183 = vrot.lane.b32.xlu0 %v3718, 64
        %v4184 = vpop.permute.xlu0 %4183
        %4185 = vrot.lane.b32.xlu0 %v3719, 64
        %v4186 = vpop.permute.xlu0 %4185
        %4187 = vrot.lane.b32.xlu0 %v3720, 64
        %v4188 = vpop.permute.xlu0 %4187
        %4189 = vrot.lane.b32.xlu0 %v3721, 64
        %v4190 = vpop.permute.xlu0 %4189
        %4191 = vrot.lane.b32.xlu0 %v3722, 64
        %v4192 = vpop.permute.xlu0 %4191
        %4193 = vrot.lane.b32.xlu0 %v3723, 64
        %v4194 = vpop.permute.xlu0 %4193
        %4195 = vrot.lane.b32.xlu0 %v3724, 64
        %v4196 = vpop.permute.xlu0 %4195
        %4197 = vrot.lane.b32.xlu0 %v3725, 64
        %v4198 = vpop.permute.xlu0 %4197
        %4199 = vrot.lane.b32.xlu0 %v3726, 64
        %v4200 = vpop.permute.xlu0 %4199
        %4201 = vrot.lane.b32.xlu0 %v3727, 64
        %v4202 = vpop.permute.xlu0 %4201
        %4203 = vrot.lane.b32.xlu0 %v3728, 64
        %v4204 = vpop.permute.xlu0 %4203
        %4205 = vrot.lane.b32.xlu0 %v3729, 64
        %v4206 = vpop.permute.xlu0 %4205
        %4207 = vrot.lane.b32.xlu0 %v3730, 64
        %v4208 = vpop.permute.xlu0 %4207
        %4209 = vrot.lane.b32.xlu0 %v3731, 64
        %v4210 = vpop.permute.xlu0 %4209
        %4211 = vrot.lane.b32.xlu0 %v3732, 64
        %v4212 = vpop.permute.xlu0 %4211
        %4245 = vrot.lane.b32.xlu0 %v3805, 96
        %v4246 = vpop.permute.xlu0 %4245
        %4247 = vrot.lane.b32.xlu0 %v3806, 96
        %v4248 = vpop.permute.xlu0 %4247
        %4249 = vrot.lane.b32.xlu0 %v3807, 96
        %v4250 = vpop.permute.xlu0 %4249
        %4251 = vrot.lane.b32.xlu0 %v3808, 96
        %v4252 = vpop.permute.xlu0 %4251
        %4253 = vrot.lane.b32.xlu0 %v3809, 96
        %v4254 = vpop.permute.xlu0 %4253
        %4255 = vrot.lane.b32.xlu0 %v3810, 96
        %v4256 = vpop.permute.xlu0 %4255
        %4257 = vrot.lane.b32.xlu0 %v3811, 96
        %v4258 = vpop.permute.xlu0 %4257
        %4259 = vrot.lane.b32.xlu0 %v3812, 96
        %v4260 = vpop.permute.xlu0 %4259
        %4261 = vrot.lane.b32.xlu0 %v3813, 96
        %v4262 = vpop.permute.xlu0 %4261
        %4263 = vrot.lane.b32.xlu0 %v3814, 96
        %v4264 = vpop.permute.xlu0 %4263
        %4265 = vrot.lane.b32.xlu0 %v3815, 96
        %v4266 = vpop.permute.xlu0 %4265
        %4267 = vrot.lane.b32.xlu0 %v3816, 96
        %v4268 = vpop.permute.xlu0 %4267
        %4269 = vrot.lane.b32.xlu0 %v3817, 96
        %v4270 = vpop.permute.xlu0 %4269
        %4271 = vrot.lane.b32.xlu0 %v3818, 96
        %v4272 = vpop.permute.xlu0 %4271
        %4273 = vrot.lane.b32.xlu0 %v3819, 96
        %v4274 = vpop.permute.xlu0 %4273
        %4275 = vrot.lane.b32.xlu0 %v3820, 96
        %v4276 = vpop.permute.xlu0 %4275
        %vm4293 = vcmask 261120
        %v4294 = vsel %vm4293, %v388, %v3926
        %v4295 = vsel %vm4293, %v389, %v3928
        %v4296 = vsel %vm4293, %v390, %v3930
        %v4297 = vsel %vm4293, %v391, %v3932
        %v4298 = vsel %vm4293, %v392, %v3934
        %v4299 = vsel %vm4293, %v393, %v3936
        %v4300 = vsel %vm4293, %v394, %v3938
        %v4301 = vsel %vm4293, %v395, %v3940
        %v4302 = vsel %vm4293, %v396, %v3942
        %v4303 = vsel %vm4293, %v397, %v3944
        %v4304 = vsel %vm4293, %v398, %v3946
        %v4305 = vsel %vm4293, %v399, %v3948
        %v4306 = vsel %vm4293, %v400, %v3950
        %v4307 = vsel %vm4293, %v401, %v3952
        %v4308 = vsel %vm4293, %v402, %v3954
        %v4309 = vsel %vm4293, %v403, %v3956
        %vm4310 = vcmask 523264
        %v4311 = vsel %vm4310, %v4294, %v3990
        %v4312 = vsel %vm4310, %v4295, %v3992
        %v4313 = vsel %vm4310, %v4296, %v3994
        %v4314 = vsel %vm4310, %v4297, %v3996
        %v4315 = vsel %vm4310, %v4298, %v3998
        %v4316 = vsel %vm4310, %v4299, %v4000
        %v4317 = vsel %vm4310, %v4300, %v4002
        %v4318 = vsel %vm4310, %v4301, %v4004
        %v4319 = vsel %vm4310, %v4302, %v4006
        %v4320 = vsel %vm4310, %v4303, %v4008
        %v4321 = vsel %vm4310, %v4304, %v4010
        %v4322 = vsel %vm4310, %v4305, %v4012
        %v4323 = vsel %vm4310, %v4306, %v4014
        %v4324 = vsel %vm4310, %v4307, %v4016
        %v4325 = vsel %vm4310, %v4308, %v4018
        %v4326 = vsel %vm4310, %v4309, %v4020
        %vm4327 = vcmask 785408
        %v4328 = vsel %vm4327, %v4311, %v4054
        %v4329 = vsel %vm4327, %v4312, %v4056
        %v4330 = vsel %vm4327, %v4313, %v4058
        %v4331 = vsel %vm4327, %v4314, %v4060
        %v4332 = vsel %vm4327, %v4315, %v4062
        %v4333 = vsel %vm4327, %v4316, %v4064
        %v4334 = vsel %vm4327, %v4317, %v4066
        %v4335 = vsel %vm4327, %v4318, %v4068
        %v4336 = vsel %vm4327, %v4319, %v4070
        %v4337 = vsel %vm4327, %v4320, %v4072
        %v4338 = vsel %vm4327, %v4321, %v4074
        %v4339 = vsel %vm4327, %v4322, %v4076
        %v4340 = vsel %vm4327, %v4323, %v4078
        %v4341 = vsel %vm4327, %v4324, %v4080
        %v4342 = vsel %vm4327, %v4325, %v4082
        %v4343 = vsel %vm4327, %v4326, %v4084
        %v4344 = vsel %vm4293, %v3541, %v4118
        %v4345 = vsel %vm4293, %v3542, %v4120
        %v4346 = vsel %vm4293, %v3543, %v4122
        %v4347 = vsel %vm4293, %v3544, %v4124
        %v4348 = vsel %vm4293, %v3545, %v4126
        %v4349 = vsel %vm4293, %v3546, %v4128
        %v4350 = vsel %vm4293, %v3547, %v4130
        %v4351 = vsel %vm4293, %v3548, %v4132
        %v4352 = vsel %vm4293, %v3549, %v4134
        %v4353 = vsel %vm4293, %v3550, %v4136
        %v4354 = vsel %vm4293, %v3551, %v4138
        %v4355 = vsel %vm4293, %v3552, %v4140
        %v4356 = vsel %vm4293, %v3553, %v4142
        %v4357 = vsel %vm4293, %v3554, %v4144
        %v4358 = vsel %vm4293, %v3555, %v4146
        %v4359 = vsel %vm4293, %v3556, %v4148
        %v4360 = vsel %vm4310, %v4344, %v4182
        %v4361 = vsel %vm4310, %v4345, %v4184
        %v4362 = vsel %vm4310, %v4346, %v4186
        %v4363 = vsel %vm4310, %v4347, %v4188
        %v4364 = vsel %vm4310, %v4348, %v4190
        %v4365 = vsel %vm4310, %v4349, %v4192
        %v4366 = vsel %vm4310, %v4350, %v4194
        %v4367 = vsel %vm4310, %v4351, %v4196
        %v4368 = vsel %vm4310, %v4352, %v4198
        %v4369 = vsel %vm4310, %v4353, %v4200
        %v4370 = vsel %vm4310, %v4354, %v4202
        %v4371 = vsel %vm4310, %v4355, %v4204
        %v4372 = vsel %vm4310, %v4356, %v4206
        %v4373 = vsel %vm4310, %v4357, %v4208
        %v4374 = vsel %vm4310, %v4358, %v4210
        %v4375 = vsel %vm4310, %v4359, %v4212
        %v4376 = vsel %vm4327, %v4360, %v4246
        %v4377 = vsel %vm4327, %v4361, %v4248
        %v4378 = vsel %vm4327, %v4362, %v4250
        %v4379 = vsel %vm4327, %v4363, %v4252
        %v4380 = vsel %vm4327, %v4364, %v4254
        %v4381 = vsel %vm4327, %v4365, %v4256
        %v4382 = vsel %vm4327, %v4366, %v4258
        %v4383 = vsel %vm4327, %v4367, %v4260
        %v4384 = vsel %vm4327, %v4368, %v4262
        %v4385 = vsel %vm4327, %v4369, %v4264
        %v4386 = vsel %vm4327, %v4370, %v4266
        %v4387 = vsel %vm4327, %v4371, %v4268
        %v4388 = vsel %vm4327, %v4372, %v4270
        %v4389 = vsel %vm4327, %v4373, %v4272
        %v4390 = vsel %vm4327, %v4374, %v4274
        %v4391 = vsel %vm4327, %v4375, %v4276
        %v4392 = vld [vmem:[%s274] sm:$0xff]
        %v4393 = vld [vmem:[%s274 + $0x8] sm:$0xff]
        %v4394 = vld [vmem:[%s274 + $0x10] sm:$0xff]
        %v4395 = vld [vmem:[%s274 + $0x18] sm:$0xff]
        %v4396 = vld [vmem:[%s274 + $0x20] sm:$0xff]
        %v4397 = vld [vmem:[%s274 + $0x28] sm:$0xff]
        %v4398 = vld [vmem:[%s274 + $0x30] sm:$0xff]
        %v4399 = vld [vmem:[%s274 + $0x38] sm:$0xff]
        %v4400 = vld [vmem:[%s274 + $0x40] sm:$0xff]
        %v4401 = vld [vmem:[%s274 + $0x48] sm:$0xff]
        %v4402 = vld [vmem:[%s274 + $0x50] sm:$0xff]
        %v4403 = vld [vmem:[%s274 + $0x58] sm:$0xff]
        %v4404 = vld [vmem:[%s274 + $0x60] sm:$0xff]
        %v4405 = vld [vmem:[%s274 + $0x68] sm:$0xff]
        %v4406 = vld [vmem:[%s274 + $0x70] sm:$0xff]
        %v4407 = vld [vmem:[%s274 + $0x78] sm:$0xff]
        %v4408 = vld [vmem:[%s274 + $0x80] sm:$0xff]
        %v4409 = vld [vmem:[%s274 + $0x88] sm:$0xff]
        %v4410 = vld [vmem:[%s274 + $0x90] sm:$0xff]
        %v4411 = vld [vmem:[%s274 + $0x98] sm:$0xff]
        %v4412 = vld [vmem:[%s274 + $0xa0] sm:$0xff]
        %v4413 = vld [vmem:[%s274 + $0xa8] sm:$0xff]
        %v4414 = vld [vmem:[%s274 + $0xb0] sm:$0xff]
        %v4415 = vld [vmem:[%s274 + $0xb8] sm:$0xff]
        %v4416 = vld [vmem:[%s274 + $0xc0] sm:$0xff]
        %v4417 = vld [vmem:[%s274 + $0xc8] sm:$0xff]
        %v4418 = vld [vmem:[%s274 + $0xd0] sm:$0xff]
        %v4419 = vld [vmem:[%s274 + $0xd8] sm:$0xff]
        %v4420 = vld [vmem:[%s274 + $0xe0] sm:$0xff]
        %v4421 = vld [vmem:[%s274 + $0xe8] sm:$0xff]
        %v4422 = vld [vmem:[%s274 + $0xf0] sm:$0xff]
        %v4423 = vld [vmem:[%s274 + $0xf8] sm:$0xff]
        %v4424 = vld [vmem:[%s274 + $0x100] sm:$0xff]
        %v4425 = vld [vmem:[%s274 + $0x108] sm:$0xff]
        %v4426 = vld [vmem:[%s274 + $0x110] sm:$0xff]
        %v4427 = vld [vmem:[%s274 + $0x118] sm:$0xff]
        %v4429 = vsel %vm4293, %v3893, 0
        %v4432 = vsel %vm4293, %v3894, 0
        %v4435 = vsel %vm4293, %v3895, 0
        %v4438 = vsel %vm4293, %v3896, 0
        %v4441 = vsel %vm4293, %v3897, 0
        %v4444 = vsel %vm4293, %v3898, 0
        %v4447 = vsel %vm4293, %v3899, 0
        %v4450 = vsel %vm4293, %v3900, 0
        %v4453 = vsel %vm4293, %v3901, 0
        %v4456 = vsel %vm4293, %v3902, 0
        %v4459 = vsel %vm4293, %v3903, 0
        %v4462 = vsel %vm4293, %v3904, 0
        %v4465 = vsel %vm4293, %v3905, 0
        %v4468 = vsel %vm4293, %v3906, 0
        %v4471 = vsel %vm4293, %v3907, 0
        %v4474 = vsel %vm4293, %v3908, 0
        %4476 = vmatprep.subr.mxu0 0.0
        %4477 = vmatpush1.msra.mxu0 %v4392
        %4478 = vmatprep.subr.mxu0 0.0
        %4479 = vmatpush1.msra.mxu0 %v4393
        %4480 = vmatprep.subr.mxu0 0.0
        %4481 = vmatpush1.msra.mxu0 %v4394
        %4482 = vmatprep.subr.mxu0 0.0
        %4483 = vmatpush1.msra.mxu0 %v4395
        %4484 = vmatprep.subr.mxu0 0.0
        %4485 = vmatpush1.msra.mxu0 %v4396
        %4486 = vmatprep.subr.mxu0 0.0
        %4487 = vmatpush1.msra.mxu0 %v4397
        %4488 = vmatprep.subr.mxu0 0.0
        %4489 = vmatpush1.msra.mxu0 %v4398
        %4490 = vmatprep.subr.mxu0 0.0
        %4491 = vmatpush1.msra.mxu0 %v4399
        %4492 = vmatprep.subr.mxu0 0.0
        %4493 = vmatpush1.msra.mxu0 %v4400
        %4494 = vmatprep.subr.mxu0 0.0
        %4495 = vmatpush1.msra.mxu0 %v4401
        %4496 = vmatprep.subr.mxu0 0.0
        %4497 = vmatpush1.msra.mxu0 %v4402
        %4498 = vmatprep.subr.mxu0 0.0
        %4499 = vmatpush1.msra.mxu0 %v4403
        %4500 = vmatprep.subr.mxu0 0.0
        %4501 = vmatpush1.msra.mxu0 %v4404
        %4502 = vmatprep.subr.mxu0 0.0
        %4503 = vmatpush1.msra.mxu0 %v4405
        %4504 = vmatprep.subr.mxu0 0.0
        %4505 = vmatpush1.msra.mxu0 %v4406
        %4506 = vmatprep.subr.mxu0 0.0
        %4507 = vmatpush1.msra.mxu0 %v4407
        %4508 = vmatprep.subr.mxu0 0.0
        %4509 = vmatpush1.msra.mxu0 %v4408
        %4510 = vmatprep.subr.mxu0 0.0
        %4511 = vmatpush1.msra.mxu0 %v4409
        %4512 = vmatprep.subr.mxu0 0.0
        %4513 = vmatpush1.msra.mxu0 %v4410
        %4514 = vmatprep.subr.mxu0 0.0
        %4515 = vmatpush1.msra.mxu0 %v4411
        %4516 = vmatprep.subr.mxu0 0.0
        %4517 = vmatpush1.msra.mxu0 %v4412
        %4518 = vmatprep.subr.mxu0 0.0
        %4519 = vmatpush1.msra.mxu0 %v4413
        %4520 = vmatprep.subr.mxu0 0.0
        %4521 = vmatpush1.msra.mxu0 %v4414
        %4522 = vmatprep.subr.mxu0 0.0
        %4523 = vmatpush1.msra.mxu0 %v4415
        %4524 = vmatprep.subr.mxu0 0.0
        %4525 = vmatpush1.msra.mxu0 %v4416
        %4526 = vmatprep.subr.mxu0 0.0
        %4527 = vmatpush1.msra.mxu0 %v4417
        %4528 = vmatprep.subr.mxu0 0.0
        %4529 = vmatpush1.msra.mxu0 %v4418
        %4530 = vmatprep.subr.mxu0 0.0
        %4531 = vmatpush1.msra.mxu0 %v4419
        %4532 = vmatprep.subr.mxu0 0.0
        %4533 = vmatpush1.msra.mxu0 %v4420
        %4534 = vmatprep.subr.mxu0 0.0
        %4535 = vmatpush1.msra.mxu0 %v4421
        %4536 = vmatprep.subr.mxu0 0.0
        %4537 = vmatpush1.msra.mxu0 %v4422
        %4538 = vmatprep.subr.mxu0 0.0
        %4539 = vmatpush1.msra.mxu0 %v4423
        %4540 = vmatprep.mubr.f32.mxu0 %v4376
        %4541 = vmatmul.mubr.f32.gmra.mrb[0].mxu0 %v4328
        %v4542 = vpop.f32.mrb[0].mxu0
        %v4543 = vadd.f32 0.0, %v4542
        %v4544 = vpop.f32.mrb[0].mxu0
        %4545 = vmatprep.mubr.f32.mxu0 %v4377
        %4546 = vmatmul.mubr.f32.gmra.mrb[0].mxu0 %v4329
        %v4547 = vpop.f32.mrb[0].mxu0
        %v4548 = vadd.f32 0.0, %v4547
        %v4549 = vpop.f32.mrb[0].mxu0
        %4550 = vmatprep.mubr.f32.mxu0 %v4378
        %4551 = vmatmul.mubr.f32.gmra.mrb[0].mxu0 %v4330
        %v4552 = vpop.f32.mrb[0].mxu0
        %v4553 = vadd.f32 0.0, %v4552
        %v4554 = vpop.f32.mrb[0].mxu0
        %4555 = vmatprep.mubr.f32.mxu0 %v4379
        %4556 = vmatmul.mubr.f32.gmra.mrb[0].mxu0 %v4331
        %v4557 = vpop.f32.mrb[0].mxu0
        %v4558 = vadd.f32 0.0, %v4557
        %v4559 = vpop.f32.mrb[0].mxu0
        %4560 = vmatprep.mubr.f32.mxu0 %v4380
        %4561 = vmatmul.mubr.f32.gmra.mrb[0].mxu0 %v4332
        %v4562 = vpop.f32.mrb[0].mxu0
        %v4563 = vadd.f32 0.0, %v4562
        %v4564 = vpop.f32.mrb[0].mxu0
        %4565 = vmatprep.mubr.f32.mxu0 %v4381
        %4566 = vmatmul.mubr.f32.gmra.mrb[0].mxu0 %v4333
        %v4567 = vpop.f32.mrb[0].mxu0
        %v4568 = vadd.f32 0.0, %v4567
        %v4569 = vpop.f32.mrb[0].mxu0
        %4570 = vmatprep.mubr.f32.mxu0 %v4382
        %4571 = vmatmul.mubr.f32.gmra.mrb[0].mxu0 %v4334
        %v4572 = vpop.f32.mrb[0].mxu0
        %v4573 = vadd.f32 0.0, %v4572
        %v4574 = vpop.f32.mrb[0].mxu0
        %4575 = vmatprep.mubr.f32.mxu0 %v4383
        %4576 = vmatmul.mubr.f32.gmra.mrb[0].mxu0 %v4335
        %v4577 = vpop.f32.mrb[0].mxu0
        %v4578 = vadd.f32 0.0, %v4577
        %v4579 = vpop.f32.mrb[0].mxu0
        %4580 = vmatprep.mubr.f32.mxu0 %v4384
        %4581 = vmatmul.mubr.f32.gmra.mrb[0].mxu0 %v4336
        %v4582 = vpop.f32.mrb[0].mxu0
        %v4583 = vadd.f32 0.0, %v4582
        %v4584 = vpop.f32.mrb[0].mxu0
        %4585 = vmatprep.mubr.f32.mxu0 %v4385
        %4586 = vmatmul.mubr.f32.gmra.mrb[0].mxu0 %v4337
        %v4587 = vpop.f32.mrb[0].mxu0
        %v4588 = vadd.f32 0.0, %v4587
        %v4589 = vpop.f32.mrb[0].mxu0
        %4590 = vmatprep.mubr.f32.mxu0 %v4386
        %4591 = vmatmul.mubr.f32.gmra.mrb[0].mxu0 %v4338
        %v4592 = vpop.f32.mrb[0].mxu0
        %v4593 = vadd.f32 0.0, %v4592
        %v4594 = vpop.f32.mrb[0].mxu0
        %4595 = vmatprep.mubr.f32.mxu0 %v4387
        %4596 = vmatmul.mubr.f32.gmra.mrb[0].mxu0 %v4339
        %v4597 = vpop.f32.mrb[0].mxu0
        %v4598 = vadd.f32 0.0, %v4597
        %v4599 = vpop.f32.mrb[0].mxu0
        %4600 = vmatprep.mubr.f32.mxu0 %v4388
        %4601 = vmatmul.mubr.f32.gmra.mrb[0].mxu0 %v4340
        %v4602 = vpop.f32.mrb[0].mxu0
        %v4603 = vadd.f32 0.0, %v4602
        %v4604 = vpop.f32.mrb[0].mxu0
        %4605 = vmatprep.mubr.f32.mxu0 %v4389
        %4606 = vmatmul.mubr.f32.gmra.mrb[0].mxu0 %v4341
        %v4607 = vpop.f32.mrb[0].mxu0
        %v4608 = vadd.f32 0.0, %v4607
        %v4609 = vpop.f32.mrb[0].mxu0
        %4610 = vmatprep.mubr.f32.mxu0 %v4390
        %4611 = vmatmul.mubr.f32.gmra.mrb[0].mxu0 %v4342
        %v4612 = vpop.f32.mrb[0].mxu0
        %v4613 = vadd.f32 0.0, %v4612
        %v4614 = vpop.f32.mrb[0].mxu0
        %4615 = vmatprep.mubr.f32.mxu0 %v4391
        %4616 = vmatmul.mubr.f32.gmra.mrb[0].mxu0 %v4343
        %v4617 = vpop.f32.mrb[0].mxu0
        %v4618 = vadd.f32 0.0, %v4617
        %v4619 = vpop.f32.mrb[0].mxu0
        %4620 = vdwg.mxu0
        %4621 = vmatprep.subr.mxu0 0.0
        %4622 = vmatpush1.msra.mxu0 %v4424
        %4623 = vmatprep.subr.mxu0 0.0
        %4624 = vmatpush1.msra.mxu0 %v4425
        %4625 = vmatprep.subr.mxu0 0.0
        %4626 = vmatpush1.msra.mxu0 %v4426
        %4627 = vmatprep.subr.mxu0 0.0
        %4628 = vmatpush1.msra.mxu0 %v4427
        %4629 = vmatprep.subr.mxu0 0.0
        %4630 = vmatpush1.msra.mxu0 0.0
        %4631 = vmatprep.subr.mxu0 0.0
        %4632 = vmatpush1.msra.mxu0 0.0
        %4633 = vmatprep.subr.mxu0 0.0
        %4634 = vmatpush1.msra.mxu0 0.0
        %4635 = vmatprep.subr.mxu0 0.0
        %4636 = vmatpush1.msra.mxu0 0.0
        %4637 = vmatprep.subr.mxu0 0.0
        %4638 = vmatpush1.msra.mxu0 0.0
        %4639 = vmatprep.subr.mxu0 0.0
        %4640 = vmatpush1.msra.mxu0 0.0
        %4641 = vmatprep.subr.mxu0 0.0
        %4642 = vmatpush1.msra.mxu0 0.0
        %4643 = vmatprep.subr.mxu0 0.0
        %4644 = vmatpush1.msra.mxu0 0.0
        %4645 = vmatprep.subr.mxu0 0.0
        %4646 = vmatpush1.msra.mxu0 0.0
        %4647 = vmatprep.subr.mxu0 0.0
        %4648 = vmatpush1.msra.mxu0 0.0
        %4649 = vmatprep.subr.mxu0 0.0
        %4650 = vmatpush1.msra.mxu0 0.0
        %4651 = vmatprep.subr.mxu0 0.0
        %4652 = vmatpush1.msra.mxu0 0.0
        %4653 = vmatprep.subr.mxu0 0.0
        %4654 = vmatpush1.msra.mxu0 0.0
        %4655 = vmatprep.subr.mxu0 0.0
        %4656 = vmatpush1.msra.mxu0 0.0
        %4657 = vmatprep.subr.mxu0 0.0
        %4658 = vmatpush1.msra.mxu0 0.0
        %4659 = vmatprep.subr.mxu0 0.0
        %4660 = vmatpush1.msra.mxu0 0.0
        %4661 = vmatprep.subr.mxu0 0.0
        %4662 = vmatpush1.msra.mxu0 0.0
        %4663 = vmatprep.subr.mxu0 0.0
        %4664 = vmatpush1.msra.mxu0 0.0
        %4665 = vmatprep.subr.mxu0 0.0
        %4666 = vmatpush1.msra.mxu0 0.0
        %4667 = vmatprep.subr.mxu0 0.0
        %4668 = vmatpush1.msra.mxu0 0.0
        %4669 = vmatprep.subr.mxu0 0.0
        %4670 = vmatpush1.msra.mxu0 0.0
        %4671 = vmatprep.subr.mxu0 0.0
        %4672 = vmatpush1.msra.mxu0 0.0
        %4673 = vmatprep.subr.mxu0 0.0
        %4674 = vmatpush1.msra.mxu0 0.0
        %4675 = vmatprep.subr.mxu0 0.0
        %4676 = vmatpush1.msra.mxu0 0.0
        %4677 = vmatprep.subr.mxu0 0.0
        %4678 = vmatpush1.msra.mxu0 0.0
        %4679 = vmatprep.subr.mxu0 0.0
        %4680 = vmatpush1.msra.mxu0 0.0
        %4681 = vmatprep.subr.mxu0 0.0
        %4682 = vmatpush1.msra.mxu0 0.0
        %4683 = vmatprep.subr.mxu0 0.0
        %4684 = vmatpush1.msra.mxu0 0.0
        %4685 = vmatprep.mubr.f32.mxu0 0.0
        %4686 = vmatmul.mubr.f32.gmra.mrb[0].mxu0 %v4429
        %v4687 = vpop.f32.mrb[0].mxu0
        %v4688 = vadd.f32 %v4543, %v4687
        %v4689 = vpop.f32.mrb[0].mxu0
        %4690 = vmatprep.mubr.f32.mxu0 0.0
        %4691 = vmatmul.mubr.f32.gmra.mrb[0].mxu0 %v4432
        %v4692 = vpop.f32.mrb[0].mxu0
        %v4693 = vadd.f32 %v4548, %v4692
        %v4694 = vpop.f32.mrb[0].mxu0
        %4695 = vmatprep.mubr.f32.mxu0 0.0
        %4696 = vmatmul.mubr.f32.gmra.mrb[0].mxu0 %v4435
        %v4697 = vpop.f32.mrb[0].mxu0
        %v4698 = vadd.f32 %v4553, %v4697
        %v4699 = vpop.f32.mrb[0].mxu0
        %4700 = vmatprep.mubr.f32.mxu0 0.0
        %4701 = vmatmul.mubr.f32.gmra.mrb[0].mxu0 %v4438
        %v4702 = vpop.f32.mrb[0].mxu0
        %v4703 = vadd.f32 %v4558, %v4702
        %v4704 = vpop.f32.mrb[0].mxu0
        %4705 = vmatprep.mubr.f32.mxu0 0.0
        %4706 = vmatmul.mubr.f32.gmra.mrb[0].mxu0 %v4441
        %v4707 = vpop.f32.mrb[0].mxu0
        %v4708 = vadd.f32 %v4563, %v4707
        %v4709 = vpop.f32.mrb[0].mxu0
        %4710 = vmatprep.mubr.f32.mxu0 0.0
        %4711 = vmatmul.mubr.f32.gmra.mrb[0].mxu0 %v4444
        %v4712 = vpop.f32.mrb[0].mxu0
        %v4713 = vadd.f32 %v4568, %v4712
        %v4714 = vpop.f32.mrb[0].mxu0
        %4715 = vmatprep.mubr.f32.mxu0 0.0
        %4716 = vmatmul.mubr.f32.gmra.mrb[0].mxu0 %v4447
        %v4717 = vpop.f32.mrb[0].mxu0
        %v4718 = vadd.f32 %v4573, %v4717
        %v4719 = vpop.f32.mrb[0].mxu0
        %4720 = vmatprep.mubr.f32.mxu0 0.0
        %4721 = vmatmul.mubr.f32.gmra.mrb[0].mxu0 %v4450
        %v4722 = vpop.f32.mrb[0].mxu0
        %v4723 = vadd.f32 %v4578, %v4722
        %v4724 = vpop.f32.mrb[0].mxu0
        %4725 = vmatprep.mubr.f32.mxu0 0.0
        %4726 = vmatmul.mubr.f32.gmra.mrb[0].mxu0 %v4453
        %v4727 = vpop.f32.mrb[0].mxu0
        %v4728 = vadd.f32 %v4583, %v4727
        %v4729 = vpop.f32.mrb[0].mxu0
        %4730 = vmatprep.mubr.f32.mxu0 0.0
        %4731 = vmatmul.mubr.f32.gmra.mrb[0].mxu0 %v4456
        %v4732 = vpop.f32.mrb[0].mxu0
        %v4733 = vadd.f32 %v4588, %v4732
        %v4734 = vpop.f32.mrb[0].mxu0
        %4735 = vmatprep.mubr.f32.mxu0 0.0
        %4736 = vmatmul.mubr.f32.gmra.mrb[0].mxu0 %v4459
        %v4737 = vpop.f32.mrb[0].mxu0
        %v4738 = vadd.f32 %v4593, %v4737
        %v4739 = vpop.f32.mrb[0].mxu0
        %4740 = vmatprep.mubr.f32.mxu0 0.0
        %4741 = vmatmul.mubr.f32.gmra.mrb[0].mxu0 %v4462
        %v4742 = vpop.f32.mrb[0].mxu0
        %v4743 = vadd.f32 %v4598, %v4742
        %v4744 = vpop.f32.mrb[0].mxu0
        %4745 = vmatprep.mubr.f32.mxu0 0.0
        %4746 = vmatmul.mubr.f32.gmra.mrb[0].mxu0 %v4465
        %v4747 = vpop.f32.mrb[0].mxu0
        %v4748 = vadd.f32 %v4603, %v4747
        %v4749 = vpop.f32.mrb[0].mxu0
        %4750 = vmatprep.mubr.f32.mxu0 0.0
        %4751 = vmatmul.mubr.f32.gmra.mrb[0].mxu0 %v4468
        %v4752 = vpop.f32.mrb[0].mxu0
        %v4753 = vadd.f32 %v4608, %v4752
        %v4754 = vpop.f32.mrb[0].mxu0
        %4755 = vmatprep.mubr.f32.mxu0 0.0
        %4756 = vmatmul.mubr.f32.gmra.mrb[0].mxu0 %v4471
        %v4757 = vpop.f32.mrb[0].mxu0
        %v4758 = vadd.f32 %v4613, %v4757
        %v4759 = vpop.f32.mrb[0].mxu0
        %4760 = vmatprep.mubr.f32.mxu0 0.0
        %4761 = vmatmul.mubr.f32.gmra.mrb[0].mxu0 %v4474
        %v4762 = vpop.f32.mrb[0].mxu0
        %v4763 = vadd.f32 %v4618, %v4762
        %v4764 = vpop.f32.mrb[0].mxu0
        %4765 = vdwg.mxu0
        %p4766 = scmp.eq.s32.totalorder %s23, 0
        // Predicated region
        $region37: #{tpu_custom_call.1} parent=35 // pred_check
          %p4767 = pneg %p4766
        $region38: #{tpu_custom_call.1} parent=35 // pred_check_branch
          %4769 = sbr.rel (%p4767) target = $region40
        $region39: #{tpu_custom_call.1} parent=35 // pred_region
          %4770 = vst [vmem:[%s252] sm:$0xff] %v4688
          %4771 = vst [vmem:[%s252 + $0x8] sm:$0xff] %v4693
          %4772 = vst [vmem:[%s252 + $0x10] sm:$0xff] %v4698
          %4773 = vst [vmem:[%s252 + $0x18] sm:$0xff] %v4703
          %4774 = vst [vmem:[%s252 + $0x20] sm:$0xff] %v4708
          %4775 = vst [vmem:[%s252 + $0x28] sm:$0xff] %v4713
          %4776 = vst [vmem:[%s252 + $0x30] sm:$0xff] %v4718
          %4777 = vst [vmem:[%s252 + $0x38] sm:$0xff] %v4723
          %4778 = vst [vmem:[%s252 + $0x40] sm:$0xff] %v4728
          %4779 = vst [vmem:[%s252 + $0x48] sm:$0xff] %v4733
          %4780 = vst [vmem:[%s252 + $0x50] sm:$0xff] %v4738
          %4781 = vst [vmem:[%s252 + $0x58] sm:$0xff] %v4743
          %4782 = vst [vmem:[%s252 + $0x60] sm:$0xff] %v4748
          %4783 = vst [vmem:[%s252 + $0x68] sm:$0xff] %v4753
          %4784 = vst [vmem:[%s252 + $0x70] sm:$0xff] %v4758
          %4785 = vst [vmem:[%s252 + $0x78] sm:$0xff] %v4763
        $region40: #{tpu_custom_call.1} parent=35 // pred_fallthru
          _
        %p4786 = scmp.gt.s32.totalorder %s23, 0
        // Predicated region
        $region41: #{tpu_custom_call.1} parent=35 // pred_check
          %p4787 = pneg %p4786
        $region42: #{tpu_custom_call.1} parent=35 // pred_check_branch
          %4789 = sbr.rel (%p4787) target = $region44
        $region43: #{tpu_custom_call.1} parent=35 // pred_region
          %v4790 = vld [vmem:[%s252] sm:$0xff]
          %v4791 = vld [vmem:[%s252 + $0x8] sm:$0xff]
          %v4792 = vld [vmem:[%s252 + $0x10] sm:$0xff]
          %v4793 = vld [vmem:[%s252 + $0x18] sm:$0xff]
          %v4794 = vld [vmem:[%s252 + $0x20] sm:$0xff]
          %v4795 = vld [vmem:[%s252 + $0x28] sm:$0xff]
          %v4796 = vld [vmem:[%s252 + $0x30] sm:$0xff]
          %v4797 = vld [vmem:[%s252 + $0x38] sm:$0xff]
          %v4798 = vld [vmem:[%s252 + $0x40] sm:$0xff]
          %v4799 = vld [vmem:[%s252 + $0x48] sm:$0xff]
          %v4800 = vld [vmem:[%s252 + $0x50] sm:$0xff]
          %v4801 = vld [vmem:[%s252 + $0x58] sm:$0xff]
          %v4802 = vld [vmem:[%s252 + $0x60] sm:$0xff]
          %v4803 = vld [vmem:[%s252 + $0x68] sm:$0xff]
          %v4804 = vld [vmem:[%s252 + $0x70] sm:$0xff]
          %v4805 = vld [vmem:[%s252 + $0x78] sm:$0xff]
          %v4806 = vadd.f32 %v4790, %v4688
          %v4807 = vadd.f32 %v4791, %v4693
          %v4808 = vadd.f32 %v4792, %v4698
          %v4809 = vadd.f32 %v4793, %v4703
          %v4810 = vadd.f32 %v4794, %v4708
          %v4811 = vadd.f32 %v4795, %v4713
          %v4812 = vadd.f32 %v4796, %v4718
          %v4813 = vadd.f32 %v4797, %v4723
          %v4814 = vadd.f32 %v4798, %v4728
          %v4815 = vadd.f32 %v4799, %v4733
          %v4816 = vadd.f32 %v4800, %v4738
          %v4817 = vadd.f32 %v4801, %v4743
          %v4818 = vadd.f32 %v4802, %v4748
          %v4819 = vadd.f32 %v4803, %v4753
          %v4820 = vadd.f32 %v4804, %v4758
          %v4821 = vadd.f32 %v4805, %v4763
          %4822 = vst [vmem:[%s252] sm:$0xff] %v4806
          %4823 = vst [vmem:[%s252 + $0x8] sm:$0xff] %v4807
          %4824 = vst [vmem:[%s252 + $0x10] sm:$0xff] %v4808
          %4825 = vst [vmem:[%s252 + $0x18] sm:$0xff] %v4809
          %4826 = vst [vmem:[%s252 + $0x20] sm:$0xff] %v4810
          %4827 = vst [vmem:[%s252 + $0x28] sm:$0xff] %v4811
          %4828 = vst [vmem:[%s252 + $0x30] sm:$0xff] %v4812
          %4829 = vst [vmem:[%s252 + $0x38] sm:$0xff] %v4813
          %4830 = vst [vmem:[%s252 + $0x40] sm:$0xff] %v4814
          %4831 = vst [vmem:[%s252 + $0x48] sm:$0xff] %v4815
          %4832 = vst [vmem:[%s252 + $0x50] sm:$0xff] %v4816
          %4833 = vst [vmem:[%s252 + $0x58] sm:$0xff] %v4817
          %4834 = vst [vmem:[%s252 + $0x60] sm:$0xff] %v4818
          %4835 = vst [vmem:[%s252 + $0x68] sm:$0xff] %v4819
          %4836 = vst [vmem:[%s252 + $0x70] sm:$0xff] %v4820
          %4837 = vst [vmem:[%s252 + $0x78] sm:$0xff] %v4821
        $region44: #{tpu_custom_call.1} parent=35 // pred_fallthru
          _
        %s4838 = sand.u32 %s144, 1
        %s4839 = scalar_lea.sflag [#allocation3], %s4838
        %s4840 = sand.u32 %s144, 1
        %s4841 = smul.addr %s4840, 128
        %s4842 = scalar_lea.vmem [#allocation2], %s4841
        // Predicated region
        $region45: #{tpu_custom_call.1} parent=35 // pred_check
          %p4843 = pneg %p154
        $region46: #{tpu_custom_call.1} parent=35 // pred_check_branch
          %4845 = sbr.rel (%p4843) target = $region48
        $region47: #{tpu_custom_call.1} parent=35 // pred_region
          %s4846 = smul.u32 16, %s22
          %s4848 = ssub.s32 2048, 2048
          %4849 = vsyncadd %s4839, %s4848
          %s4850 = smul.addr %s4846, 128
          %s4851 = scalar_lea.hbm %s4, %s4850
          %s4852 = sshll.u32 %s4842, 4
          %s4853 = int_to_ptr.vmem [resolvable:$true] %s4852
          %4858 = dma.vmem_to_hbm [thread:$0]  %s4853, 2048, %s4851, %s4839, 128, 128, 8
        $region48: #{tpu_custom_call.1} parent=35 // pred_fallthru
          _
      $region36: #{tpu_custom_call.1} parent=5 // pred_fallthru
        _
      %p4859 = scmp.le.s32.totalorder 2, %s13
      // Predicated region
      $region49: #{tpu_custom_call.1} parent=5 // pred_check
        %p4860 = pneg %p4859
      $region50: #{tpu_custom_call.1} parent=5 // pred_check_branch
        %4862 = sbr.rel (%p4860) target = $region52
      $region51: #{tpu_custom_call.1} parent=5 // pred_region
        %s4863 = ssub.s32 %s13, 2
        // Predicated region
        $region53: #{tpu_custom_call.1} parent=51 // pred_check
          %p4864 = pneg %p160
        $region54: #{tpu_custom_call.1} parent=51 // pred_check_branch
          %4866 = sbr.rel (%p4864) target = $region56
        $region55: #{tpu_custom_call.1} parent=51 // pred_region
          %s4867 = sand.u32 %s145, 1
          %s4868 = scalar_lea.sflag [#allocation3], %s4867
          %s4869 = sand.u32 %s145, 1
          %s4870 = smul.addr %s4869, 128
          %s4871 = scalar_lea.vmem [#allocation2], %s4870
          %4872 = dma.done %s4868, 2048
        $region56: #{tpu_custom_call.1} parent=51 // pred_fallthru
          _
      $region52: #{tpu_custom_call.1} parent=5 // pred_fallthru
        _
    $region6: #{tpu_custom_call.1} parent=1 // loop_footer
      %s17 = sadd.s32 1, %s13
    $region7: #{tpu_custom_call.1} parent=1 // loop_footer_branch
      %12 = sbr.rel target = $region3
    $region8: #{tpu_custom_call.1} parent=1 // loop_exit
      _
    %4873 = vsyncpa [#allocation3], 1
    %s4874 = scalar_lea.sflag [#allocation3], 1
    %4875 = vsyncpa %s4874, 1

</llo_original>
